<compile_context>
chip_gen: v7x
topology: tpu7x:2x2x1
jax: 0.10.0
libtpu: 0.0.40
codegen_flags: <defaults>
</compile_context>

<pallas_src>
import jax
import jax.numpy as jnp
from jax.experimental import pallas as pl
from jax.experimental.pallas import tpu as pltpu

NEG_SLOPE = 0.01                      # nn.LeakyReLU() default negative_slope
DIMS = (210, 1000, 500, 200, 100, 1)  # original layer dims
PAD_DIMS = (256, 1024, 512, 256, 128) # input + 4 hidden dims, padded to lane multiples
OUT_PAD = 128                         # padded width of the final layer's output block


def _round_up(n, m):
    return (n + m - 1) // m * m


def _leaky_relu(v):
    # Identical to where(v>0, v, slope*v) for 0 < slope < 1; mul+max on the VPU.
    return jnp.maximum(v, NEG_SLOPE * v)


def feednn_kernel(x_ref,
                  w1_ref, b1_ref,
                  w2_ref, b2_ref,
                  w3_ref, b3_ref,
                  w4_ref, b4_ref,
                  w5_ref, b5_ref,
                  out_ref):
    # x tile: (TB, 256) bf16. w1..w4: bf16 (in_pad, out_pad). b1..b4: f32 (1, out_pad).
    # w5: f32 (128, 128) with only column 0 populated; b5: f32 (1, 128).
    h = jnp.dot(x_ref[...], w1_ref[...], preferred_element_type=jnp.float32)
    h = _leaky_relu(h + b1_ref[...])

    h = jnp.dot(h.astype(jnp.bfloat16), w2_ref[...], preferred_element_type=jnp.float32)
    h = _leaky_relu(h + b2_ref[...])

    h = jnp.dot(h.astype(jnp.bfloat16), w3_ref[...], preferred_element_type=jnp.float32)
    h = _leaky_relu(h + b3_ref[...])

    h = jnp.dot(h.astype(jnp.bfloat16), w4_ref[...], preferred_element_type=jnp.float32)
    h = _leaky_relu(h + b4_ref[...])

    # Dropout(p=0.1): identity in eval/inference mode.
    # TODO(synk): training-mode dropout (pltpu.prng_seed + prng_random_bits mask + 1/(1-p) scale).

    # Final Linear(100 -> 1), zero-padded to a (128 -> 128) f32 matmul so the
    # output store is lane-dense (unmasked vst on a 128-wide block).  Only
    # column 0 carries the real result; the wrapper slices it out.
    out = jnp.dot(h, w5_ref[...], preferred_element_type=jnp.float32) + b5_ref[...]
    out_ref[...] = out.astype(out_ref.dtype)


def init_params(key, dims=DIMS):
    """PyTorch nn.Linear-style params: W (out, in), b (out,), U(-1/sqrt(fan_in), +)."""
    params = []
    for fan_in, fan_out in zip(dims[:-1], dims[1:]):
        key, kw, kb = jax.random.split(key, 3)
        bound = 1.0 / jnp.sqrt(jnp.float32(fan_in))
        w = jax.random.uniform(kw, (fan_out, fan_in), jnp.float32, -bound, bound)
        b = jax.random.uniform(kb, (fan_out,), jnp.float32, -bound, bound)
        params.append((w, b))
    return params


def pack_params(params):
    """One-time prep: transpose to (in, out), zero-pad to lane-aligned dims,
    cast the four big matmul weights to bf16 (accumulation stays f32 on the MXU).
    The final 100->1 layer is padded to a (128, 128) f32 matrix (column 0 real)."""
    packed = []
    for idx, (w, b) in enumerate(params):
        fan_out, fan_in = w.shape
        in_pad = PAD_DIMS[idx]
        if idx < 4:
            out_pad = PAD_DIMS[idx + 1]
            w_p = jnp.zeros((in_pad, out_pad), jnp.float32).at[:fan_in, :fan_out].set(w.T)
            b_p = jnp.zeros((1, out_pad), jnp.float32).at[:, :fan_out].set(b[None, :])
            packed.append((w_p.astype(jnp.bfloat16), b_p))
        else:
            w_p = jnp.zeros((in_pad, OUT_PAD), jnp.float32).at[:fan_in, :fan_out].set(w.T)
            b_p = jnp.zeros((1, OUT_PAD), jnp.float32).at[:, :fan_out].set(b[None, :])
            packed.append((w_p, b_p))
    return packed


def _choose_tiling(B, tb):
    """Pick (tile_rows, padded_batch). Small batches: one 16-aligned tile
    (bf16 packs 2 rows/sublane). Large batches: pad to a multiple of 128 and
    pick the largest 128-multiple tile <= tb that divides it exactly, keeping
    padding waste small and avoiding ragged tails."""
    b16 = _round_up(max(B, 16), 16)
    if b16 <= tb:
        return b16, b16
    b_pad = _round_up(B, 128)
    tb_eff = 128
    t = 256
    while t <= min(tb, b_pad):
        if b_pad % t == 0:
            tb_eff = t
        t += 128
    return tb_eff, b_pad


def feednn_forward(x, packed, *, tb=512):
    """x: (B, 210) float32. packed: output of pack_params(). Returns (B, 1) float32."""
    B, in_dim = x.shape
    assert in_dim == DIMS[0], in_dim
    d0 = PAD_DIMS[0]

    tb_eff, b_pad = _choose_tiling(B, tb)

    # Zero-pad batch rows + feature lanes; bf16 activations into the MXU.
    x_p = jnp.zeros((b_pad, d0), jnp.float32).at[:B, :in_dim].set(x).astype(jnp.bfloat16)

    flat = [x_p]
    for w, b in packed:
        flat.extend([w, b])

    # x / out tiles stream over the batch grid; weights & biases are pinned to
    # block (0, 0) so they stay VMEM-resident (no re-DMA) across grid steps.
    def resident(shape):
        return pl.BlockSpec(shape, lambda i: (0,) * len(shape))

    in_specs = [pl.BlockSpec((tb_eff, d0), lambda i: (i, 0))]
    for w, b in packed:
        in_specs.append(resident(w.shape))
        in_specs.append(resident(b.shape))
    out_specs = pl.BlockSpec((tb_eff, OUT_PAD), lambda i: (i, 0))

    flops = 2 * b_pad * (PAD_DIMS[0] * PAD_DIMS[1] + PAD_DIMS[1] * PAD_DIMS[2]
                         + PAD_DIMS[2] * PAD_DIMS[3] + PAD_DIMS[3] * PAD_DIMS[4]
                         + PAD_DIMS[4] * OUT_PAD)
    bytes_weights = sum(int(w.size) * w.dtype.itemsize + int(b.size) * b.dtype.itemsize
                        for w, b in packed)
    bytes_accessed = (int(x_p.size) * x_p.dtype.itemsize + bytes_weights
                      + b_pad * OUT_PAD * 4)

    out = pl.pallas_call(
        feednn_kernel,
        out_shape=jax.ShapeDtypeStruct((b_pad, OUT_PAD), jnp.float32),
        grid=(b_pad // tb_eff,),
        in_specs=in_specs,
        out_specs=out_specs,
        compiler_params=pltpu.CompilerParams(
            dimension_semantics=("parallel",),      # shards batch tiles across TCs on v7x
            vmem_limit_bytes=32 * 1024 * 1024),     # lifts v5e's 16 MiB scoped default
        cost_estimate=pl.CostEstimate(
            flops=int(flops), transcendentals=0, bytes_accessed=int(bytes_accessed)),
    )(*flat)
    return out[:B, :1]


def feednn_ref(x, params):
    """Pure-f32 JAX reference of the PyTorch module (eval mode)."""
    h = x
    n = len(params)
    for i, (w, b) in enumerate(params):
        h = h @ w.T + b
        if i < n - 1:
            h = jnp.where(h > 0, h, NEG_SLOPE * h)
    return h


if __name__ == "__main__":
    key = jax.random.PRNGKey(0)
    key, kx = jax.random.split(key)

    batch = 8
    x = jax.random.normal(kx, (batch, DIMS[0]), jnp.float32)
    params = init_params(key)
    packed = pack_params(params)

    # Small-batch path (single 16-aligned tile).
    out = jax.block_until_ready(feednn_forward(x, packed))
    ref = feednn_ref(x, params)
    assert out.shape == (batch, 1), out.shape
    # bf16 weights/activations (f32 accumulate) vs pure-f32 reference -> loose tolerance.
    assert jnp.allclose(out, ref, atol=5e-2, rtol=5e-2), "small-batch mismatch vs reference"

    # Multi-tile gridded path (exercises batch tiling, padding and resident weights).
    key, kx2 = jax.random.split(key)
    big_b = 600
    x_big = jax.random.normal(kx2, (big_b, DIMS[0]), jnp.float32)
    out_big = jax.block_until_ready(feednn_forward(x_big, packed, tb=512))
    ref_big = feednn_ref(x_big, params)
    assert out_big.shape == (big_b, 1), out_big.shape
    assert jnp.allclose(out_big, ref_big, atol=5e-2, rtol=5e-2), "big-batch mismatch vs reference"

    print("KERNEL_OK")
</pallas_src>

<mosaic_0001>
module attributes {stable_mosaic.version = 11 : i64} {
  func.func @feednn_kernel(%arg0: i32, %arg1: memref<16x256xbf16, #tpu.memory_space<vmem>>, %arg2: memref<256x1024xbf16, #tpu.memory_space<vmem>>, %arg3: memref<1x1024xf32, #tpu.memory_space<vmem>>, %arg4: memref<1024x512xbf16, #tpu.memory_space<vmem>>, %arg5: memref<1x512xf32, #tpu.memory_space<vmem>>, %arg6: memref<512x256xbf16, #tpu.memory_space<vmem>>, %arg7: memref<1x256xf32, #tpu.memory_space<vmem>>, %arg8: memref<256x128xbf16, #tpu.memory_space<vmem>>, %arg9: memref<1x128xf32, #tpu.memory_space<vmem>>, %arg10: memref<128x128xf32, #tpu.memory_space<vmem>>, %arg11: memref<1x128xf32, #tpu.memory_space<vmem>>, %arg12: memref<16x128xf32, #tpu.memory_space<vmem>>) attributes {dimension_semantics = [#tpu.dimension_semantics<parallel>], iteration_bounds = array<i64: 1>, scalar_prefetch = 0 : i64, scratch_operands = 0 : i64, tpu.core_type = #tpu.core_type<tc>, window_params = [{transform_indices = @transform_0, window_bounds = array<i64: 16, 256>}, {pipeline_mode = #tpu.pipeline_mode<synchronous>, transform_indices = @transform_1, window_bounds = array<i64: 256, 1024>}, {pipeline_mode = #tpu.pipeline_mode<synchronous>, transform_indices = @transform_2, window_bounds = array<i64: 1, 1024>}, {pipeline_mode = #tpu.pipeline_mode<synchronous>, transform_indices = @transform_3, window_bounds = array<i64: 1024, 512>}, {pipeline_mode = #tpu.pipeline_mode<synchronous>, transform_indices = @transform_4, window_bounds = array<i64: 1, 512>}, {pipeline_mode = #tpu.pipeline_mode<synchronous>, transform_indices = @transform_5, window_bounds = array<i64: 512, 256>}, {pipeline_mode = #tpu.pipeline_mode<synchronous>, transform_indices = @transform_6, window_bounds = array<i64: 1, 256>}, {pipeline_mode = #tpu.pipeline_mode<synchronous>, transform_indices = @transform_7, window_bounds = array<i64: 256, 128>}, {pipeline_mode = #tpu.pipeline_mode<synchronous>, transform_indices = @transform_8, window_bounds = array<i64: 1, 128>}, {pipeline_mode = #tpu.pipeline_mode<synchronous>, transform_indices = @transform_9, window_bounds = array<i64: 128, 128>}, {pipeline_mode = #tpu.pipeline_mode<synchronous>, transform_indices = @transform_10, window_bounds = array<i64: 1, 128>}, {transform_indices = @transform_11, window_bounds = array<i64: 16, 128>}]} {
    %c0 = arith.constant 0 : index
    %c0_0 = arith.constant 0 : index
    %0 = vector.load %arg1[%c0, %c0_0] : memref<16x256xbf16, #tpu.memory_space<vmem>>, vector<16x256xbf16>
    %c0_1 = arith.constant 0 : index
    %c0_2 = arith.constant 0 : index
    %1 = vector.load %arg2[%c0_1, %c0_2] : memref<256x1024xbf16, #tpu.memory_space<vmem>>, vector<256x1024xbf16>
    %cst = arith.constant dense<0.000000e+00> : vector<16x1024xf32>
    %2 = tpu.matmul %0, %1, %cst {dimension_numbers = #tpu.dot_dimension_numbers<[1], [0], [0], [1], [0, 0, 1, 1], [], []>} : vector<16x256xbf16>, vector<256x1024xbf16>, vector<16x1024xf32> -> vector<16x1024xf32>
    %c0_3 = arith.constant 0 : index
    %c0_4 = arith.constant 0 : index
    %3 = vector.load %arg3[%c0_3, %c0_4] : memref<1x1024xf32, #tpu.memory_space<vmem>>, vector<1x1024xf32>
    %4 = vector.broadcast %3 : vector<1x1024xf32> to vector<16x1024xf32>
    %5 = arith.addf %2, %4 : vector<16x1024xf32>
    %cst_5 = arith.constant 0.00999999977 : f32
    %6 = vector.broadcast %cst_5 : f32 to vector<16x1024xf32>
    %7 = arith.mulf %6, %5 : vector<16x1024xf32>
    %8 = arith.maximumf %5, %7 : vector<16x1024xf32>
    %9 = arith.truncf %8 : vector<16x1024xf32> to vector<16x1024xbf16>
    %c0_6 = arith.constant 0 : index
    %c0_7 = arith.constant 0 : index
    %10 = vector.load %arg4[%c0_6, %c0_7] : memref<1024x512xbf16, #tpu.memory_space<vmem>>, vector<1024x512xbf16>
    %cst_8 = arith.constant dense<0.000000e+00> : vector<16x512xf32>
    %11 = tpu.matmul %9, %10, %cst_8 {dimension_numbers = #tpu.dot_dimension_numbers<[1], [0], [0], [1], [0, 0, 1, 1], [], []>} : vector<16x1024xbf16>, vector<1024x512xbf16>, vector<16x512xf32> -> vector<16x512xf32>
    %c0_9 = arith.constant 0 : index
    %c0_10 = arith.constant 0 : index
    %12 = vector.load %arg5[%c0_9, %c0_10] : memref<1x512xf32, #tpu.memory_space<vmem>>, vector<1x512xf32>
    %13 = vector.broadcast %12 : vector<1x512xf32> to vector<16x512xf32>
    %14 = arith.addf %11, %13 : vector<16x512xf32>
    %cst_11 = arith.constant 0.00999999977 : f32
    %15 = vector.broadcast %cst_11 : f32 to vector<16x512xf32>
    %16 = arith.mulf %15, %14 : vector<16x512xf32>
    %17 = arith.maximumf %14, %16 : vector<16x512xf32>
    %18 = arith.truncf %17 : vector<16x512xf32> to vector<16x512xbf16>
    %c0_12 = arith.constant 0 : index
    %c0_13 = arith.constant 0 : index
    %19 = vector.load %arg6[%c0_12, %c0_13] : memref<512x256xbf16, #tpu.memory_space<vmem>>, vector<512x256xbf16>
    %cst_14 = arith.constant dense<0.000000e+00> : vector<16x256xf32>
    %20 = tpu.matmul %18, %19, %cst_14 {dimension_numbers = #tpu.dot_dimension_numbers<[1], [0], [0], [1], [0, 0, 1, 1], [], []>} : vector<16x512xbf16>, vector<512x256xbf16>, vector<16x256xf32> -> vector<16x256xf32>
    %c0_15 = arith.constant 0 : index
    %c0_16 = arith.constant 0 : index
    %21 = vector.load %arg7[%c0_15, %c0_16] : memref<1x256xf32, #tpu.memory_space<vmem>>, vector<1x256xf32>
    %22 = vector.broadcast %21 : vector<1x256xf32> to vector<16x256xf32>
    %23 = arith.addf %20, %22 : vector<16x256xf32>
    %cst_17 = arith.constant 0.00999999977 : f32
    %24 = vector.broadcast %cst_17 : f32 to vector<16x256xf32>
    %25 = arith.mulf %24, %23 : vector<16x256xf32>
    %26 = arith.maximumf %23, %25 : vector<16x256xf32>
    %27 = arith.truncf %26 : vector<16x256xf32> to vector<16x256xbf16>
    %c0_18 = arith.constant 0 : index
    %c0_19 = arith.constant 0 : index
    %28 = vector.load %arg8[%c0_18, %c0_19] : memref<256x128xbf16, #tpu.memory_space<vmem>>, vector<256x128xbf16>
    %cst_20 = arith.constant dense<0.000000e+00> : vector<16x128xf32>
    %29 = tpu.matmul %27, %28, %cst_20 {dimension_numbers = #tpu.dot_dimension_numbers<[1], [0], [0], [1], [0, 0, 1, 1], [], []>} : vector<16x256xbf16>, vector<256x128xbf16>, vector<16x128xf32> -> vector<16x128xf32>
    %c0_21 = arith.constant 0 : index
    %c0_22 = arith.constant 0 : index
    %30 = vector.load %arg9[%c0_21, %c0_22] : memref<1x128xf32, #tpu.memory_space<vmem>>, vector<1x128xf32>
    %31 = vector.broadcast %30 : vector<1x128xf32> to vector<16x128xf32>
    %32 = arith.addf %29, %31 : vector<16x128xf32>
    %cst_23 = arith.constant 0.00999999977 : f32
    %33 = vector.broadcast %cst_23 : f32 to vector<16x128xf32>
    %34 = arith.mulf %33, %32 : vector<16x128xf32>
    %35 = arith.maximumf %32, %34 : vector<16x128xf32>
    %c0_24 = arith.constant 0 : index
    %c0_25 = arith.constant 0 : index
    %36 = vector.load %arg10[%c0_24, %c0_25] : memref<128x128xf32, #tpu.memory_space<vmem>>, vector<128x128xf32>
    %cst_26 = arith.constant dense<0.000000e+00> : vector<16x128xf32>
    %37 = tpu.matmul %35, %36, %cst_26 {dimension_numbers = #tpu.dot_dimension_numbers<[1], [0], [0], [1], [0, 0, 1, 1], [], []>} : vector<16x128xf32>, vector<128x128xf32>, vector<16x128xf32> -> vector<16x128xf32>
    %c0_27 = arith.constant 0 : index
    %c0_28 = arith.constant 0 : index
    %38 = vector.load %arg11[%c0_27, %c0_28] : memref<1x128xf32, #tpu.memory_space<vmem>>, vector<1x128xf32>
    %39 = vector.broadcast %38 : vector<1x128xf32> to vector<16x128xf32>
    %40 = arith.addf %37, %39 : vector<16x128xf32>
    %c0_29 = arith.constant 0 : index
    %c0_30 = arith.constant 0 : index
    %41 = vector.load %arg12[%c0_29, %c0_30] : memref<16x128xf32, #tpu.memory_space<vmem>>, vector<16x128xf32>
    tpu.vector_store %arg12[%c0_29, %c0_30], %40 {strides = array<i32>} : memref<16x128xf32, #tpu.memory_space<vmem>>, vector<16x128xf32>,
    return
  }
  func.func @transform_0(%arg0: i32) -> (i32, i32) {
    %c0_i32 = arith.constant 0 : i32
    %c0_i32_0 = arith.constant 0 : i32
    return %arg0, %c0_i32 : i32, i32
  }
  func.func @transform_1(%arg0: i32) -> (i32, i32) {
    %c0_i32 = arith.constant 0 : i32
    %c0_i32_0 = arith.constant 0 : i32
    %c0_i32_1 = arith.constant 0 : i32
    return %c0_i32, %c0_i32_0 : i32, i32
  }
  func.func @transform_2(%arg0: i32) -> (i32, i32) {
    %c0_i32 = arith.constant 0 : i32
    %c0_i32_0 = arith.constant 0 : i32
    %c0_i32_1 = arith.constant 0 : i32
    return %c0_i32, %c0_i32_0 : i32, i32
  }
  func.func @transform_3(%arg0: i32) -> (i32, i32) {
    %c0_i32 = arith.constant 0 : i32
    %c0_i32_0 = arith.constant 0 : i32
    %c0_i32_1 = arith.constant 0 : i32
    return %c0_i32, %c0_i32_0 : i32, i32
  }
  func.func @transform_4(%arg0: i32) -> (i32, i32) {
    %c0_i32 = arith.constant 0 : i32
    %c0_i32_0 = arith.constant 0 : i32
    %c0_i32_1 = arith.constant 0 : i32
    return %c0_i32, %c0_i32_0 : i32, i32
  }
  func.func @transform_5(%arg0: i32) -> (i32, i32) {
    %c0_i32 = arith.constant 0 : i32
    %c0_i32_0 = arith.constant 0 : i32
    %c0_i32_1 = arith.constant 0 : i32
    return %c0_i32, %c0_i32_0 : i32, i32
  }
  func.func @transform_6(%arg0: i32) -> (i32, i32) {
    %c0_i32 = arith.constant 0 : i32
    %c0_i32_0 = arith.constant 0 : i32
    %c0_i32_1 = arith.constant 0 : i32
    return %c0_i32, %c0_i32_0 : i32, i32
  }
  func.func @transform_7(%arg0: i32) -> (i32, i32) {
    %c0_i32 = arith.constant 0 : i32
    %c0_i32_0 = arith.constant 0 : i32
    %c0_i32_1 = arith.constant 0 : i32
    return %c0_i32, %c0_i32_0 : i32, i32
  }
  func.func @transform_8(%arg0: i32) -> (i32, i32) {
    %c0_i32 = arith.constant 0 : i32
    %c0_i32_0 = arith.constant 0 : i32
    %c0_i32_1 = arith.constant 0 : i32
    return %c0_i32, %c0_i32_0 : i32, i32
  }
  func.func @transform_9(%arg0: i32) -> (i32, i32) {
    %c0_i32 = arith.constant 0 : i32
    %c0_i32_0 = arith.constant 0 : i32
    %c0_i32_1 = arith.constant 0 : i32
    return %c0_i32, %c0_i32_0 : i32, i32
  }
  func.func @transform_10(%arg0: i32) -> (i32, i32) {
    %c0_i32 = arith.constant 0 : i32
    %c0_i32_0 = arith.constant 0 : i32
    %c0_i32_1 = arith.constant 0 : i32
    return %c0_i32, %c0_i32_0 : i32, i32
  }
  func.func @transform_11(%arg0: i32) -> (i32, i32) {
    %c0_i32 = arith.constant 0 : i32
    %c0_i32_0 = arith.constant 0 : i32
    return %arg0, %c0_i32 : i32, i32
  }
}

</mosaic_0001>

<llo_original>
// kernel: tpu_custom_call.1
$region0: #{tpu_custom_call.1}
  #allocation0 [shape = 'u32[]', space=smem, size = 0x4, offset = 0x4, fixed_abs, tag = 'smem constant byte address 0x4 - core index']
  #allocation1 [shape = 'u32[144,128]{1,0:T(1,128)}', space=vmem, size = 0x12000, scoped, tag = 'internal scratch']
  %s0 = inlined_call_operand.hbm [shape: bf16[16,256], index: 0, kind: input, shape index: {}]
  %s1 = inlined_call_operand.hbm [shape: bf16[256,1024], index: 1, kind: input, shape index: {}]
  %s2 = inlined_call_operand.hbm [shape: f32[1,1024], index: 2, kind: input, shape index: {}]
  %s3 = inlined_call_operand.hbm [shape: bf16[1024,512], index: 3, kind: input, shape index: {}]
  %s4 = inlined_call_operand.vmem [shape: f32[1,512], index: 4, kind: input, shape index: {}]
  %s5 = inlined_call_operand.hbm [shape: bf16[512,256], index: 5, kind: input, shape index: {}]
  %s6 = inlined_call_operand.vmem [shape: f32[1,256], index: 6, kind: input, shape index: {}]
  %s7 = inlined_call_operand.hbm [shape: bf16[256,128], index: 7, kind: input, shape index: {}]
  %s8 = inlined_call_operand.vmem [shape: f32[1,128], index: 8, kind: input, shape index: {}]
  %s9 = inlined_call_operand.hbm [shape: f32[128,128], index: 9, kind: input, shape index: {}]
  %s10 = inlined_call_operand.vmem [shape: f32[1,128], index: 10, kind: input, shape index: {}]
  %s11 = inlined_call_operand.hbm [shape: f32[16,128], index: 11, kind: output, shape index: {}]
  %s12 = sld [smem:[#allocation0]]
  $region82: #{tpu_custom_call.1} parent=0
    _
  %s14 = ssub.s32 1, %s12
  %s15 = scalar_select 0, %s14, %s12
  $region1: #{tpu_custom_call.1} parent=0
    #allocation2 [shape = 'u8[8192]{0}', space=vmem, size = 0x2000, scoped, tag = 'input window, operand 0, single buffered']
    #allocation3 [shape = 's32[1]{0}', space=sflag, size = 0x4, scoped, tag = 'scoped memory for tpu_custom_call.1']
    #allocation4 [shape = 's32[1]{0}', space=sflag, size = 0x4, scoped, tag = 'scoped memory for tpu_custom_call.1']
    #allocation5 [shape = 'u8[524288]{0}', space=vmem, size = 0x80000, scoped, tag = 'input window, operand 1, single buffered']
    #allocation6 [shape = 's32[1]{0}', space=sflag, size = 0x4, scoped, tag = 'scoped memory for tpu_custom_call.1']
    #allocation7 [shape = 'u8[4096]{0}', space=vmem, size = 0x1000, scoped, tag = 'input window, operand 2, single buffered']
    #allocation8 [shape = 'u8[1048576]{0}', space=vmem, size = 0x100000, scoped, tag = 'input window, operand 3, single buffered']
    #allocation9 [shape = 's32[1]{0}', space=sflag, size = 0x4, scoped, tag = 'scoped memory for tpu_custom_call.1']
    #allocation10 [shape = 'u8[262144]{0}', space=vmem, size = 0x40000, scoped, tag = 'input window, operand 5, single buffered']
    #allocation11 [shape = 'u8[65536]{0}', space=vmem, size = 0x10000, scoped, tag = 'input window, operand 7, single buffered']
    #allocation12 [shape = 's32[1]{0}', space=sflag, size = 0x4, scoped, tag = 'scoped memory for tpu_custom_call.1']
    #allocation13 [shape = 'u8[65536]{0}', space=vmem, size = 0x10000, scoped, tag = 'input window, operand 9, single buffered']
    #allocation14 [shape = 'u8[8192]{0}', space=vmem, size = 0x2000, scoped, tag = 'output window, operand 0, single buffered']
    %16 = vsyncpa [#allocation3], 0
    %17 = vsyncpa [#allocation6], 0
    %18 = vsyncpa [#allocation9], 0
    %19 = vsyncpa [#allocation12], 0
    %20 = vsyncpa [#allocation4], 0
    // Predicated region
    $region2: #{tpu_custom_call.1} parent=1 // pred_check
      _
    $region3: #{tpu_custom_call.1} parent=1 // pred_check_branch
      %22 = sbr.rel (0) target = $region5
    $region4: #{tpu_custom_call.1} parent=1 // pred_region
      %s24 = ssub.s32 256, 256
      %25 = vsyncadd [#allocation3], %s24
      %s26 = sshll.u32 [#allocation2], 4
      %s27 = int_to_ptr.vmem [resolvable:$true] %s26
      %32 = dma.hbm_to_vmem [thread:$0]  %s0, 256, %s27, [#allocation3], 128, 128, 8
    $region5: #{tpu_custom_call.1} parent=1 // pred_fallthru
      _
    // Predicated region
    $region6: #{tpu_custom_call.1} parent=1 // pred_check
      _
    $region7: #{tpu_custom_call.1} parent=1 // pred_check_branch
      %34 = sbr.rel (0) target = $region9
    $region8: #{tpu_custom_call.1} parent=1 // pred_region
      %s36 = ssub.s32 16384, 16384
      %37 = vsyncadd [#allocation6], %s36
      %s38 = sshll.u32 [#allocation5], 4
      %s39 = int_to_ptr.vmem [resolvable:$true] %s38
      %44 = dma.hbm_to_vmem [thread:$0]  %s1, 16384, %s39, [#allocation6], 512, 512, 32
    $region9: #{tpu_custom_call.1} parent=1 // pred_fallthru
      _
    // Predicated region
    $region10: #{tpu_custom_call.1} parent=1 // pred_check
      _
    $region11: #{tpu_custom_call.1} parent=1 // pred_check_branch
      %46 = sbr.rel (0) target = $region13
    $region12: #{tpu_custom_call.1} parent=1 // pred_region
      %s48 = ssub.s32 128, 128
      %49 = vsyncadd [#allocation6], %s48
      %s51 = sshll.u32 [#allocation7], 4
      %s52 = int_to_ptr.vmem [resolvable:$true] %s51
      %54 = dma.hbm_to_vmem [thread:$0]  %s2, 128, %s52, [#allocation6]
    $region13: #{tpu_custom_call.1} parent=1 // pred_fallthru
      _
    // Predicated region
    $region14: #{tpu_custom_call.1} parent=1 // pred_check
      _
    $region15: #{tpu_custom_call.1} parent=1 // pred_check_branch
      %56 = sbr.rel (0) target = $region17
    $region16: #{tpu_custom_call.1} parent=1 // pred_region
      %s58 = ssub.s32 32768, 32768
      %59 = vsyncadd [#allocation9], %s58
      %s60 = sshll.u32 [#allocation8], 4
      %s61 = int_to_ptr.vmem [resolvable:$true] %s60
      %66 = dma.hbm_to_vmem [thread:$0]  %s3, 32768, %s61, [#allocation9], 256, 256, 16
    $region17: #{tpu_custom_call.1} parent=1 // pred_fallthru
      _
    // Predicated region
    $region18: #{tpu_custom_call.1} parent=1 // pred_check
      _
    $region19: #{tpu_custom_call.1} parent=1 // pred_check_branch
      %68 = sbr.rel (0) target = $region21
    $region20: #{tpu_custom_call.1} parent=1 // pred_region
      _
    $region21: #{tpu_custom_call.1} parent=1 // pred_fallthru
      _
    // Predicated region
    $region22: #{tpu_custom_call.1} parent=1 // pred_check
      _
    $region23: #{tpu_custom_call.1} parent=1 // pred_check_branch
      %70 = sbr.rel (0) target = $region25
    $region24: #{tpu_custom_call.1} parent=1 // pred_region
      %s72 = ssub.s32 8192, 8192
      %73 = vsyncadd [#allocation9], %s72
      %s74 = sshll.u32 [#allocation10], 4
      %s75 = int_to_ptr.vmem [resolvable:$true] %s74
      %80 = dma.hbm_to_vmem [thread:$0]  %s5, 8192, %s75, [#allocation9], 128, 128, 8
    $region25: #{tpu_custom_call.1} parent=1 // pred_fallthru
      _
    // Predicated region
    $region26: #{tpu_custom_call.1} parent=1 // pred_check
      _
    $region27: #{tpu_custom_call.1} parent=1 // pred_check_branch
      %82 = sbr.rel (0) target = $region29
    $region28: #{tpu_custom_call.1} parent=1 // pred_region
      _
    $region29: #{tpu_custom_call.1} parent=1 // pred_fallthru
      _
    // Predicated region
    $region30: #{tpu_custom_call.1} parent=1 // pred_check
      _
    $region31: #{tpu_custom_call.1} parent=1 // pred_check_branch
      %84 = sbr.rel (0) target = $region33
    $region32: #{tpu_custom_call.1} parent=1 // pred_region
      %s86 = ssub.s32 2048, 2048
      %87 = vsyncadd [#allocation12], %s86
      %s88 = sshll.u32 [#allocation11], 4
      %s89 = int_to_ptr.vmem [resolvable:$true] %s88
      %94 = dma.hbm_to_vmem [thread:$0]  %s7, 2048, %s89, [#allocation12], 64, 64, 4
    $region33: #{tpu_custom_call.1} parent=1 // pred_fallthru
      _
    // Predicated region
    $region34: #{tpu_custom_call.1} parent=1 // pred_check
      _
    $region35: #{tpu_custom_call.1} parent=1 // pred_check_branch
      %96 = sbr.rel (0) target = $region37
    $region36: #{tpu_custom_call.1} parent=1 // pred_region
      _
    $region37: #{tpu_custom_call.1} parent=1 // pred_fallthru
      _
    // Predicated region
    $region38: #{tpu_custom_call.1} parent=1 // pred_check
      _
    $region39: #{tpu_custom_call.1} parent=1 // pred_check_branch
      %98 = sbr.rel (0) target = $region41
    $region40: #{tpu_custom_call.1} parent=1 // pred_region
      %s100 = ssub.s32 2048, 2048
      %101 = vsyncadd [#allocation12], %s100
      %s102 = sshll.u32 [#allocation13], 4
      %s103 = int_to_ptr.vmem [resolvable:$true] %s102
      %108 = dma.hbm_to_vmem [thread:$0]  %s9, 2048, %s103, [#allocation12], 128, 128, 8
    $region41: #{tpu_custom_call.1} parent=1 // pred_fallthru
      _
    // Predicated region
    $region42: #{tpu_custom_call.1} parent=1 // pred_check
      _
    $region43: #{tpu_custom_call.1} parent=1 // pred_check_branch
      %110 = sbr.rel (0) target = $region45
    $region44: #{tpu_custom_call.1} parent=1 // pred_region
      _
    $region45: #{tpu_custom_call.1} parent=1 // pred_fallthru
      _
    // Predicated region
    $region46: #{tpu_custom_call.1} parent=1 // pred_check
      _
    $region47: #{tpu_custom_call.1} parent=1 // pred_check_branch
      %112 = sbr.rel (0) target = $region49
    $region48: #{tpu_custom_call.1} parent=1 // pred_region
      %113 = dma.done [#allocation3], 256
    $region49: #{tpu_custom_call.1} parent=1 // pred_fallthru
      _
    // Predicated region
    $region50: #{tpu_custom_call.1} parent=1 // pred_check
      _
    $region51: #{tpu_custom_call.1} parent=1 // pred_check_branch
      %115 = sbr.rel (0) target = $region53
    $region52: #{tpu_custom_call.1} parent=1 // pred_region
      %116 = dma.done [#allocation6], 16384
    $region53: #{tpu_custom_call.1} parent=1 // pred_fallthru
      _
    // Predicated region
    $region54: #{tpu_custom_call.1} parent=1 // pred_check
      _
    $region55: #{tpu_custom_call.1} parent=1 // pred_check_branch
      %118 = sbr.rel (0) target = $region57
    $region56: #{tpu_custom_call.1} parent=1 // pred_region
      %119 = dma.done [#allocation6], 128
    $region57: #{tpu_custom_call.1} parent=1 // pred_fallthru
      _
    // Predicated region
    $region58: #{tpu_custom_call.1} parent=1 // pred_check
      _
    $region59: #{tpu_custom_call.1} parent=1 // pred_check_branch
      %121 = sbr.rel (0) target = $region61
    $region60: #{tpu_custom_call.1} parent=1 // pred_region
      %122 = dma.done [#allocation9], 32768
    $region61: #{tpu_custom_call.1} parent=1 // pred_fallthru
      _
    // Predicated region
    $region62: #{tpu_custom_call.1} parent=1 // pred_check
      _
    $region63: #{tpu_custom_call.1} parent=1 // pred_check_branch
      %124 = sbr.rel (0) target = $region65
    $region64: #{tpu_custom_call.1} parent=1 // pred_region
      %125 = dma.done [#allocation9], 8192
    $region65: #{tpu_custom_call.1} parent=1 // pred_fallthru
      _
    // Predicated region
    $region66: #{tpu_custom_call.1} parent=1 // pred_check
      _
    $region67: #{tpu_custom_call.1} parent=1 // pred_check_branch
      %127 = sbr.rel (0) target = $region69
    $region68: #{tpu_custom_call.1} parent=1 // pred_region
      %128 = dma.done [#allocation12], 2048
    $region69: #{tpu_custom_call.1} parent=1 // pred_fallthru
      _
    // Predicated region
    $region70: #{tpu_custom_call.1} parent=1 // pred_check
      _
    $region71: #{tpu_custom_call.1} parent=1 // pred_check_branch
      %130 = sbr.rel (0) target = $region73
    $region72: #{tpu_custom_call.1} parent=1 // pred_region
      %131 = dma.done [#allocation12], 2048
    $region73: #{tpu_custom_call.1} parent=1 // pred_fallthru
      _
    %v133 = vld [vmem:[#allocation2] sm:$0xff]
    %v134 = vld [vmem:[#allocation2 + $0x8] sm:$0xff]
    %v135 = vld [vmem:[#allocation5] sm:$0xff]
    %v136 = vld [vmem:[#allocation5 + $0x8] sm:$0xff]
    %v137 = vld [vmem:[#allocation5 + $0x10] sm:$0xff]
    %v138 = vld [vmem:[#allocation5 + $0x18] sm:$0xff]
    %v139 = vld [vmem:[#allocation5 + $0x20] sm:$0xff]
    %v140 = vld [vmem:[#allocation5 + $0x28] sm:$0xff]
    %v141 = vld [vmem:[#allocation5 + $0x30] sm:$0xff]
    %v142 = vld [vmem:[#allocation5 + $0x38] sm:$0xff]
    %v143 = vld [vmem:[#allocation5 + $0x40] sm:$0xff]
    %v144 = vld [vmem:[#allocation5 + $0x48] sm:$0xff]
    %v145 = vld [vmem:[#allocation5 + $0x50] sm:$0xff]
    %v146 = vld [vmem:[#allocation5 + $0x58] sm:$0xff]
    %v147 = vld [vmem:[#allocation5 + $0x60] sm:$0xff]
    %v148 = vld [vmem:[#allocation5 + $0x68] sm:$0xff]
    %v149 = vld [vmem:[#allocation5 + $0x70] sm:$0xff]
    %v150 = vld [vmem:[#allocation5 + $0x78] sm:$0xff]
    %v151 = vld [vmem:[#allocation5 + $0x80] sm:$0xff]
    %v152 = vld [vmem:[#allocation5 + $0x88] sm:$0xff]
    %v153 = vld [vmem:[#allocation5 + $0x90] sm:$0xff]
    %v154 = vld [vmem:[#allocation5 + $0x98] sm:$0xff]
    %v155 = vld [vmem:[#allocation5 + $0xa0] sm:$0xff]
    %v156 = vld [vmem:[#allocation5 + $0xa8] sm:$0xff]
    %v157 = vld [vmem:[#allocation5 + $0xb0] sm:$0xff]
    %v158 = vld [vmem:[#allocation5 + $0xb8] sm:$0xff]
    %v159 = vld [vmem:[#allocation5 + $0xc0] sm:$0xff]
    %v160 = vld [vmem:[#allocation5 + $0xc8] sm:$0xff]
    %v161 = vld [vmem:[#allocation5 + $0xd0] sm:$0xff]
    %v162 = vld [vmem:[#allocation5 + $0xd8] sm:$0xff]
    %v163 = vld [vmem:[#allocation5 + $0xe0] sm:$0xff]
    %v164 = vld [vmem:[#allocation5 + $0xe8] sm:$0xff]
    %v165 = vld [vmem:[#allocation5 + $0xf0] sm:$0xff]
    %v166 = vld [vmem:[#allocation5 + $0xf8] sm:$0xff]
    %v167 = vld [vmem:[#allocation5 + $0x100] sm:$0xff]
    %v168 = vld [vmem:[#allocation5 + $0x108] sm:$0xff]
    %v169 = vld [vmem:[#allocation5 + $0x110] sm:$0xff]
    %v170 = vld [vmem:[#allocation5 + $0x118] sm:$0xff]
    %v171 = vld [vmem:[#allocation5 + $0x120] sm:$0xff]
    %v172 = vld [vmem:[#allocation5 + $0x128] sm:$0xff]
    %v173 = vld [vmem:[#allocation5 + $0x130] sm:$0xff]
    %v174 = vld [vmem:[#allocation5 + $0x138] sm:$0xff]
    %v175 = vld [vmem:[#allocation5 + $0x140] sm:$0xff]
    %v176 = vld [vmem:[#allocation5 + $0x148] sm:$0xff]
    %v177 = vld [vmem:[#allocation5 + $0x150] sm:$0xff]
    %v178 = vld [vmem:[#allocation5 + $0x158] sm:$0xff]
    %v179 = vld [vmem:[#allocation5 + $0x160] sm:$0xff]
    %v180 = vld [vmem:[#allocation5 + $0x168] sm:$0xff]
    %v181 = vld [vmem:[#allocation5 + $0x170] sm:$0xff]
    %v182 = vld [vmem:[#allocation5 + $0x178] sm:$0xff]
    %v183 = vld [vmem:[#allocation5 + $0x180] sm:$0xff]
    %v184 = vld [vmem:[#allocation5 + $0x188] sm:$0xff]
    %v185 = vld [vmem:[#allocation5 + $0x190] sm:$0xff]
    %v186 = vld [vmem:[#allocation5 + $0x198] sm:$0xff]
    %v187 = vld [vmem:[#allocation5 + $0x1a0] sm:$0xff]
    %v188 = vld [vmem:[#allocation5 + $0x1a8] sm:$0xff]
    %v189 = vld [vmem:[#allocation5 + $0x1b0] sm:$0xff]
    %v190 = vld [vmem:[#allocation5 + $0x1b8] sm:$0xff]
    %v191 = vld [vmem:[#allocation5 + $0x1c0] sm:$0xff]
    %v192 = vld [vmem:[#allocation5 + $0x1c8] sm:$0xff]
    %v193 = vld [vmem:[#allocation5 + $0x1d0] sm:$0xff]
    %v194 = vld [vmem:[#allocation5 + $0x1d8] sm:$0xff]
    %v195 = vld [vmem:[#allocation5 + $0x1e0] sm:$0xff]
    %v196 = vld [vmem:[#allocation5 + $0x1e8] sm:$0xff]
    %v197 = vld [vmem:[#allocation5 + $0x1f0] sm:$0xff]
    %v198 = vld [vmem:[#allocation5 + $0x1f8] sm:$0xff]
    %v199 = vld [vmem:[#allocation5 + $0x200] sm:$0xff]
    %v200 = vld [vmem:[#allocation5 + $0x208] sm:$0xff]
    %v201 = vld [vmem:[#allocation5 + $0x210] sm:$0xff]
    %v202 = vld [vmem:[#allocation5 + $0x218] sm:$0xff]
    %v203 = vld [vmem:[#allocation5 + $0x220] sm:$0xff]
    %v204 = vld [vmem:[#allocation5 + $0x228] sm:$0xff]
    %v205 = vld [vmem:[#allocation5 + $0x230] sm:$0xff]
    %v206 = vld [vmem:[#allocation5 + $0x238] sm:$0xff]
    %v207 = vld [vmem:[#allocation5 + $0x240] sm:$0xff]
    %v208 = vld [vmem:[#allocation5 + $0x248] sm:$0xff]
    %v209 = vld [vmem:[#allocation5 + $0x250] sm:$0xff]
    %v210 = vld [vmem:[#allocation5 + $0x258] sm:$0xff]
    %v211 = vld [vmem:[#allocation5 + $0x260] sm:$0xff]
    %v212 = vld [vmem:[#allocation5 + $0x268] sm:$0xff]
    %v213 = vld [vmem:[#allocation5 + $0x270] sm:$0xff]
    %v214 = vld [vmem:[#allocation5 + $0x278] sm:$0xff]
    %v215 = vld [vmem:[#allocation5 + $0x280] sm:$0xff]
    %v216 = vld [vmem:[#allocation5 + $0x288] sm:$0xff]
    %v217 = vld [vmem:[#allocation5 + $0x290] sm:$0xff]
    %v218 = vld [vmem:[#allocation5 + $0x298] sm:$0xff]
    %v219 = vld [vmem:[#allocation5 + $0x2a0] sm:$0xff]
    %v220 = vld [vmem:[#allocation5 + $0x2a8] sm:$0xff]
    %v221 = vld [vmem:[#allocation5 + $0x2b0] sm:$0xff]
    %v222 = vld [vmem:[#allocation5 + $0x2b8] sm:$0xff]
    %v223 = vld [vmem:[#allocation5 + $0x2c0] sm:$0xff]
    %v224 = vld [vmem:[#allocation5 + $0x2c8] sm:$0xff]
    %v225 = vld [vmem:[#allocation5 + $0x2d0] sm:$0xff]
    %v226 = vld [vmem:[#allocation5 + $0x2d8] sm:$0xff]
    %v227 = vld [vmem:[#allocation5 + $0x2e0] sm:$0xff]
    %v228 = vld [vmem:[#allocation5 + $0x2e8] sm:$0xff]
    %v229 = vld [vmem:[#allocation5 + $0x2f0] sm:$0xff]
    %v230 = vld [vmem:[#allocation5 + $0x2f8] sm:$0xff]
    %v231 = vld [vmem:[#allocation5 + $0x300] sm:$0xff]
    %v232 = vld [vmem:[#allocation5 + $0x308] sm:$0xff]
    %v233 = vld [vmem:[#allocation5 + $0x310] sm:$0xff]
    %v234 = vld [vmem:[#allocation5 + $0x318] sm:$0xff]
    %v235 = vld [vmem:[#allocation5 + $0x320] sm:$0xff]
    %v236 = vld [vmem:[#allocation5 + $0x328] sm:$0xff]
    %v237 = vld [vmem:[#allocation5 + $0x330] sm:$0xff]
    %v238 = vld [vmem:[#allocation5 + $0x338] sm:$0xff]
    %v239 = vld [vmem:[#allocation5 + $0x340] sm:$0xff]
    %v240 = vld [vmem:[#allocation5 + $0x348] sm:$0xff]
    %v241 = vld [vmem:[#allocation5 + $0x350] sm:$0xff]
    %v242 = vld [vmem:[#allocation5 + $0x358] sm:$0xff]
    %v243 = vld [vmem:[#allocation5 + $0x360] sm:$0xff]
    %v244 = vld [vmem:[#allocation5 + $0x368] sm:$0xff]
    %v245 = vld [vmem:[#allocation5 + $0x370] sm:$0xff]
    %v246 = vld [vmem:[#allocation5 + $0x378] sm:$0xff]
    %v247 = vld [vmem:[#allocation5 + $0x380] sm:$0xff]
    %v248 = vld [vmem:[#allocation5 + $0x388] sm:$0xff]
    %v249 = vld [vmem:[#allocation5 + $0x390] sm:$0xff]
    %v250 = vld [vmem:[#allocation5 + $0x398] sm:$0xff]
    %v251 = vld [vmem:[#allocation5 + $0x3a0] sm:$0xff]
    %v252 = vld [vmem:[#allocation5 + $0x3a8] sm:$0xff]
    %v253 = vld [vmem:[#allocation5 + $0x3b0] sm:$0xff]
    %v254 = vld [vmem:[#allocation5 + $0x3b8] sm:$0xff]
    %v255 = vld [vmem:[#allocation5 + $0x3c0] sm:$0xff]
    %v256 = vld [vmem:[#allocation5 + $0x3c8] sm:$0xff]
    %v257 = vld [vmem:[#allocation5 + $0x3d0] sm:$0xff]
    %v258 = vld [vmem:[#allocation5 + $0x3d8] sm:$0xff]
    %v259 = vld [vmem:[#allocation5 + $0x3e0] sm:$0xff]
    %v260 = vld [vmem:[#allocation5 + $0x3e8] sm:$0xff]
    %v261 = vld [vmem:[#allocation5 + $0x3f0] sm:$0xff]
    %v262 = vld [vmem:[#allocation5 + $0x3f8] sm:$0xff]
    %v263 = vld [vmem:[#allocation7] sm:$0xff]
    %v265 = vlaneseq
    %v266 = vshrl.u32 %v265, 7
    %v267 = vsub.s32 0, %v266
    %v268 = vrot.slane %v263, %v267
    %v269 = vlaneseq
    %v270 = vshrl.u32 %v269, 7
    %v271 = vsub.s32 1, %v270
    %v272 = vrot.slane %v263, %v271
    %v273 = vlaneseq
    %v274 = vshrl.u32 %v273, 7
    %v275 = vsub.s32 2, %v274
    %v276 = vrot.slane %v263, %v275
    %v277 = vlaneseq
    %v278 = vshrl.u32 %v277, 7
    %v279 = vsub.s32 3, %v278
    %v280 = vrot.slane %v263, %v279
    %v281 = vlaneseq
    %v282 = vshrl.u32 %v281, 7
    %v283 = vsub.s32 4, %v282
    %v284 = vrot.slane %v263, %v283
    %v285 = vlaneseq
    %v286 = vshrl.u32 %v285, 7
    %v287 = vsub.s32 5, %v286
    %v288 = vrot.slane %v263, %v287
    %v289 = vlaneseq
    %v290 = vshrl.u32 %v289, 7
    %v291 = vsub.s32 6, %v290
    %v292 = vrot.slane %v263, %v291
    %v293 = vlaneseq
    %v294 = vshrl.u32 %v293, 7
    %v295 = vsub.s32 7, %v294
    %v296 = vrot.slane %v263, %v295
    %v307 = vunpack.c.l.b16 %v133
    %v308 = vunpack.c.h.b16 %v133
    %v309 = vunpack.c.l.b16 %v134
    %v310 = vunpack.c.h.b16 %v134
    %v311 = vpack.c.b16 %v309, %v307
    %v312 = vpack.c.b16 %v310, %v308
    %v443 = vunpack.c.l.b16 %v135
    %v444 = vunpack.c.h.b16 %v135
    %v445 = vunpack.c.l.b16 %v136
    %v446 = vunpack.c.h.b16 %v136
    %v447 = vunpack.c.l.b16 %v137
    %v448 = vunpack.c.h.b16 %v137
    %v449 = vunpack.c.l.b16 %v138
    %v450 = vunpack.c.h.b16 %v138
    %v451 = vunpack.c.l.b16 %v139
    %v452 = vunpack.c.h.b16 %v139
    %v453 = vunpack.c.l.b16 %v140
    %v454 = vunpack.c.h.b16 %v140
    %v455 = vunpack.c.l.b16 %v141
    %v456 = vunpack.c.h.b16 %v141
    %v457 = vunpack.c.l.b16 %v142
    %v458 = vunpack.c.h.b16 %v142
    %v459 = vunpack.c.l.b16 %v143
    %v460 = vunpack.c.h.b16 %v143
    %v461 = vunpack.c.l.b16 %v144
    %v462 = vunpack.c.h.b16 %v144
    %v463 = vunpack.c.l.b16 %v145
    %v464 = vunpack.c.h.b16 %v145
    %v465 = vunpack.c.l.b16 %v146
    %v466 = vunpack.c.h.b16 %v146
    %v467 = vunpack.c.l.b16 %v147
    %v468 = vunpack.c.h.b16 %v147
    %v469 = vunpack.c.l.b16 %v148
    %v470 = vunpack.c.h.b16 %v148
    %v471 = vunpack.c.l.b16 %v149
    %v472 = vunpack.c.h.b16 %v149
    %v473 = vunpack.c.l.b16 %v150
    %v474 = vunpack.c.h.b16 %v150
    %v475 = vunpack.c.l.b16 %v151
    %v476 = vunpack.c.h.b16 %v151
    %v477 = vunpack.c.l.b16 %v152
    %v478 = vunpack.c.h.b16 %v152
    %v479 = vunpack.c.l.b16 %v153
    %v480 = vunpack.c.h.b16 %v153
    %v481 = vunpack.c.l.b16 %v154
    %v482 = vunpack.c.h.b16 %v154
    %v483 = vunpack.c.l.b16 %v155
    %v484 = vunpack.c.h.b16 %v155
    %v485 = vunpack.c.l.b16 %v156
    %v486 = vunpack.c.h.b16 %v156
    %v487 = vunpack.c.l.b16 %v157
    %v488 = vunpack.c.h.b16 %v157
    %v489 = vunpack.c.l.b16 %v158
    %v490 = vunpack.c.h.b16 %v158
    %v491 = vunpack.c.l.b16 %v159
    %v492 = vunpack.c.h.b16 %v159
    %v493 = vunpack.c.l.b16 %v160
    %v494 = vunpack.c.h.b16 %v160
    %v495 = vunpack.c.l.b16 %v161
    %v496 = vunpack.c.h.b16 %v161
    %v497 = vunpack.c.l.b16 %v162
    %v498 = vunpack.c.h.b16 %v162
    %v499 = vunpack.c.l.b16 %v163
    %v500 = vunpack.c.h.b16 %v163
    %v501 = vunpack.c.l.b16 %v164
    %v502 = vunpack.c.h.b16 %v164
    %v503 = vunpack.c.l.b16 %v165
    %v504 = vunpack.c.h.b16 %v165
    %v505 = vunpack.c.l.b16 %v166
    %v506 = vunpack.c.h.b16 %v166
    %v507 = vunpack.c.l.b16 %v167
    %v508 = vunpack.c.h.b16 %v167
    %v509 = vunpack.c.l.b16 %v168
    %v510 = vunpack.c.h.b16 %v168
    %v511 = vunpack.c.l.b16 %v169
    %v512 = vunpack.c.h.b16 %v169
    %v513 = vunpack.c.l.b16 %v170
    %v514 = vunpack.c.h.b16 %v170
    %v515 = vunpack.c.l.b16 %v171
    %v516 = vunpack.c.h.b16 %v171
    %v517 = vunpack.c.l.b16 %v172
    %v518 = vunpack.c.h.b16 %v172
    %v519 = vunpack.c.l.b16 %v173
    %v520 = vunpack.c.h.b16 %v173
    %v521 = vunpack.c.l.b16 %v174
    %v522 = vunpack.c.h.b16 %v174
    %v523 = vunpack.c.l.b16 %v175
    %v524 = vunpack.c.h.b16 %v175
    %v525 = vunpack.c.l.b16 %v176
    %v526 = vunpack.c.h.b16 %v176
    %v527 = vunpack.c.l.b16 %v177
    %v528 = vunpack.c.h.b16 %v177
    %v529 = vunpack.c.l.b16 %v178
    %v530 = vunpack.c.h.b16 %v178
    %v531 = vunpack.c.l.b16 %v179
    %v532 = vunpack.c.h.b16 %v179
    %v533 = vunpack.c.l.b16 %v180
    %v534 = vunpack.c.h.b16 %v180
    %v535 = vunpack.c.l.b16 %v181
    %v536 = vunpack.c.h.b16 %v181
    %v537 = vunpack.c.l.b16 %v182
    %v538 = vunpack.c.h.b16 %v182
    %v539 = vunpack.c.l.b16 %v183
    %v540 = vunpack.c.h.b16 %v183
    %v541 = vunpack.c.l.b16 %v184
    %v542 = vunpack.c.h.b16 %v184
    %v543 = vunpack.c.l.b16 %v185
    %v544 = vunpack.c.h.b16 %v185
    %v545 = vunpack.c.l.b16 %v186
    %v546 = vunpack.c.h.b16 %v186
    %v547 = vunpack.c.l.b16 %v187
    %v548 = vunpack.c.h.b16 %v187
    %v549 = vunpack.c.l.b16 %v188
    %v550 = vunpack.c.h.b16 %v188
    %v551 = vunpack.c.l.b16 %v189
    %v552 = vunpack.c.h.b16 %v189
    %v553 = vunpack.c.l.b16 %v190
    %v554 = vunpack.c.h.b16 %v190
    %v555 = vunpack.c.l.b16 %v191
    %v556 = vunpack.c.h.b16 %v191
    %v557 = vunpack.c.l.b16 %v192
    %v558 = vunpack.c.h.b16 %v192
    %v559 = vunpack.c.l.b16 %v193
    %v560 = vunpack.c.h.b16 %v193
    %v561 = vunpack.c.l.b16 %v194
    %v562 = vunpack.c.h.b16 %v194
    %v563 = vunpack.c.l.b16 %v195
    %v564 = vunpack.c.h.b16 %v195
    %v565 = vunpack.c.l.b16 %v196
    %v566 = vunpack.c.h.b16 %v196
    %v567 = vunpack.c.l.b16 %v197
    %v568 = vunpack.c.h.b16 %v197
    %v569 = vunpack.c.l.b16 %v198
    %v570 = vunpack.c.h.b16 %v198
    %v571 = vunpack.c.l.b16 %v199
    %v572 = vunpack.c.h.b16 %v199
    %v573 = vunpack.c.l.b16 %v200
    %v574 = vunpack.c.h.b16 %v200
    %v575 = vunpack.c.l.b16 %v201
    %v576 = vunpack.c.h.b16 %v201
    %v577 = vunpack.c.l.b16 %v202
    %v578 = vunpack.c.h.b16 %v202
    %v579 = vunpack.c.l.b16 %v203
    %v580 = vunpack.c.h.b16 %v203
    %v581 = vunpack.c.l.b16 %v204
    %v582 = vunpack.c.h.b16 %v204
    %v583 = vunpack.c.l.b16 %v205
    %v584 = vunpack.c.h.b16 %v205
    %v585 = vunpack.c.l.b16 %v206
    %v586 = vunpack.c.h.b16 %v206
    %v587 = vunpack.c.l.b16 %v207
    %v588 = vunpack.c.h.b16 %v207
    %v589 = vunpack.c.l.b16 %v208
    %v590 = vunpack.c.h.b16 %v208
    %v591 = vunpack.c.l.b16 %v209
    %v592 = vunpack.c.h.b16 %v209
    %v593 = vunpack.c.l.b16 %v210
    %v594 = vunpack.c.h.b16 %v210
    %v595 = vunpack.c.l.b16 %v211
    %v596 = vunpack.c.h.b16 %v211
    %v597 = vunpack.c.l.b16 %v212
    %v598 = vunpack.c.h.b16 %v212
    %v599 = vunpack.c.l.b16 %v213
    %v600 = vunpack.c.h.b16 %v213
    %v601 = vunpack.c.l.b16 %v214
    %v602 = vunpack.c.h.b16 %v214
    %v603 = vunpack.c.l.b16 %v215
    %v604 = vunpack.c.h.b16 %v215
    %v605 = vunpack.c.l.b16 %v216
    %v606 = vunpack.c.h.b16 %v216
    %v607 = vunpack.c.l.b16 %v217
    %v608 = vunpack.c.h.b16 %v217
    %v609 = vunpack.c.l.b16 %v218
    %v610 = vunpack.c.h.b16 %v218
    %v611 = vunpack.c.l.b16 %v219
    %v612 = vunpack.c.h.b16 %v219
    %v613 = vunpack.c.l.b16 %v220
    %v614 = vunpack.c.h.b16 %v220
    %v615 = vunpack.c.l.b16 %v221
    %v616 = vunpack.c.h.b16 %v221
    %v617 = vunpack.c.l.b16 %v222
    %v618 = vunpack.c.h.b16 %v222
    %v619 = vunpack.c.l.b16 %v223
    %v620 = vunpack.c.h.b16 %v223
    %v621 = vunpack.c.l.b16 %v224
    %v622 = vunpack.c.h.b16 %v224
    %v623 = vunpack.c.l.b16 %v225
    %v624 = vunpack.c.h.b16 %v225
    %v625 = vunpack.c.l.b16 %v226
    %v626 = vunpack.c.h.b16 %v226
    %v627 = vunpack.c.l.b16 %v227
    %v628 = vunpack.c.h.b16 %v227
    %v629 = vunpack.c.l.b16 %v228
    %v630 = vunpack.c.h.b16 %v228
    %v631 = vunpack.c.l.b16 %v229
    %v632 = vunpack.c.h.b16 %v229
    %v633 = vunpack.c.l.b16 %v230
    %v634 = vunpack.c.h.b16 %v230
    %v635 = vunpack.c.l.b16 %v231
    %v636 = vunpack.c.h.b16 %v231
    %v637 = vunpack.c.l.b16 %v232
    %v638 = vunpack.c.h.b16 %v232
    %v639 = vunpack.c.l.b16 %v233
    %v640 = vunpack.c.h.b16 %v233
    %v641 = vunpack.c.l.b16 %v234
    %v642 = vunpack.c.h.b16 %v234
    %v643 = vunpack.c.l.b16 %v235
    %v644 = vunpack.c.h.b16 %v235
    %v645 = vunpack.c.l.b16 %v236
    %v646 = vunpack.c.h.b16 %v236
    %v647 = vunpack.c.l.b16 %v237
    %v648 = vunpack.c.h.b16 %v237
    %v649 = vunpack.c.l.b16 %v238
    %v650 = vunpack.c.h.b16 %v238
    %v651 = vunpack.c.l.b16 %v239
    %v652 = vunpack.c.h.b16 %v239
    %v653 = vunpack.c.l.b16 %v240
    %v654 = vunpack.c.h.b16 %v240
    %v655 = vunpack.c.l.b16 %v241
    %v656 = vunpack.c.h.b16 %v241
    %v657 = vunpack.c.l.b16 %v242
    %v658 = vunpack.c.h.b16 %v242
    %v659 = vunpack.c.l.b16 %v243
    %v660 = vunpack.c.h.b16 %v243
    %v661 = vunpack.c.l.b16 %v244
    %v662 = vunpack.c.h.b16 %v244
    %v663 = vunpack.c.l.b16 %v245
    %v664 = vunpack.c.h.b16 %v245
    %v665 = vunpack.c.l.b16 %v246
    %v666 = vunpack.c.h.b16 %v246
    %v667 = vunpack.c.l.b16 %v247
    %v668 = vunpack.c.h.b16 %v247
    %v669 = vunpack.c.l.b16 %v248
    %v670 = vunpack.c.h.b16 %v248
    %v671 = vunpack.c.l.b16 %v249
    %v672 = vunpack.c.h.b16 %v249
    %v673 = vunpack.c.l.b16 %v250
    %v674 = vunpack.c.h.b16 %v250
    %v675 = vunpack.c.l.b16 %v251
    %v676 = vunpack.c.h.b16 %v251
    %v677 = vunpack.c.l.b16 %v252
    %v678 = vunpack.c.h.b16 %v252
    %v679 = vunpack.c.l.b16 %v253
    %v680 = vunpack.c.h.b16 %v253
    %v681 = vunpack.c.l.b16 %v254
    %v682 = vunpack.c.h.b16 %v254
    %v683 = vunpack.c.l.b16 %v255
    %v684 = vunpack.c.h.b16 %v255
    %v685 = vunpack.c.l.b16 %v256
    %v686 = vunpack.c.h.b16 %v256
    %v687 = vunpack.c.l.b16 %v257
    %v688 = vunpack.c.h.b16 %v257
    %v689 = vunpack.c.l.b16 %v258
    %v690 = vunpack.c.h.b16 %v258
    %v691 = vunpack.c.l.b16 %v259
    %v692 = vunpack.c.h.b16 %v259
    %v693 = vunpack.c.l.b16 %v260
    %v694 = vunpack.c.h.b16 %v260
    %v695 = vunpack.c.l.b16 %v261
    %v696 = vunpack.c.h.b16 %v261
    %v697 = vunpack.c.l.b16 %v262
    %v698 = vunpack.c.h.b16 %v262
    %v699 = vpack.c.b16 %v451, %v443
    %v700 = vpack.c.b16 %v452, %v444
    %v701 = vpack.c.b16 %v453, %v445
    %v702 = vpack.c.b16 %v454, %v446
    %v703 = vpack.c.b16 %v455, %v447
    %v704 = vpack.c.b16 %v456, %v448
    %v705 = vpack.c.b16 %v457, %v449
    %v706 = vpack.c.b16 %v458, %v450
    %v707 = vpack.c.b16 %v467, %v459
    %v708 = vpack.c.b16 %v468, %v460
    %v709 = vpack.c.b16 %v469, %v461
    %v710 = vpack.c.b16 %v470, %v462
    %v711 = vpack.c.b16 %v471, %v463
    %v712 = vpack.c.b16 %v472, %v464
    %v713 = vpack.c.b16 %v473, %v465
    %v714 = vpack.c.b16 %v474, %v466
    %v715 = vpack.c.b16 %v483, %v475
    %v716 = vpack.c.b16 %v484, %v476
    %v717 = vpack.c.b16 %v485, %v477
    %v718 = vpack.c.b16 %v486, %v478
    %v719 = vpack.c.b16 %v487, %v479
    %v720 = vpack.c.b16 %v488, %v480
    %v721 = vpack.c.b16 %v489, %v481
    %v722 = vpack.c.b16 %v490, %v482
    %v723 = vpack.c.b16 %v499, %v491
    %v724 = vpack.c.b16 %v500, %v492
    %v725 = vpack.c.b16 %v501, %v493
    %v726 = vpack.c.b16 %v502, %v494
    %v727 = vpack.c.b16 %v503, %v495
    %v728 = vpack.c.b16 %v504, %v496
    %v729 = vpack.c.b16 %v505, %v497
    %v730 = vpack.c.b16 %v506, %v498
    %v731 = vpack.c.b16 %v515, %v507
    %v732 = vpack.c.b16 %v516, %v508
    %v733 = vpack.c.b16 %v517, %v509
    %v734 = vpack.c.b16 %v518, %v510
    %v735 = vpack.c.b16 %v519, %v511
    %v736 = vpack.c.b16 %v520, %v512
    %v737 = vpack.c.b16 %v521, %v513
    %v738 = vpack.c.b16 %v522, %v514
    %v739 = vpack.c.b16 %v531, %v523
    %v740 = vpack.c.b16 %v532, %v524
    %v741 = vpack.c.b16 %v533, %v525
    %v742 = vpack.c.b16 %v534, %v526
    %v743 = vpack.c.b16 %v535, %v527
    %v744 = vpack.c.b16 %v536, %v528
    %v745 = vpack.c.b16 %v537, %v529
    %v746 = vpack.c.b16 %v538, %v530
    %v747 = vpack.c.b16 %v547, %v539
    %v748 = vpack.c.b16 %v548, %v540
    %v749 = vpack.c.b16 %v549, %v541
    %v750 = vpack.c.b16 %v550, %v542
    %v751 = vpack.c.b16 %v551, %v543
    %v752 = vpack.c.b16 %v552, %v544
    %v753 = vpack.c.b16 %v553, %v545
    %v754 = vpack.c.b16 %v554, %v546
    %v755 = vpack.c.b16 %v563, %v555
    %v756 = vpack.c.b16 %v564, %v556
    %v757 = vpack.c.b16 %v565, %v557
    %v758 = vpack.c.b16 %v566, %v558
    %v759 = vpack.c.b16 %v567, %v559
    %v760 = vpack.c.b16 %v568, %v560
    %v761 = vpack.c.b16 %v569, %v561
    %v762 = vpack.c.b16 %v570, %v562
    %v763 = vpack.c.b16 %v579, %v571
    %v764 = vpack.c.b16 %v580, %v572
    %v765 = vpack.c.b16 %v581, %v573
    %v766 = vpack.c.b16 %v582, %v574
    %v767 = vpack.c.b16 %v583, %v575
    %v768 = vpack.c.b16 %v584, %v576
    %v769 = vpack.c.b16 %v585, %v577
    %v770 = vpack.c.b16 %v586, %v578
    %v771 = vpack.c.b16 %v595, %v587
    %v772 = vpack.c.b16 %v596, %v588
    %v773 = vpack.c.b16 %v597, %v589
    %v774 = vpack.c.b16 %v598, %v590
    %v775 = vpack.c.b16 %v599, %v591
    %v776 = vpack.c.b16 %v600, %v592
    %v777 = vpack.c.b16 %v601, %v593
    %v778 = vpack.c.b16 %v602, %v594
    %v779 = vpack.c.b16 %v611, %v603
    %v780 = vpack.c.b16 %v612, %v604
    %v781 = vpack.c.b16 %v613, %v605
    %v782 = vpack.c.b16 %v614, %v606
    %v783 = vpack.c.b16 %v615, %v607
    %v784 = vpack.c.b16 %v616, %v608
    %v785 = vpack.c.b16 %v617, %v609
    %v786 = vpack.c.b16 %v618, %v610
    %v787 = vpack.c.b16 %v627, %v619
    %v788 = vpack.c.b16 %v628, %v620
    %v789 = vpack.c.b16 %v629, %v621
    %v790 = vpack.c.b16 %v630, %v622
    %v791 = vpack.c.b16 %v631, %v623
    %v792 = vpack.c.b16 %v632, %v624
    %v793 = vpack.c.b16 %v633, %v625
    %v794 = vpack.c.b16 %v634, %v626
    %v795 = vpack.c.b16 %v643, %v635
    %v796 = vpack.c.b16 %v644, %v636
    %v797 = vpack.c.b16 %v645, %v637
    %v798 = vpack.c.b16 %v646, %v638
    %v799 = vpack.c.b16 %v647, %v639
    %v800 = vpack.c.b16 %v648, %v640
    %v801 = vpack.c.b16 %v649, %v641
    %v802 = vpack.c.b16 %v650, %v642
    %v803 = vpack.c.b16 %v659, %v651
    %v804 = vpack.c.b16 %v660, %v652
    %v805 = vpack.c.b16 %v661, %v653
    %v806 = vpack.c.b16 %v662, %v654
    %v807 = vpack.c.b16 %v663, %v655
    %v808 = vpack.c.b16 %v664, %v656
    %v809 = vpack.c.b16 %v665, %v657
    %v810 = vpack.c.b16 %v666, %v658
    %v811 = vpack.c.b16 %v675, %v667
    %v812 = vpack.c.b16 %v676, %v668
    %v813 = vpack.c.b16 %v677, %v669
    %v814 = vpack.c.b16 %v678, %v670
    %v815 = vpack.c.b16 %v679, %v671
    %v816 = vpack.c.b16 %v680, %v672
    %v817 = vpack.c.b16 %v681, %v673
    %v818 = vpack.c.b16 %v682, %v674
    %v819 = vpack.c.b16 %v691, %v683
    %v820 = vpack.c.b16 %v692, %v684
    %v821 = vpack.c.b16 %v693, %v685
    %v822 = vpack.c.b16 %v694, %v686
    %v823 = vpack.c.b16 %v695, %v687
    %v824 = vpack.c.b16 %v696, %v688
    %v825 = vpack.c.b16 %v697, %v689
    %v826 = vpack.c.b16 %v698, %v690
    %955 = vmatprep.subr.bf16.mxu0 %v700
    %956 = vmatpush1.bf16.msra.mxu0 %v699
    %957 = vmatprep.subr.bf16.mxu0 %v708
    %958 = vmatpush1.bf16.msra.mxu0 %v707
    %959 = vmatprep.subr.bf16.mxu0 %v716
    %960 = vmatpush1.bf16.msra.mxu0 %v715
    %961 = vmatprep.subr.bf16.mxu0 %v724
    %962 = vmatpush1.bf16.msra.mxu0 %v723
    %963 = vmatprep.subr.bf16.mxu0 %v732
    %964 = vmatpush1.bf16.msra.mxu0 %v731
    %965 = vmatprep.subr.bf16.mxu0 %v740
    %966 = vmatpush1.bf16.msra.mxu0 %v739
    %967 = vmatprep.subr.bf16.mxu0 %v748
    %968 = vmatpush1.bf16.msra.mxu0 %v747
    %969 = vmatprep.subr.bf16.mxu0 %v756
    %970 = vmatpush1.bf16.msra.mxu0 %v755
    %971 = vmatprep.subr.bf16.mxu0 %v764
    %972 = vmatpush1.bf16.msra.mxu0 %v763
    %973 = vmatprep.subr.bf16.mxu0 %v772
    %974 = vmatpush1.bf16.msra.mxu0 %v771
    %975 = vmatprep.subr.bf16.mxu0 %v780
    %976 = vmatpush1.bf16.msra.mxu0 %v779
    %977 = vmatprep.subr.bf16.mxu0 %v788
    %978 = vmatpush1.bf16.msra.mxu0 %v787
    %979 = vmatprep.subr.bf16.mxu0 %v796
    %980 = vmatpush1.bf16.msra.mxu0 %v795
    %981 = vmatprep.subr.bf16.mxu0 %v804
    %982 = vmatpush1.bf16.msra.mxu0 %v803
    %983 = vmatprep.subr.bf16.mxu0 %v812
    %984 = vmatpush1.bf16.msra.mxu0 %v811
    %985 = vmatprep.subr.bf16.mxu0 %v820
    %986 = vmatpush1.bf16.msra.mxu0 %v819
    %987 = vmatprep.mubr.bf16.mxu0 %v312
    %988 = vmatmul.mubr.bf16.gmra.mrb[0].mxu0 %v311
    %v989 = vpop.f32.mrb[0].mxu0
    %v990 = vadd.f32 %v268, %v989
    %v991 = vpop.f32.mrb[0].mxu0
    %v992 = vadd.f32 %v272, %v991
    %v993 = vpop.f32.mrb[0].mxu0
    %v994 = vadd.f32 %v268, %v993
    %v995 = vpop.f32.mrb[0].mxu0
    %v996 = vadd.f32 %v272, %v995
    %997 = vdwg.mxu0
    %998 = vmatprep.subr.bf16.mxu0 %v702
    %999 = vmatpush1.bf16.msra.mxu0 %v701
    %1000 = vmatprep.subr.bf16.mxu0 %v710
    %1001 = vmatpush1.bf16.msra.mxu0 %v709
    %1002 = vmatprep.subr.bf16.mxu0 %v718
    %1003 = vmatpush1.bf16.msra.mxu0 %v717
    %1004 = vmatprep.subr.bf16.mxu0 %v726
    %1005 = vmatpush1.bf16.msra.mxu0 %v725
    %1006 = vmatprep.subr.bf16.mxu0 %v734
    %1007 = vmatpush1.bf16.msra.mxu0 %v733
    %1008 = vmatprep.subr.bf16.mxu0 %v742
    %1009 = vmatpush1.bf16.msra.mxu0 %v741
    %1010 = vmatprep.subr.bf16.mxu0 %v750
    %1011 = vmatpush1.bf16.msra.mxu0 %v749
    %1012 = vmatprep.subr.bf16.mxu0 %v758
    %1013 = vmatpush1.bf16.msra.mxu0 %v757
    %1014 = vmatprep.subr.bf16.mxu0 %v766
    %1015 = vmatpush1.bf16.msra.mxu0 %v765
    %1016 = vmatprep.subr.bf16.mxu0 %v774
    %1017 = vmatpush1.bf16.msra.mxu0 %v773
    %1018 = vmatprep.subr.bf16.mxu0 %v782
    %1019 = vmatpush1.bf16.msra.mxu0 %v781
    %1020 = vmatprep.subr.bf16.mxu0 %v790
    %1021 = vmatpush1.bf16.msra.mxu0 %v789
    %1022 = vmatprep.subr.bf16.mxu0 %v798
    %1023 = vmatpush1.bf16.msra.mxu0 %v797
    %1024 = vmatprep.subr.bf16.mxu0 %v806
    %1025 = vmatpush1.bf16.msra.mxu0 %v805
    %1026 = vmatprep.subr.bf16.mxu0 %v814
    %1027 = vmatpush1.bf16.msra.mxu0 %v813
    %1028 = vmatprep.subr.bf16.mxu0 %v822
    %1029 = vmatpush1.bf16.msra.mxu0 %v821
    %1030 = vmatprep.mubr.bf16.mxu0 %v312
    %1031 = vmatmul.mubr.bf16.gmra.mrb[0].mxu0 %v311
    %v1032 = vpop.f32.mrb[0].mxu0
    %v1033 = vadd.f32 %v276, %v1032
    %v1034 = vpop.f32.mrb[0].mxu0
    %v1035 = vadd.f32 %v280, %v1034
    %v1036 = vpop.f32.mrb[0].mxu0
    %v1037 = vadd.f32 %v276, %v1036
    %v1038 = vpop.f32.mrb[0].mxu0
    %v1039 = vadd.f32 %v280, %v1038
    %1040 = vdwg.mxu0
    %1041 = vmatprep.subr.bf16.mxu0 %v704
    %1042 = vmatpush1.bf16.msra.mxu0 %v703
    %1043 = vmatprep.subr.bf16.mxu0 %v712
    %1044 = vmatpush1.bf16.msra.mxu0 %v711
    %1045 = vmatprep.subr.bf16.mxu0 %v720
    %1046 = vmatpush1.bf16.msra.mxu0 %v719
    %1047 = vmatprep.subr.bf16.mxu0 %v728
    %1048 = vmatpush1.bf16.msra.mxu0 %v727
    %1049 = vmatprep.subr.bf16.mxu0 %v736
    %1050 = vmatpush1.bf16.msra.mxu0 %v735
    %1051 = vmatprep.subr.bf16.mxu0 %v744
    %1052 = vmatpush1.bf16.msra.mxu0 %v743
    %1053 = vmatprep.subr.bf16.mxu0 %v752
    %1054 = vmatpush1.bf16.msra.mxu0 %v751
    %1055 = vmatprep.subr.bf16.mxu0 %v760
    %1056 = vmatpush1.bf16.msra.mxu0 %v759
    %1057 = vmatprep.subr.bf16.mxu0 %v768
    %1058 = vmatpush1.bf16.msra.mxu0 %v767
    %1059 = vmatprep.subr.bf16.mxu0 %v776
    %1060 = vmatpush1.bf16.msra.mxu0 %v775
    %1061 = vmatprep.subr.bf16.mxu0 %v784
    %1062 = vmatpush1.bf16.msra.mxu0 %v783
    %1063 = vmatprep.subr.bf16.mxu0 %v792
    %1064 = vmatpush1.bf16.msra.mxu0 %v791
    %1065 = vmatprep.subr.bf16.mxu0 %v800
    %1066 = vmatpush1.bf16.msra.mxu0 %v799
    %1067 = vmatprep.subr.bf16.mxu0 %v808
    %1068 = vmatpush1.bf16.msra.mxu0 %v807
    %1069 = vmatprep.subr.bf16.mxu0 %v816
    %1070 = vmatpush1.bf16.msra.mxu0 %v815
    %1071 = vmatprep.subr.bf16.mxu0 %v824
    %1072 = vmatpush1.bf16.msra.mxu0 %v823
    %1073 = vmatprep.mubr.bf16.mxu0 %v312
    %1074 = vmatmul.mubr.bf16.gmra.mrb[0].mxu0 %v311
    %v1075 = vpop.f32.mrb[0].mxu0
    %v1076 = vadd.f32 %v284, %v1075
    %v1077 = vpop.f32.mrb[0].mxu0
    %v1078 = vadd.f32 %v288, %v1077
    %v1079 = vpop.f32.mrb[0].mxu0
    %v1080 = vadd.f32 %v284, %v1079
    %v1081 = vpop.f32.mrb[0].mxu0
    %v1082 = vadd.f32 %v288, %v1081
    %1083 = vdwg.mxu0
    %1084 = vmatprep.subr.bf16.mxu0 %v706
    %1085 = vmatpush1.bf16.msra.mxu0 %v705
    %1086 = vmatprep.subr.bf16.mxu0 %v714
    %1087 = vmatpush1.bf16.msra.mxu0 %v713
    %1088 = vmatprep.subr.bf16.mxu0 %v722
    %1089 = vmatpush1.bf16.msra.mxu0 %v721
    %1090 = vmatprep.subr.bf16.mxu0 %v730
    %1091 = vmatpush1.bf16.msra.mxu0 %v729
    %1092 = vmatprep.subr.bf16.mxu0 %v738
    %1093 = vmatpush1.bf16.msra.mxu0 %v737
    %1094 = vmatprep.subr.bf16.mxu0 %v746
    %1095 = vmatpush1.bf16.msra.mxu0 %v745
    %1096 = vmatprep.subr.bf16.mxu0 %v754
    %1097 = vmatpush1.bf16.msra.mxu0 %v753
    %1098 = vmatprep.subr.bf16.mxu0 %v762
    %1099 = vmatpush1.bf16.msra.mxu0 %v761
    %1100 = vmatprep.subr.bf16.mxu0 %v770
    %1101 = vmatpush1.bf16.msra.mxu0 %v769
    %1102 = vmatprep.subr.bf16.mxu0 %v778
    %1103 = vmatpush1.bf16.msra.mxu0 %v777
    %1104 = vmatprep.subr.bf16.mxu0 %v786
    %1105 = vmatpush1.bf16.msra.mxu0 %v785
    %1106 = vmatprep.subr.bf16.mxu0 %v794
    %1107 = vmatpush1.bf16.msra.mxu0 %v793
    %1108 = vmatprep.subr.bf16.mxu0 %v802
    %1109 = vmatpush1.bf16.msra.mxu0 %v801
    %1110 = vmatprep.subr.bf16.mxu0 %v810
    %1111 = vmatpush1.bf16.msra.mxu0 %v809
    %1112 = vmatprep.subr.bf16.mxu0 %v818
    %1113 = vmatpush1.bf16.msra.mxu0 %v817
    %1114 = vmatprep.subr.bf16.mxu0 %v826
    %1115 = vmatpush1.bf16.msra.mxu0 %v825
    %1116 = vmatprep.mubr.bf16.mxu0 %v312
    %1117 = vmatmul.mubr.bf16.gmra.mrb[0].mxu0 %v311
    %v1118 = vpop.f32.mrb[0].mxu0
    %v1119 = vadd.f32 %v292, %v1118
    %v1120 = vpop.f32.mrb[0].mxu0
    %v1121 = vadd.f32 %v296, %v1120
    %v1122 = vpop.f32.mrb[0].mxu0
    %v1123 = vadd.f32 %v292, %v1122
    %v1124 = vpop.f32.mrb[0].mxu0
    %v1125 = vadd.f32 %v296, %v1124
    %1126 = vdwg.mxu0
    %v1127 = vmul.f32 %v990, 0.01
    %v1128 = vmul.f32 %v992, 0.01
    %v1129 = vmul.f32 %v1033, 0.01
    %v1130 = vmul.f32 %v1035, 0.01
    %v1131 = vmul.f32 %v1076, 0.01
    %v1132 = vmul.f32 %v1078, 0.01
    %v1133 = vmul.f32 %v1119, 0.01
    %v1134 = vmul.f32 %v1121, 0.01
    %v1135 = vmul.f32 %v994, 0.01
    %v1136 = vmul.f32 %v996, 0.01
    %v1137 = vmul.f32 %v1037, 0.01
    %v1138 = vmul.f32 %v1039, 0.01
    %v1139 = vmul.f32 %v1080, 0.01
    %v1140 = vmul.f32 %v1082, 0.01
    %v1141 = vmul.f32 %v1123, 0.01
    %v1142 = vmul.f32 %v1125, 0.01
    %v1143 = vmax.f32 %v990, %v1127
    %v1144 = vmax.f32 %v992, %v1128
    %v1145 = vmax.f32 %v1033, %v1129
    %v1146 = vmax.f32 %v1035, %v1130
    %v1147 = vmax.f32 %v1076, %v1131
    %v1148 = vmax.f32 %v1078, %v1132
    %v1149 = vmax.f32 %v1119, %v1133
    %v1150 = vmax.f32 %v1121, %v1134
    %v1151 = vmax.f32 %v994, %v1135
    %v1152 = vmax.f32 %v996, %v1136
    %v1153 = vmax.f32 %v1037, %v1137
    %v1154 = vmax.f32 %v1039, %v1138
    %v1155 = vmax.f32 %v1080, %v1139
    %v1156 = vmax.f32 %v1082, %v1140
    %v1157 = vmax.f32 %v1123, %v1141
    %v1158 = vmax.f32 %v1125, %v1142
    %v1159 = vpack.c.bf16 %v1151, %v1143
    %v1160 = vpack.c.bf16 %v1152, %v1144
    %v1161 = vpack.c.bf16 %v1153, %v1145
    %v1162 = vpack.c.bf16 %v1154, %v1146
    %v1163 = vpack.c.bf16 %v1155, %v1147
    %v1164 = vpack.c.bf16 %v1156, %v1148
    %v1165 = vpack.c.bf16 %v1157, %v1149
    %v1166 = vpack.c.bf16 %v1158, %v1150
    %v1167 = vld [vmem:[#allocation8] sm:$0xff]
    %v1168 = vld [vmem:[#allocation8 + $0x8] sm:$0xff]
    %v1169 = vld [vmem:[#allocation8 + $0x10] sm:$0xff]
    %v1170 = vld [vmem:[#allocation8 + $0x18] sm:$0xff]
    %v1171 = vld [vmem:[#allocation8 + $0x20] sm:$0xff]
    %v1172 = vld [vmem:[#allocation8 + $0x28] sm:$0xff]
    %v1173 = vld [vmem:[#allocation8 + $0x30] sm:$0xff]
    %v1174 = vld [vmem:[#allocation8 + $0x38] sm:$0xff]
    %v1175 = vld [vmem:[#allocation8 + $0x40] sm:$0xff]
    %v1176 = vld [vmem:[#allocation8 + $0x48] sm:$0xff]
    %v1177 = vld [vmem:[#allocation8 + $0x50] sm:$0xff]
    %v1178 = vld [vmem:[#allocation8 + $0x58] sm:$0xff]
    %v1179 = vld [vmem:[#allocation8 + $0x60] sm:$0xff]
    %v1180 = vld [vmem:[#allocation8 + $0x68] sm:$0xff]
    %v1181 = vld [vmem:[#allocation8 + $0x70] sm:$0xff]
    %v1182 = vld [vmem:[#allocation8 + $0x78] sm:$0xff]
    %v1183 = vld [vmem:[#allocation8 + $0x80] sm:$0xff]
    %v1184 = vld [vmem:[#allocation8 + $0x88] sm:$0xff]
    %v1185 = vld [vmem:[#allocation8 + $0x90] sm:$0xff]
    %v1186 = vld [vmem:[#allocation8 + $0x98] sm:$0xff]
    %v1187 = vld [vmem:[#allocation8 + $0xa0] sm:$0xff]
    %v1188 = vld [vmem:[#allocation8 + $0xa8] sm:$0xff]
    %v1189 = vld [vmem:[#allocation8 + $0xb0] sm:$0xff]
    %v1190 = vld [vmem:[#allocation8 + $0xb8] sm:$0xff]
    %v1191 = vld [vmem:[#allocation8 + $0xc0] sm:$0xff]
    %v1192 = vld [vmem:[#allocation8 + $0xc8] sm:$0xff]
    %v1193 = vld [vmem:[#allocation8 + $0xd0] sm:$0xff]
    %v1194 = vld [vmem:[#allocation8 + $0xd8] sm:$0xff]
    %v1195 = vld [vmem:[#allocation8 + $0xe0] sm:$0xff]
    %v1196 = vld [vmem:[#allocation8 + $0xe8] sm:$0xff]
    %v1197 = vld [vmem:[#allocation8 + $0xf0] sm:$0xff]
    %v1198 = vld [vmem:[#allocation8 + $0xf8] sm:$0xff]
    %v1199 = vld [vmem:[#allocation8 + $0x100] sm:$0xff]
    %v1200 = vld [vmem:[#allocation8 + $0x108] sm:$0xff]
    %v1201 = vld [vmem:[#allocation8 + $0x110] sm:$0xff]
    %v1202 = vld [vmem:[#allocation8 + $0x118] sm:$0xff]
    %v1203 = vld [vmem:[#allocation8 + $0x120] sm:$0xff]
    %v1204 = vld [vmem:[#allocation8 + $0x128] sm:$0xff]
    %v1205 = vld [vmem:[#allocation8 + $0x130] sm:$0xff]
    %v1206 = vld [vmem:[#allocation8 + $0x138] sm:$0xff]
    %v1207 = vld [vmem:[#allocation8 + $0x140] sm:$0xff]
    %v1208 = vld [vmem:[#allocation8 + $0x148] sm:$0xff]
    %v1209 = vld [vmem:[#allocation8 + $0x150] sm:$0xff]
    %v1210 = vld [vmem:[#allocation8 + $0x158] sm:$0xff]
    %v1211 = vld [vmem:[#allocation8 + $0x160] sm:$0xff]
    %v1212 = vld [vmem:[#allocation8 + $0x168] sm:$0xff]
    %v1213 = vld [vmem:[#allocation8 + $0x170] sm:$0xff]
    %v1214 = vld [vmem:[#allocation8 + $0x178] sm:$0xff]
    %v1215 = vld [vmem:[#allocation8 + $0x180] sm:$0xff]
    %v1216 = vld [vmem:[#allocation8 + $0x188] sm:$0xff]
    %v1217 = vld [vmem:[#allocation8 + $0x190] sm:$0xff]
    %v1218 = vld [vmem:[#allocation8 + $0x198] sm:$0xff]
    %v1219 = vld [vmem:[#allocation8 + $0x1a0] sm:$0xff]
    %v1220 = vld [vmem:[#allocation8 + $0x1a8] sm:$0xff]
    %v1221 = vld [vmem:[#allocation8 + $0x1b0] sm:$0xff]
    %v1222 = vld [vmem:[#allocation8 + $0x1b8] sm:$0xff]
    %v1223 = vld [vmem:[#allocation8 + $0x1c0] sm:$0xff]
    %v1224 = vld [vmem:[#allocation8 + $0x1c8] sm:$0xff]
    %v1225 = vld [vmem:[#allocation8 + $0x1d0] sm:$0xff]
    %v1226 = vld [vmem:[#allocation8 + $0x1d8] sm:$0xff]
    %v1227 = vld [vmem:[#allocation8 + $0x1e0] sm:$0xff]
    %v1228 = vld [vmem:[#allocation8 + $0x1e8] sm:$0xff]
    %v1229 = vld [vmem:[#allocation8 + $0x1f0] sm:$0xff]
    %v1230 = vld [vmem:[#allocation8 + $0x1f8] sm:$0xff]
    %v1231 = vld [vmem:[#allocation8 + $0x200] sm:$0xff]
    %v1232 = vld [vmem:[#allocation8 + $0x208] sm:$0xff]
    %v1233 = vld [vmem:[#allocation8 + $0x210] sm:$0xff]
    %v1234 = vld [vmem:[#allocation8 + $0x218] sm:$0xff]
    %v1235 = vld [vmem:[#allocation8 + $0x220] sm:$0xff]
    %v1236 = vld [vmem:[#allocation8 + $0x228] sm:$0xff]
    %v1237 = vld [vmem:[#allocation8 + $0x230] sm:$0xff]
    %v1238 = vld [vmem:[#allocation8 + $0x238] sm:$0xff]
    %v1239 = vld [vmem:[#allocation8 + $0x240] sm:$0xff]
    %v1240 = vld [vmem:[#allocation8 + $0x248] sm:$0xff]
    %v1241 = vld [vmem:[#allocation8 + $0x250] sm:$0xff]
    %v1242 = vld [vmem:[#allocation8 + $0x258] sm:$0xff]
    %v1243 = vld [vmem:[#allocation8 + $0x260] sm:$0xff]
    %v1244 = vld [vmem:[#allocation8 + $0x268] sm:$0xff]
    %v1245 = vld [vmem:[#allocation8 + $0x270] sm:$0xff]
    %v1246 = vld [vmem:[#allocation8 + $0x278] sm:$0xff]
    %v1247 = vld [vmem:[#allocation8 + $0x280] sm:$0xff]
    %v1248 = vld [vmem:[#allocation8 + $0x288] sm:$0xff]
    %v1249 = vld [vmem:[#allocation8 + $0x290] sm:$0xff]
    %v1250 = vld [vmem:[#allocation8 + $0x298] sm:$0xff]
    %v1251 = vld [vmem:[#allocation8 + $0x2a0] sm:$0xff]
    %v1252 = vld [vmem:[#allocation8 + $0x2a8] sm:$0xff]
    %v1253 = vld [vmem:[#allocation8 + $0x2b0] sm:$0xff]
    %v1254 = vld [vmem:[#allocation8 + $0x2b8] sm:$0xff]
    %v1255 = vld [vmem:[#allocation8 + $0x2c0] sm:$0xff]
    %v1256 = vld [vmem:[#allocation8 + $0x2c8] sm:$0xff]
    %v1257 = vld [vmem:[#allocation8 + $0x2d0] sm:$0xff]
    %v1258 = vld [vmem:[#allocation8 + $0x2d8] sm:$0xff]
    %v1259 = vld [vmem:[#allocation8 + $0x2e0] sm:$0xff]
    %v1260 = vld [vmem:[#allocation8 + $0x2e8] sm:$0xff]
    %v1261 = vld [vmem:[#allocation8 + $0x2f0] sm:$0xff]
    %v1262 = vld [vmem:[#allocation8 + $0x2f8] sm:$0xff]
    %v1263 = vld [vmem:[#allocation8 + $0x300] sm:$0xff]
    %v1264 = vld [vmem:[#allocation8 + $0x308] sm:$0xff]
    %v1265 = vld [vmem:[#allocation8 + $0x310] sm:$0xff]
    %v1266 = vld [vmem:[#allocation8 + $0x318] sm:$0xff]
    %v1267 = vld [vmem:[#allocation8 + $0x320] sm:$0xff]
    %v1268 = vld [vmem:[#allocation8 + $0x328] sm:$0xff]
    %v1269 = vld [vmem:[#allocation8 + $0x330] sm:$0xff]
    %v1270 = vld [vmem:[#allocation8 + $0x338] sm:$0xff]
    %v1271 = vld [vmem:[#allocation8 + $0x340] sm:$0xff]
    %v1272 = vld [vmem:[#allocation8 + $0x348] sm:$0xff]
    %v1273 = vld [vmem:[#allocation8 + $0x350] sm:$0xff]
    %v1274 = vld [vmem:[#allocation8 + $0x358] sm:$0xff]
    %v1275 = vld [vmem:[#allocation8 + $0x360] sm:$0xff]
    %v1276 = vld [vmem:[#allocation8 + $0x368] sm:$0xff]
    %v1277 = vld [vmem:[#allocation8 + $0x370] sm:$0xff]
    %v1278 = vld [vmem:[#allocation8 + $0x378] sm:$0xff]
    %v1279 = vld [vmem:[#allocation8 + $0x380] sm:$0xff]
    %v1280 = vld [vmem:[#allocation8 + $0x388] sm:$0xff]
    %v1281 = vld [vmem:[#allocation8 + $0x390] sm:$0xff]
    %v1282 = vld [vmem:[#allocation8 + $0x398] sm:$0xff]
    %v1283 = vld [vmem:[#allocation8 + $0x3a0] sm:$0xff]
    %v1284 = vld [vmem:[#allocation8 + $0x3a8] sm:$0xff]
    %v1285 = vld [vmem:[#allocation8 + $0x3b0] sm:$0xff]
    %v1286 = vld [vmem:[#allocation8 + $0x3b8] sm:$0xff]
    %v1287 = vld [vmem:[#allocation8 + $0x3c0] sm:$0xff]
    %v1288 = vld [vmem:[#allocation8 + $0x3c8] sm:$0xff]
    %v1289 = vld [vmem:[#allocation8 + $0x3d0] sm:$0xff]
    %v1290 = vld [vmem:[#allocation8 + $0x3d8] sm:$0xff]
    %v1291 = vld [vmem:[#allocation8 + $0x3e0] sm:$0xff]
    %v1292 = vld [vmem:[#allocation8 + $0x3e8] sm:$0xff]
    %v1293 = vld [vmem:[#allocation8 + $0x3f0] sm:$0xff]
    %v1294 = vld [vmem:[#allocation8 + $0x3f8] sm:$0xff]
    %v1295 = vld [vmem:[#allocation8 + $0x400] sm:$0xff]
    %v1296 = vld [vmem:[#allocation8 + $0x408] sm:$0xff]
    %v1297 = vld [vmem:[#allocation8 + $0x410] sm:$0xff]
    %v1298 = vld [vmem:[#allocation8 + $0x418] sm:$0xff]
    %v1299 = vld [vmem:[#allocation8 + $0x420] sm:$0xff]
    %v1300 = vld [vmem:[#allocation8 + $0x428] sm:$0xff]
    %v1301 = vld [vmem:[#allocation8 + $0x430] sm:$0xff]
    %v1302 = vld [vmem:[#allocation8 + $0x438] sm:$0xff]
    %v1303 = vld [vmem:[#allocation8 + $0x440] sm:$0xff]
    %v1304 = vld [vmem:[#allocation8 + $0x448] sm:$0xff]
    %v1305 = vld [vmem:[#allocation8 + $0x450] sm:$0xff]
    %v1306 = vld [vmem:[#allocation8 + $0x458] sm:$0xff]
    %v1307 = vld [vmem:[#allocation8 + $0x460] sm:$0xff]
    %v1308 = vld [vmem:[#allocation8 + $0x468] sm:$0xff]
    %v1309 = vld [vmem:[#allocation8 + $0x470] sm:$0xff]
    %v1310 = vld [vmem:[#allocation8 + $0x478] sm:$0xff]
    %v1311 = vld [vmem:[#allocation8 + $0x480] sm:$0xff]
    %v1312 = vld [vmem:[#allocation8 + $0x488] sm:$0xff]
    %v1313 = vld [vmem:[#allocation8 + $0x490] sm:$0xff]
    %v1314 = vld [vmem:[#allocation8 + $0x498] sm:$0xff]
    %v1315 = vld [vmem:[#allocation8 + $0x4a0] sm:$0xff]
    %v1316 = vld [vmem:[#allocation8 + $0x4a8] sm:$0xff]
    %v1317 = vld [vmem:[#allocation8 + $0x4b0] sm:$0xff]
    %v1318 = vld [vmem:[#allocation8 + $0x4b8] sm:$0xff]
    %v1319 = vld [vmem:[#allocation8 + $0x4c0] sm:$0xff]
    %v1320 = vld [vmem:[#allocation8 + $0x4c8] sm:$0xff]
    %v1321 = vld [vmem:[#allocation8 + $0x4d0] sm:$0xff]
    %v1322 = vld [vmem:[#allocation8 + $0x4d8] sm:$0xff]
    %v1323 = vld [vmem:[#allocation8 + $0x4e0] sm:$0xff]
    %v1324 = vld [vmem:[#allocation8 + $0x4e8] sm:$0xff]
    %v1325 = vld [vmem:[#allocation8 + $0x4f0] sm:$0xff]
    %v1326 = vld [vmem:[#allocation8 + $0x4f8] sm:$0xff]
    %v1327 = vld [vmem:[#allocation8 + $0x500] sm:$0xff]
    %v1328 = vld [vmem:[#allocation8 + $0x508] sm:$0xff]
    %v1329 = vld [vmem:[#allocation8 + $0x510] sm:$0xff]
    %v1330 = vld [vmem:[#allocation8 + $0x518] sm:$0xff]
    %v1331 = vld [vmem:[#allocation8 + $0x520] sm:$0xff]
    %v1332 = vld [vmem:[#allocation8 + $0x528] sm:$0xff]
    %v1333 = vld [vmem:[#allocation8 + $0x530] sm:$0xff]
    %v1334 = vld [vmem:[#allocation8 + $0x538] sm:$0xff]
    %v1335 = vld [vmem:[#allocation8 + $0x540] sm:$0xff]
    %v1336 = vld [vmem:[#allocation8 + $0x548] sm:$0xff]
    %v1337 = vld [vmem:[#allocation8 + $0x550] sm:$0xff]
    %v1338 = vld [vmem:[#allocation8 + $0x558] sm:$0xff]
    %v1339 = vld [vmem:[#allocation8 + $0x560] sm:$0xff]
    %v1340 = vld [vmem:[#allocation8 + $0x568] sm:$0xff]
    %v1341 = vld [vmem:[#allocation8 + $0x570] sm:$0xff]
    %v1342 = vld [vmem:[#allocation8 + $0x578] sm:$0xff]
    %v1343 = vld [vmem:[#allocation8 + $0x580] sm:$0xff]
    %v1344 = vld [vmem:[#allocation8 + $0x588] sm:$0xff]
    %v1345 = vld [vmem:[#allocation8 + $0x590] sm:$0xff]
    %v1346 = vld [vmem:[#allocation8 + $0x598] sm:$0xff]
    %v1347 = vld [vmem:[#allocation8 + $0x5a0] sm:$0xff]
    %v1348 = vld [vmem:[#allocation8 + $0x5a8] sm:$0xff]
    %v1349 = vld [vmem:[#allocation8 + $0x5b0] sm:$0xff]
    %v1350 = vld [vmem:[#allocation8 + $0x5b8] sm:$0xff]
    %v1351 = vld [vmem:[#allocation8 + $0x5c0] sm:$0xff]
    %v1352 = vld [vmem:[#allocation8 + $0x5c8] sm:$0xff]
    %v1353 = vld [vmem:[#allocation8 + $0x5d0] sm:$0xff]
    %v1354 = vld [vmem:[#allocation8 + $0x5d8] sm:$0xff]
    %v1355 = vld [vmem:[#allocation8 + $0x5e0] sm:$0xff]
    %v1356 = vld [vmem:[#allocation8 + $0x5e8] sm:$0xff]
    %v1357 = vld [vmem:[#allocation8 + $0x5f0] sm:$0xff]
    %v1358 = vld [vmem:[#allocation8 + $0x5f8] sm:$0xff]
    %v1359 = vld [vmem:[#allocation8 + $0x600] sm:$0xff]
    %v1360 = vld [vmem:[#allocation8 + $0x608] sm:$0xff]
    %v1361 = vld [vmem:[#allocation8 + $0x610] sm:$0xff]
    %v1362 = vld [vmem:[#allocation8 + $0x618] sm:$0xff]
    %v1363 = vld [vmem:[#allocation8 + $0x620] sm:$0xff]
    %v1364 = vld [vmem:[#allocation8 + $0x628] sm:$0xff]
    %v1365 = vld [vmem:[#allocation8 + $0x630] sm:$0xff]
    %v1366 = vld [vmem:[#allocation8 + $0x638] sm:$0xff]
    %v1367 = vld [vmem:[#allocation8 + $0x640] sm:$0xff]
    %v1368 = vld [vmem:[#allocation8 + $0x648] sm:$0xff]
    %v1369 = vld [vmem:[#allocation8 + $0x650] sm:$0xff]
    %v1370 = vld [vmem:[#allocation8 + $0x658] sm:$0xff]
    %v1371 = vld [vmem:[#allocation8 + $0x660] sm:$0xff]
    %v1372 = vld [vmem:[#allocation8 + $0x668] sm:$0xff]
    %v1373 = vld [vmem:[#allocation8 + $0x670] sm:$0xff]
    %v1374 = vld [vmem:[#allocation8 + $0x678] sm:$0xff]
    %v1375 = vld [vmem:[#allocation8 + $0x680] sm:$0xff]
    %v1376 = vld [vmem:[#allocation8 + $0x688] sm:$0xff]
    %v1377 = vld [vmem:[#allocation8 + $0x690] sm:$0xff]
    %v1378 = vld [vmem:[#allocation8 + $0x698] sm:$0xff]
    %v1379 = vld [vmem:[#allocation8 + $0x6a0] sm:$0xff]
    %v1380 = vld [vmem:[#allocation8 + $0x6a8] sm:$0xff]
    %v1381 = vld [vmem:[#allocation8 + $0x6b0] sm:$0xff]
    %v1382 = vld [vmem:[#allocation8 + $0x6b8] sm:$0xff]
    %v1383 = vld [vmem:[#allocation8 + $0x6c0] sm:$0xff]
    %v1384 = vld [vmem:[#allocation8 + $0x6c8] sm:$0xff]
    %v1385 = vld [vmem:[#allocation8 + $0x6d0] sm:$0xff]
    %v1386 = vld [vmem:[#allocation8 + $0x6d8] sm:$0xff]
    %v1387 = vld [vmem:[#allocation8 + $0x6e0] sm:$0xff]
    %v1388 = vld [vmem:[#allocation8 + $0x6e8] sm:$0xff]
    %v1389 = vld [vmem:[#allocation8 + $0x6f0] sm:$0xff]
    %v1390 = vld [vmem:[#allocation8 + $0x6f8] sm:$0xff]
    %v1391 = vld [vmem:[#allocation8 + $0x700] sm:$0xff]
    %v1392 = vld [vmem:[#allocation8 + $0x708] sm:$0xff]
    %v1393 = vld [vmem:[#allocation8 + $0x710] sm:$0xff]
    %v1394 = vld [vmem:[#allocation8 + $0x718] sm:$0xff]
    %v1395 = vld [vmem:[#allocation8 + $0x720] sm:$0xff]
    %v1396 = vld [vmem:[#allocation8 + $0x728] sm:$0xff]
    %v1397 = vld [vmem:[#allocation8 + $0x730] sm:$0xff]
    %v1398 = vld [vmem:[#allocation8 + $0x738] sm:$0xff]
    %v1399 = vld [vmem:[#allocation8 + $0x740] sm:$0xff]
    %v1400 = vld [vmem:[#allocation8 + $0x748] sm:$0xff]
    %v1401 = vld [vmem:[#allocation8 + $0x750] sm:$0xff]
    %v1402 = vld [vmem:[#allocation8 + $0x758] sm:$0xff]
    %v1403 = vld [vmem:[#allocation8 + $0x760] sm:$0xff]
    %v1404 = vld [vmem:[#allocation8 + $0x768] sm:$0xff]
    %v1405 = vld [vmem:[#allocation8 + $0x770] sm:$0xff]
    %v1406 = vld [vmem:[#allocation8 + $0x778] sm:$0xff]
    %v1407 = vld [vmem:[#allocation8 + $0x780] sm:$0xff]
    %v1408 = vld [vmem:[#allocation8 + $0x788] sm:$0xff]
    %v1409 = vld [vmem:[#allocation8 + $0x790] sm:$0xff]
    %v1410 = vld [vmem:[#allocation8 + $0x798] sm:$0xff]
    %v1411 = vld [vmem:[#allocation8 + $0x7a0] sm:$0xff]
    %v1412 = vld [vmem:[#allocation8 + $0x7a8] sm:$0xff]
    %v1413 = vld [vmem:[#allocation8 + $0x7b0] sm:$0xff]
    %v1414 = vld [vmem:[#allocation8 + $0x7b8] sm:$0xff]
    %v1415 = vld [vmem:[#allocation8 + $0x7c0] sm:$0xff]
    %v1416 = vld [vmem:[#allocation8 + $0x7c8] sm:$0xff]
    %v1417 = vld [vmem:[#allocation8 + $0x7d0] sm:$0xff]
    %v1418 = vld [vmem:[#allocation8 + $0x7d8] sm:$0xff]
    %v1419 = vld [vmem:[#allocation8 + $0x7e0] sm:$0xff]
    %v1420 = vld [vmem:[#allocation8 + $0x7e8] sm:$0xff]
    %v1421 = vld [vmem:[#allocation8 + $0x7f0] sm:$0xff]
    %v1422 = vld [vmem:[#allocation8 + $0x7f8] sm:$0xff]
    %v1423 = vld [vmem:[%s4] sm:$0xf]
    %v1425 = vlaneseq
    %v1426 = vshrl.u32 %v1425, 7
    %v1427 = vsub.s32 0, %v1426
    %v1428 = vrot.slane %v1423, %v1427
    %v1429 = vlaneseq
    %v1430 = vshrl.u32 %v1429, 7
    %v1431 = vsub.s32 1, %v1430
    %v1432 = vrot.slane %v1423, %v1431
    %v1433 = vlaneseq
    %v1434 = vshrl.u32 %v1433, 7
    %v1435 = vsub.s32 2, %v1434
    %v1436 = vrot.slane %v1423, %v1435
    %v1437 = vlaneseq
    %v1438 = vshrl.u32 %v1437, 7
    %v1439 = vsub.s32 3, %v1438
    %v1440 = vrot.slane %v1423, %v1439
    %v1701 = vunpack.c.l.b16 %v1167
    %v1702 = vunpack.c.h.b16 %v1167
    %v1703 = vunpack.c.l.b16 %v1168
    %v1704 = vunpack.c.h.b16 %v1168
    %v1705 = vunpack.c.l.b16 %v1169
    %v1706 = vunpack.c.h.b16 %v1169
    %v1707 = vunpack.c.l.b16 %v1170
    %v1708 = vunpack.c.h.b16 %v1170
    %v1709 = vunpack.c.l.b16 %v1171
    %v1710 = vunpack.c.h.b16 %v1171
    %v1711 = vunpack.c.l.b16 %v1172
    %v1712 = vunpack.c.h.b16 %v1172
    %v1713 = vunpack.c.l.b16 %v1173
    %v1714 = vunpack.c.h.b16 %v1173
    %v1715 = vunpack.c.l.b16 %v1174
    %v1716 = vunpack.c.h.b16 %v1174
    %v1717 = vunpack.c.l.b16 %v1175
    %v1718 = vunpack.c.h.b16 %v1175
    %v1719 = vunpack.c.l.b16 %v1176
    %v1720 = vunpack.c.h.b16 %v1176
    %v1721 = vunpack.c.l.b16 %v1177
    %v1722 = vunpack.c.h.b16 %v1177
    %v1723 = vunpack.c.l.b16 %v1178
    %v1724 = vunpack.c.h.b16 %v1178
    %v1725 = vunpack.c.l.b16 %v1179
    %v1726 = vunpack.c.h.b16 %v1179
    %v1727 = vunpack.c.l.b16 %v1180
    %v1728 = vunpack.c.h.b16 %v1180
    %v1729 = vunpack.c.l.b16 %v1181
    %v1730 = vunpack.c.h.b16 %v1181
    %v1731 = vunpack.c.l.b16 %v1182
    %v1732 = vunpack.c.h.b16 %v1182
    %v1733 = vunpack.c.l.b16 %v1183
    %v1734 = vunpack.c.h.b16 %v1183
    %v1735 = vunpack.c.l.b16 %v1184
    %v1736 = vunpack.c.h.b16 %v1184
    %v1737 = vunpack.c.l.b16 %v1185
    %v1738 = vunpack.c.h.b16 %v1185
    %v1739 = vunpack.c.l.b16 %v1186
    %v1740 = vunpack.c.h.b16 %v1186
    %v1741 = vunpack.c.l.b16 %v1187
    %v1742 = vunpack.c.h.b16 %v1187
    %v1743 = vunpack.c.l.b16 %v1188
    %v1744 = vunpack.c.h.b16 %v1188
    %v1745 = vunpack.c.l.b16 %v1189
    %v1746 = vunpack.c.h.b16 %v1189
    %v1747 = vunpack.c.l.b16 %v1190
    %v1748 = vunpack.c.h.b16 %v1190
    %v1749 = vunpack.c.l.b16 %v1191
    %v1750 = vunpack.c.h.b16 %v1191
    %v1751 = vunpack.c.l.b16 %v1192
    %v1752 = vunpack.c.h.b16 %v1192
    %v1753 = vunpack.c.l.b16 %v1193
    %v1754 = vunpack.c.h.b16 %v1193
    %v1755 = vunpack.c.l.b16 %v1194
    %v1756 = vunpack.c.h.b16 %v1194
    %v1757 = vunpack.c.l.b16 %v1195
    %v1758 = vunpack.c.h.b16 %v1195
    %v1759 = vunpack.c.l.b16 %v1196
    %v1760 = vunpack.c.h.b16 %v1196
    %v1761 = vunpack.c.l.b16 %v1197
    %v1762 = vunpack.c.h.b16 %v1197
    %v1763 = vunpack.c.l.b16 %v1198
    %v1764 = vunpack.c.h.b16 %v1198
    %v1765 = vunpack.c.l.b16 %v1199
    %v1766 = vunpack.c.h.b16 %v1199
    %v1767 = vunpack.c.l.b16 %v1200
    %v1768 = vunpack.c.h.b16 %v1200
    %v1769 = vunpack.c.l.b16 %v1201
    %v1770 = vunpack.c.h.b16 %v1201
    %v1771 = vunpack.c.l.b16 %v1202
    %v1772 = vunpack.c.h.b16 %v1202
    %v1773 = vunpack.c.l.b16 %v1203
    %v1774 = vunpack.c.h.b16 %v1203
    %v1775 = vunpack.c.l.b16 %v1204
    %v1776 = vunpack.c.h.b16 %v1204
    %v1777 = vunpack.c.l.b16 %v1205
    %v1778 = vunpack.c.h.b16 %v1205
    %v1779 = vunpack.c.l.b16 %v1206
    %v1780 = vunpack.c.h.b16 %v1206
    %v1781 = vunpack.c.l.b16 %v1207
    %v1782 = vunpack.c.h.b16 %v1207
    %v1783 = vunpack.c.l.b16 %v1208
    %v1784 = vunpack.c.h.b16 %v1208
    %v1785 = vunpack.c.l.b16 %v1209
    %v1786 = vunpack.c.h.b16 %v1209
    %v1787 = vunpack.c.l.b16 %v1210
    %v1788 = vunpack.c.h.b16 %v1210
    %v1789 = vunpack.c.l.b16 %v1211
    %v1790 = vunpack.c.h.b16 %v1211
    %v1791 = vunpack.c.l.b16 %v1212
    %v1792 = vunpack.c.h.b16 %v1212
    %v1793 = vunpack.c.l.b16 %v1213
    %v1794 = vunpack.c.h.b16 %v1213
    %v1795 = vunpack.c.l.b16 %v1214
    %v1796 = vunpack.c.h.b16 %v1214
    %v1797 = vunpack.c.l.b16 %v1215
    %v1798 = vunpack.c.h.b16 %v1215
    %v1799 = vunpack.c.l.b16 %v1216
    %v1800 = vunpack.c.h.b16 %v1216
    %v1801 = vunpack.c.l.b16 %v1217
    %v1802 = vunpack.c.h.b16 %v1217
    %v1803 = vunpack.c.l.b16 %v1218
    %v1804 = vunpack.c.h.b16 %v1218
    %v1805 = vunpack.c.l.b16 %v1219
    %v1806 = vunpack.c.h.b16 %v1219
    %v1807 = vunpack.c.l.b16 %v1220
    %v1808 = vunpack.c.h.b16 %v1220
    %v1809 = vunpack.c.l.b16 %v1221
    %v1810 = vunpack.c.h.b16 %v1221
    %v1811 = vunpack.c.l.b16 %v1222
    %v1812 = vunpack.c.h.b16 %v1222
    %v1813 = vunpack.c.l.b16 %v1223
    %v1814 = vunpack.c.h.b16 %v1223
    %v1815 = vunpack.c.l.b16 %v1224
    %v1816 = vunpack.c.h.b16 %v1224
    %v1817 = vunpack.c.l.b16 %v1225
    %v1818 = vunpack.c.h.b16 %v1225
    %v1819 = vunpack.c.l.b16 %v1226
    %v1820 = vunpack.c.h.b16 %v1226
    %v1821 = vunpack.c.l.b16 %v1227
    %v1822 = vunpack.c.h.b16 %v1227
    %v1823 = vunpack.c.l.b16 %v1228
    %v1824 = vunpack.c.h.b16 %v1228
    %v1825 = vunpack.c.l.b16 %v1229
    %v1826 = vunpack.c.h.b16 %v1229
    %v1827 = vunpack.c.l.b16 %v1230
    %v1828 = vunpack.c.h.b16 %v1230
    %v1829 = vunpack.c.l.b16 %v1231
    %v1830 = vunpack.c.h.b16 %v1231
    %v1831 = vunpack.c.l.b16 %v1232
    %v1832 = vunpack.c.h.b16 %v1232
    %v1833 = vunpack.c.l.b16 %v1233
    %v1834 = vunpack.c.h.b16 %v1233
    %v1835 = vunpack.c.l.b16 %v1234
    %v1836 = vunpack.c.h.b16 %v1234
    %v1837 = vunpack.c.l.b16 %v1235
    %v1838 = vunpack.c.h.b16 %v1235
    %v1839 = vunpack.c.l.b16 %v1236
    %v1840 = vunpack.c.h.b16 %v1236
    %v1841 = vunpack.c.l.b16 %v1237
    %v1842 = vunpack.c.h.b16 %v1237
    %v1843 = vunpack.c.l.b16 %v1238
    %v1844 = vunpack.c.h.b16 %v1238
    %v1845 = vunpack.c.l.b16 %v1239
    %v1846 = vunpack.c.h.b16 %v1239
    %v1847 = vunpack.c.l.b16 %v1240
    %v1848 = vunpack.c.h.b16 %v1240
    %v1849 = vunpack.c.l.b16 %v1241
    %v1850 = vunpack.c.h.b16 %v1241
    %v1851 = vunpack.c.l.b16 %v1242
    %v1852 = vunpack.c.h.b16 %v1242
    %v1853 = vunpack.c.l.b16 %v1243
    %v1854 = vunpack.c.h.b16 %v1243
    %v1855 = vunpack.c.l.b16 %v1244
    %v1856 = vunpack.c.h.b16 %v1244
    %v1857 = vunpack.c.l.b16 %v1245
    %v1858 = vunpack.c.h.b16 %v1245
    %v1859 = vunpack.c.l.b16 %v1246
    %v1860 = vunpack.c.h.b16 %v1246
    %v1861 = vunpack.c.l.b16 %v1247
    %v1862 = vunpack.c.h.b16 %v1247
    %v1863 = vunpack.c.l.b16 %v1248
    %v1864 = vunpack.c.h.b16 %v1248
    %v1865 = vunpack.c.l.b16 %v1249
    %v1866 = vunpack.c.h.b16 %v1249
    %v1867 = vunpack.c.l.b16 %v1250
    %v1868 = vunpack.c.h.b16 %v1250
    %v1869 = vunpack.c.l.b16 %v1251
    %v1870 = vunpack.c.h.b16 %v1251
    %v1871 = vunpack.c.l.b16 %v1252
    %v1872 = vunpack.c.h.b16 %v1252
    %v1873 = vunpack.c.l.b16 %v1253
    %v1874 = vunpack.c.h.b16 %v1253
    %v1875 = vunpack.c.l.b16 %v1254
    %v1876 = vunpack.c.h.b16 %v1254
    %v1877 = vunpack.c.l.b16 %v1255
    %v1878 = vunpack.c.h.b16 %v1255
    %v1879 = vunpack.c.l.b16 %v1256
    %v1880 = vunpack.c.h.b16 %v1256
    %v1881 = vunpack.c.l.b16 %v1257
    %v1882 = vunpack.c.h.b16 %v1257
    %v1883 = vunpack.c.l.b16 %v1258
    %v1884 = vunpack.c.h.b16 %v1258
    %v1885 = vunpack.c.l.b16 %v1259
    %v1886 = vunpack.c.h.b16 %v1259
    %v1887 = vunpack.c.l.b16 %v1260
    %v1888 = vunpack.c.h.b16 %v1260
    %v1889 = vunpack.c.l.b16 %v1261
    %v1890 = vunpack.c.h.b16 %v1261
    %v1891 = vunpack.c.l.b16 %v1262
    %v1892 = vunpack.c.h.b16 %v1262
    %v1893 = vunpack.c.l.b16 %v1263
    %v1894 = vunpack.c.h.b16 %v1263
    %v1895 = vunpack.c.l.b16 %v1264
    %v1896 = vunpack.c.h.b16 %v1264
    %v1897 = vunpack.c.l.b16 %v1265
    %v1898 = vunpack.c.h.b16 %v1265
    %v1899 = vunpack.c.l.b16 %v1266
    %v1900 = vunpack.c.h.b16 %v1266
    %v1901 = vunpack.c.l.b16 %v1267
    %v1902 = vunpack.c.h.b16 %v1267
    %v1903 = vunpack.c.l.b16 %v1268
    %v1904 = vunpack.c.h.b16 %v1268
    %v1905 = vunpack.c.l.b16 %v1269
    %v1906 = vunpack.c.h.b16 %v1269
    %v1907 = vunpack.c.l.b16 %v1270
    %v1908 = vunpack.c.h.b16 %v1270
    %v1909 = vunpack.c.l.b16 %v1271
    %v1910 = vunpack.c.h.b16 %v1271
    %v1911 = vunpack.c.l.b16 %v1272
    %v1912 = vunpack.c.h.b16 %v1272
    %v1913 = vunpack.c.l.b16 %v1273
    %v1914 = vunpack.c.h.b16 %v1273
    %v1915 = vunpack.c.l.b16 %v1274
    %v1916 = vunpack.c.h.b16 %v1274
    %v1917 = vunpack.c.l.b16 %v1275
    %v1918 = vunpack.c.h.b16 %v1275
    %v1919 = vunpack.c.l.b16 %v1276
    %v1920 = vunpack.c.h.b16 %v1276
    %v1921 = vunpack.c.l.b16 %v1277
    %v1922 = vunpack.c.h.b16 %v1277
    %v1923 = vunpack.c.l.b16 %v1278
    %v1924 = vunpack.c.h.b16 %v1278
    %v1925 = vunpack.c.l.b16 %v1279
    %v1926 = vunpack.c.h.b16 %v1279
    %v1927 = vunpack.c.l.b16 %v1280
    %v1928 = vunpack.c.h.b16 %v1280
    %v1929 = vunpack.c.l.b16 %v1281
    %v1930 = vunpack.c.h.b16 %v1281
    %v1931 = vunpack.c.l.b16 %v1282
    %v1932 = vunpack.c.h.b16 %v1282
    %v1933 = vunpack.c.l.b16 %v1283
    %v1934 = vunpack.c.h.b16 %v1283
    %v1935 = vunpack.c.l.b16 %v1284
    %v1936 = vunpack.c.h.b16 %v1284
    %v1937 = vunpack.c.l.b16 %v1285
    %v1938 = vunpack.c.h.b16 %v1285
    %v1939 = vunpack.c.l.b16 %v1286
    %v1940 = vunpack.c.h.b16 %v1286
    %v1941 = vunpack.c.l.b16 %v1287
    %v1942 = vunpack.c.h.b16 %v1287
    %v1943 = vunpack.c.l.b16 %v1288
    %v1944 = vunpack.c.h.b16 %v1288
    %v1945 = vunpack.c.l.b16 %v1289
    %v1946 = vunpack.c.h.b16 %v1289
    %v1947 = vunpack.c.l.b16 %v1290
    %v1948 = vunpack.c.h.b16 %v1290
    %v1949 = vunpack.c.l.b16 %v1291
    %v1950 = vunpack.c.h.b16 %v1291
    %v1951 = vunpack.c.l.b16 %v1292
    %v1952 = vunpack.c.h.b16 %v1292
    %v1953 = vunpack.c.l.b16 %v1293
    %v1954 = vunpack.c.h.b16 %v1293
    %v1955 = vunpack.c.l.b16 %v1294
    %v1956 = vunpack.c.h.b16 %v1294
    %v1957 = vunpack.c.l.b16 %v1295
    %v1958 = vunpack.c.h.b16 %v1295
    %v1959 = vunpack.c.l.b16 %v1296
    %v1960 = vunpack.c.h.b16 %v1296
    %v1961 = vunpack.c.l.b16 %v1297
    %v1962 = vunpack.c.h.b16 %v1297
    %v1963 = vunpack.c.l.b16 %v1298
    %v1964 = vunpack.c.h.b16 %v1298
    %v1965 = vunpack.c.l.b16 %v1299
    %v1966 = vunpack.c.h.b16 %v1299
    %v1967 = vunpack.c.l.b16 %v1300
    %v1968 = vunpack.c.h.b16 %v1300
    %v1969 = vunpack.c.l.b16 %v1301
    %v1970 = vunpack.c.h.b16 %v1301
    %v1971 = vunpack.c.l.b16 %v1302
    %v1972 = vunpack.c.h.b16 %v1302
    %v1973 = vunpack.c.l.b16 %v1303
    %v1974 = vunpack.c.h.b16 %v1303
    %v1975 = vunpack.c.l.b16 %v1304
    %v1976 = vunpack.c.h.b16 %v1304
    %v1977 = vunpack.c.l.b16 %v1305
    %v1978 = vunpack.c.h.b16 %v1305
    %v1979 = vunpack.c.l.b16 %v1306
    %v1980 = vunpack.c.h.b16 %v1306
    %v1981 = vunpack.c.l.b16 %v1307
    %v1982 = vunpack.c.h.b16 %v1307
    %v1983 = vunpack.c.l.b16 %v1308
    %v1984 = vunpack.c.h.b16 %v1308
    %v1985 = vunpack.c.l.b16 %v1309
    %v1986 = vunpack.c.h.b16 %v1309
    %v1987 = vunpack.c.l.b16 %v1310
    %v1988 = vunpack.c.h.b16 %v1310
    %v1989 = vunpack.c.l.b16 %v1311
    %v1990 = vunpack.c.h.b16 %v1311
    %v1991 = vunpack.c.l.b16 %v1312
    %v1992 = vunpack.c.h.b16 %v1312
    %v1993 = vunpack.c.l.b16 %v1313
    %v1994 = vunpack.c.h.b16 %v1313
    %v1995 = vunpack.c.l.b16 %v1314
    %v1996 = vunpack.c.h.b16 %v1314
    %v1997 = vunpack.c.l.b16 %v1315
    %v1998 = vunpack.c.h.b16 %v1315
    %v1999 = vunpack.c.l.b16 %v1316
    %v2000 = vunpack.c.h.b16 %v1316
    %v2001 = vunpack.c.l.b16 %v1317
    %v2002 = vunpack.c.h.b16 %v1317
    %v2003 = vunpack.c.l.b16 %v1318
    %v2004 = vunpack.c.h.b16 %v1318
    %v2005 = vunpack.c.l.b16 %v1319
    %v2006 = vunpack.c.h.b16 %v1319
    %v2007 = vunpack.c.l.b16 %v1320
    %v2008 = vunpack.c.h.b16 %v1320
    %v2009 = vunpack.c.l.b16 %v1321
    %v2010 = vunpack.c.h.b16 %v1321
    %v2011 = vunpack.c.l.b16 %v1322
    %v2012 = vunpack.c.h.b16 %v1322
    %v2013 = vunpack.c.l.b16 %v1323
    %v2014 = vunpack.c.h.b16 %v1323
    %v2015 = vunpack.c.l.b16 %v1324
    %v2016 = vunpack.c.h.b16 %v1324
    %v2017 = vunpack.c.l.b16 %v1325
    %v2018 = vunpack.c.h.b16 %v1325
    %v2019 = vunpack.c.l.b16 %v1326
    %v2020 = vunpack.c.h.b16 %v1326
    %v2021 = vunpack.c.l.b16 %v1327
    %v2022 = vunpack.c.h.b16 %v1327
    %v2023 = vunpack.c.l.b16 %v1328
    %v2024 = vunpack.c.h.b16 %v1328
    %v2025 = vunpack.c.l.b16 %v1329
    %v2026 = vunpack.c.h.b16 %v1329
    %v2027 = vunpack.c.l.b16 %v1330
    %v2028 = vunpack.c.h.b16 %v1330
    %v2029 = vunpack.c.l.b16 %v1331
    %v2030 = vunpack.c.h.b16 %v1331
    %v2031 = vunpack.c.l.b16 %v1332
    %v2032 = vunpack.c.h.b16 %v1332
    %v2033 = vunpack.c.l.b16 %v1333
    %v2034 = vunpack.c.h.b16 %v1333
    %v2035 = vunpack.c.l.b16 %v1334
    %v2036 = vunpack.c.h.b16 %v1334
    %v2037 = vunpack.c.l.b16 %v1335
    %v2038 = vunpack.c.h.b16 %v1335
    %v2039 = vunpack.c.l.b16 %v1336
    %v2040 = vunpack.c.h.b16 %v1336
    %v2041 = vunpack.c.l.b16 %v1337
    %v2042 = vunpack.c.h.b16 %v1337
    %v2043 = vunpack.c.l.b16 %v1338
    %v2044 = vunpack.c.h.b16 %v1338
    %v2045 = vunpack.c.l.b16 %v1339
    %v2046 = vunpack.c.h.b16 %v1339
    %v2047 = vunpack.c.l.b16 %v1340
    %v2048 = vunpack.c.h.b16 %v1340
    %v2049 = vunpack.c.l.b16 %v1341
    %v2050 = vunpack.c.h.b16 %v1341
    %v2051 = vunpack.c.l.b16 %v1342
    %v2052 = vunpack.c.h.b16 %v1342
    %v2053 = vunpack.c.l.b16 %v1343
    %v2054 = vunpack.c.h.b16 %v1343
    %v2055 = vunpack.c.l.b16 %v1344
    %v2056 = vunpack.c.h.b16 %v1344
    %v2057 = vunpack.c.l.b16 %v1345
    %v2058 = vunpack.c.h.b16 %v1345
    %v2059 = vunpack.c.l.b16 %v1346
    %v2060 = vunpack.c.h.b16 %v1346
    %v2061 = vunpack.c.l.b16 %v1347
    %v2062 = vunpack.c.h.b16 %v1347
    %v2063 = vunpack.c.l.b16 %v1348
    %v2064 = vunpack.c.h.b16 %v1348
    %v2065 = vunpack.c.l.b16 %v1349
    %v2066 = vunpack.c.h.b16 %v1349
    %v2067 = vunpack.c.l.b16 %v1350
    %v2068 = vunpack.c.h.b16 %v1350
    %v2069 = vunpack.c.l.b16 %v1351
    %v2070 = vunpack.c.h.b16 %v1351
    %v2071 = vunpack.c.l.b16 %v1352
    %v2072 = vunpack.c.h.b16 %v1352
    %v2073 = vunpack.c.l.b16 %v1353
    %v2074 = vunpack.c.h.b16 %v1353
    %v2075 = vunpack.c.l.b16 %v1354
    %v2076 = vunpack.c.h.b16 %v1354
    %v2077 = vunpack.c.l.b16 %v1355
    %v2078 = vunpack.c.h.b16 %v1355
    %v2079 = vunpack.c.l.b16 %v1356
    %v2080 = vunpack.c.h.b16 %v1356
    %v2081 = vunpack.c.l.b16 %v1357
    %v2082 = vunpack.c.h.b16 %v1357
    %v2083 = vunpack.c.l.b16 %v1358
    %v2084 = vunpack.c.h.b16 %v1358
    %v2085 = vunpack.c.l.b16 %v1359
    %v2086 = vunpack.c.h.b16 %v1359
    %v2087 = vunpack.c.l.b16 %v1360
    %v2088 = vunpack.c.h.b16 %v1360
    %v2089 = vunpack.c.l.b16 %v1361
    %v2090 = vunpack.c.h.b16 %v1361
    %v2091 = vunpack.c.l.b16 %v1362
    %v2092 = vunpack.c.h.b16 %v1362
    %v2093 = vunpack.c.l.b16 %v1363
    %v2094 = vunpack.c.h.b16 %v1363
    %v2095 = vunpack.c.l.b16 %v1364
    %v2096 = vunpack.c.h.b16 %v1364
    %v2097 = vunpack.c.l.b16 %v1365
    %v2098 = vunpack.c.h.b16 %v1365
    %v2099 = vunpack.c.l.b16 %v1366
    %v2100 = vunpack.c.h.b16 %v1366
    %v2101 = vunpack.c.l.b16 %v1367
    %v2102 = vunpack.c.h.b16 %v1367
    %v2103 = vunpack.c.l.b16 %v1368
    %v2104 = vunpack.c.h.b16 %v1368
    %v2105 = vunpack.c.l.b16 %v1369
    %v2106 = vunpack.c.h.b16 %v1369
    %v2107 = vunpack.c.l.b16 %v1370
    %v2108 = vunpack.c.h.b16 %v1370
    %v2109 = vunpack.c.l.b16 %v1371
    %v2110 = vunpack.c.h.b16 %v1371
    %v2111 = vunpack.c.l.b16 %v1372
    %v2112 = vunpack.c.h.b16 %v1372
    %v2113 = vunpack.c.l.b16 %v1373
    %v2114 = vunpack.c.h.b16 %v1373
    %v2115 = vunpack.c.l.b16 %v1374
    %v2116 = vunpack.c.h.b16 %v1374
    %v2117 = vunpack.c.l.b16 %v1375
    %v2118 = vunpack.c.h.b16 %v1375
    %v2119 = vunpack.c.l.b16 %v1376
    %v2120 = vunpack.c.h.b16 %v1376
    %v2121 = vunpack.c.l.b16 %v1377
    %v2122 = vunpack.c.h.b16 %v1377
    %v2123 = vunpack.c.l.b16 %v1378
    %v2124 = vunpack.c.h.b16 %v1378
    %v2125 = vunpack.c.l.b16 %v1379
    %v2126 = vunpack.c.h.b16 %v1379
    %v2127 = vunpack.c.l.b16 %v1380
    %v2128 = vunpack.c.h.b16 %v1380
    %v2129 = vunpack.c.l.b16 %v1381
    %v2130 = vunpack.c.h.b16 %v1381
    %v2131 = vunpack.c.l.b16 %v1382
    %v2132 = vunpack.c.h.b16 %v1382
    %v2133 = vunpack.c.l.b16 %v1383
    %v2134 = vunpack.c.h.b16 %v1383
    %v2135 = vunpack.c.l.b16 %v1384
    %v2136 = vunpack.c.h.b16 %v1384
    %v2137 = vunpack.c.l.b16 %v1385
    %v2138 = vunpack.c.h.b16 %v1385
    %v2139 = vunpack.c.l.b16 %v1386
    %v2140 = vunpack.c.h.b16 %v1386
    %v2141 = vunpack.c.l.b16 %v1387
    %v2142 = vunpack.c.h.b16 %v1387
    %v2143 = vunpack.c.l.b16 %v1388
    %v2144 = vunpack.c.h.b16 %v1388
    %v2145 = vunpack.c.l.b16 %v1389
    %v2146 = vunpack.c.h.b16 %v1389
    %v2147 = vunpack.c.l.b16 %v1390
    %v2148 = vunpack.c.h.b16 %v1390
    %v2149 = vunpack.c.l.b16 %v1391
    %v2150 = vunpack.c.h.b16 %v1391
    %v2151 = vunpack.c.l.b16 %v1392
    %v2152 = vunpack.c.h.b16 %v1392
    %v2153 = vunpack.c.l.b16 %v1393
    %v2154 = vunpack.c.h.b16 %v1393
    %v2155 = vunpack.c.l.b16 %v1394
    %v2156 = vunpack.c.h.b16 %v1394
    %v2157 = vunpack.c.l.b16 %v1395
    %v2158 = vunpack.c.h.b16 %v1395
    %v2159 = vunpack.c.l.b16 %v1396
    %v2160 = vunpack.c.h.b16 %v1396
    %v2161 = vunpack.c.l.b16 %v1397
    %v2162 = vunpack.c.h.b16 %v1397
    %v2163 = vunpack.c.l.b16 %v1398
    %v2164 = vunpack.c.h.b16 %v1398
    %v2165 = vunpack.c.l.b16 %v1399
    %v2166 = vunpack.c.h.b16 %v1399
    %v2167 = vunpack.c.l.b16 %v1400
    %v2168 = vunpack.c.h.b16 %v1400
    %v2169 = vunpack.c.l.b16 %v1401
    %v2170 = vunpack.c.h.b16 %v1401
    %v2171 = vunpack.c.l.b16 %v1402
    %v2172 = vunpack.c.h.b16 %v1402
    %v2173 = vunpack.c.l.b16 %v1403
    %v2174 = vunpack.c.h.b16 %v1403
    %v2175 = vunpack.c.l.b16 %v1404
    %v2176 = vunpack.c.h.b16 %v1404
    %v2177 = vunpack.c.l.b16 %v1405
    %v2178 = vunpack.c.h.b16 %v1405
    %v2179 = vunpack.c.l.b16 %v1406
    %v2180 = vunpack.c.h.b16 %v1406
    %v2181 = vunpack.c.l.b16 %v1407
    %v2182 = vunpack.c.h.b16 %v1407
    %v2183 = vunpack.c.l.b16 %v1408
    %v2184 = vunpack.c.h.b16 %v1408
    %v2185 = vunpack.c.l.b16 %v1409
    %v2186 = vunpack.c.h.b16 %v1409
    %v2187 = vunpack.c.l.b16 %v1410
    %v2188 = vunpack.c.h.b16 %v1410
    %v2189 = vunpack.c.l.b16 %v1411
    %v2190 = vunpack.c.h.b16 %v1411
    %v2191 = vunpack.c.l.b16 %v1412
    %v2192 = vunpack.c.h.b16 %v1412
    %v2193 = vunpack.c.l.b16 %v1413
    %v2194 = vunpack.c.h.b16 %v1413
    %v2195 = vunpack.c.l.b16 %v1414
    %v2196 = vunpack.c.h.b16 %v1414
    %v2197 = vunpack.c.l.b16 %v1415
    %v2198 = vunpack.c.h.b16 %v1415
    %v2199 = vunpack.c.l.b16 %v1416
    %v2200 = vunpack.c.h.b16 %v1416
    %v2201 = vunpack.c.l.b16 %v1417
    %v2202 = vunpack.c.h.b16 %v1417
    %v2203 = vunpack.c.l.b16 %v1418
    %v2204 = vunpack.c.h.b16 %v1418
    %v2205 = vunpack.c.l.b16 %v1419
    %v2206 = vunpack.c.h.b16 %v1419
    %v2207 = vunpack.c.l.b16 %v1420
    %v2208 = vunpack.c.h.b16 %v1420
    %v2209 = vunpack.c.l.b16 %v1421
    %v2210 = vunpack.c.h.b16 %v1421
    %v2211 = vunpack.c.l.b16 %v1422
    %v2212 = vunpack.c.h.b16 %v1422
    %v2213 = vpack.c.b16 %v1705, %v1701
    %v2214 = vpack.c.b16 %v1706, %v1702
    %v2215 = vpack.c.b16 %v1707, %v1703
    %v2216 = vpack.c.b16 %v1708, %v1704
    %v2217 = vpack.c.b16 %v1713, %v1709
    %v2218 = vpack.c.b16 %v1714, %v1710
    %v2219 = vpack.c.b16 %v1715, %v1711
    %v2220 = vpack.c.b16 %v1716, %v1712
    %v2221 = vpack.c.b16 %v1721, %v1717
    %v2222 = vpack.c.b16 %v1722, %v1718
    %v2223 = vpack.c.b16 %v1723, %v1719
    %v2224 = vpack.c.b16 %v1724, %v1720
    %v2225 = vpack.c.b16 %v1729, %v1725
    %v2226 = vpack.c.b16 %v1730, %v1726
    %v2227 = vpack.c.b16 %v1731, %v1727
    %v2228 = vpack.c.b16 %v1732, %v1728
    %v2229 = vpack.c.b16 %v1737, %v1733
    %v2230 = vpack.c.b16 %v1738, %v1734
    %v2231 = vpack.c.b16 %v1739, %v1735
    %v2232 = vpack.c.b16 %v1740, %v1736
    %v2233 = vpack.c.b16 %v1745, %v1741
    %v2234 = vpack.c.b16 %v1746, %v1742
    %v2235 = vpack.c.b16 %v1747, %v1743
    %v2236 = vpack.c.b16 %v1748, %v1744
    %v2237 = vpack.c.b16 %v1753, %v1749
    %v2238 = vpack.c.b16 %v1754, %v1750
    %v2239 = vpack.c.b16 %v1755, %v1751
    %v2240 = vpack.c.b16 %v1756, %v1752
    %v2241 = vpack.c.b16 %v1761, %v1757
    %v2242 = vpack.c.b16 %v1762, %v1758
    %v2243 = vpack.c.b16 %v1763, %v1759
    %v2244 = vpack.c.b16 %v1764, %v1760
    %v2245 = vpack.c.b16 %v1769, %v1765
    %v2246 = vpack.c.b16 %v1770, %v1766
    %v2247 = vpack.c.b16 %v1771, %v1767
    %v2248 = vpack.c.b16 %v1772, %v1768
    %v2249 = vpack.c.b16 %v1777, %v1773
    %v2250 = vpack.c.b16 %v1778, %v1774
    %v2251 = vpack.c.b16 %v1779, %v1775
    %v2252 = vpack.c.b16 %v1780, %v1776
    %v2253 = vpack.c.b16 %v1785, %v1781
    %v2254 = vpack.c.b16 %v1786, %v1782
    %v2255 = vpack.c.b16 %v1787, %v1783
    %v2256 = vpack.c.b16 %v1788, %v1784
    %v2257 = vpack.c.b16 %v1793, %v1789
    %v2258 = vpack.c.b16 %v1794, %v1790
    %v2259 = vpack.c.b16 %v1795, %v1791
    %v2260 = vpack.c.b16 %v1796, %v1792
    %v2261 = vpack.c.b16 %v1801, %v1797
    %v2262 = vpack.c.b16 %v1802, %v1798
    %v2263 = vpack.c.b16 %v1803, %v1799
    %v2264 = vpack.c.b16 %v1804, %v1800
    %v2265 = vpack.c.b16 %v1809, %v1805
    %v2266 = vpack.c.b16 %v1810, %v1806
    %v2267 = vpack.c.b16 %v1811, %v1807
    %v2268 = vpack.c.b16 %v1812, %v1808
    %v2269 = vpack.c.b16 %v1817, %v1813
    %v2270 = vpack.c.b16 %v1818, %v1814
    %v2271 = vpack.c.b16 %v1819, %v1815
    %v2272 = vpack.c.b16 %v1820, %v1816
    %v2273 = vpack.c.b16 %v1825, %v1821
    %v2274 = vpack.c.b16 %v1826, %v1822
    %v2275 = vpack.c.b16 %v1827, %v1823
    %v2276 = vpack.c.b16 %v1828, %v1824
    %v2277 = vpack.c.b16 %v1833, %v1829
    %v2278 = vpack.c.b16 %v1834, %v1830
    %v2279 = vpack.c.b16 %v1835, %v1831
    %v2280 = vpack.c.b16 %v1836, %v1832
    %v2281 = vpack.c.b16 %v1841, %v1837
    %v2282 = vpack.c.b16 %v1842, %v1838
    %v2283 = vpack.c.b16 %v1843, %v1839
    %v2284 = vpack.c.b16 %v1844, %v1840
    %v2285 = vpack.c.b16 %v1849, %v1845
    %v2286 = vpack.c.b16 %v1850, %v1846
    %v2287 = vpack.c.b16 %v1851, %v1847
    %v2288 = vpack.c.b16 %v1852, %v1848
    %v2289 = vpack.c.b16 %v1857, %v1853
    %v2290 = vpack.c.b16 %v1858, %v1854
    %v2291 = vpack.c.b16 %v1859, %v1855
    %v2292 = vpack.c.b16 %v1860, %v1856
    %v2293 = vpack.c.b16 %v1865, %v1861
    %v2294 = vpack.c.b16 %v1866, %v1862
    %v2295 = vpack.c.b16 %v1867, %v1863
    %v2296 = vpack.c.b16 %v1868, %v1864
    %v2297 = vpack.c.b16 %v1873, %v1869
    %v2298 = vpack.c.b16 %v1874, %v1870
    %v2299 = vpack.c.b16 %v1875, %v1871
    %v2300 = vpack.c.b16 %v1876, %v1872
    %v2301 = vpack.c.b16 %v1881, %v1877
    %v2302 = vpack.c.b16 %v1882, %v1878
    %v2303 = vpack.c.b16 %v1883, %v1879
    %v2304 = vpack.c.b16 %v1884, %v1880
    %v2305 = vpack.c.b16 %v1889, %v1885
    %v2306 = vpack.c.b16 %v1890, %v1886
    %v2307 = vpack.c.b16 %v1891, %v1887
    %v2308 = vpack.c.b16 %v1892, %v1888
    %v2309 = vpack.c.b16 %v1897, %v1893
    %v2310 = vpack.c.b16 %v1898, %v1894
    %v2311 = vpack.c.b16 %v1899, %v1895
    %v2312 = vpack.c.b16 %v1900, %v1896
    %v2313 = vpack.c.b16 %v1905, %v1901
    %v2314 = vpack.c.b16 %v1906, %v1902
    %v2315 = vpack.c.b16 %v1907, %v1903
    %v2316 = vpack.c.b16 %v1908, %v1904
    %v2317 = vpack.c.b16 %v1913, %v1909
    %v2318 = vpack.c.b16 %v1914, %v1910
    %v2319 = vpack.c.b16 %v1915, %v1911
    %v2320 = vpack.c.b16 %v1916, %v1912
    %v2321 = vpack.c.b16 %v1921, %v1917
    %v2322 = vpack.c.b16 %v1922, %v1918
    %v2323 = vpack.c.b16 %v1923, %v1919
    %v2324 = vpack.c.b16 %v1924, %v1920
    %v2325 = vpack.c.b16 %v1929, %v1925
    %v2326 = vpack.c.b16 %v1930, %v1926
    %v2327 = vpack.c.b16 %v1931, %v1927
    %v2328 = vpack.c.b16 %v1932, %v1928
    %v2329 = vpack.c.b16 %v1937, %v1933
    %v2330 = vpack.c.b16 %v1938, %v1934
    %v2331 = vpack.c.b16 %v1939, %v1935
    %v2332 = vpack.c.b16 %v1940, %v1936
    %v2333 = vpack.c.b16 %v1945, %v1941
    %v2334 = vpack.c.b16 %v1946, %v1942
    %v2335 = vpack.c.b16 %v1947, %v1943
    %v2336 = vpack.c.b16 %v1948, %v1944
    %v2337 = vpack.c.b16 %v1953, %v1949
    %v2338 = vpack.c.b16 %v1954, %v1950
    %v2339 = vpack.c.b16 %v1955, %v1951
    %v2340 = vpack.c.b16 %v1956, %v1952
    %v2341 = vpack.c.b16 %v1961, %v1957
    %v2342 = vpack.c.b16 %v1962, %v1958
    %v2343 = vpack.c.b16 %v1963, %v1959
    %v2344 = vpack.c.b16 %v1964, %v1960
    %v2345 = vpack.c.b16 %v1969, %v1965
    %v2346 = vpack.c.b16 %v1970, %v1966
    %v2347 = vpack.c.b16 %v1971, %v1967
    %v2348 = vpack.c.b16 %v1972, %v1968
    %v2349 = vpack.c.b16 %v1977, %v1973
    %v2350 = vpack.c.b16 %v1978, %v1974
    %v2351 = vpack.c.b16 %v1979, %v1975
    %v2352 = vpack.c.b16 %v1980, %v1976
    %v2353 = vpack.c.b16 %v1985, %v1981
    %v2354 = vpack.c.b16 %v1986, %v1982
    %v2355 = vpack.c.b16 %v1987, %v1983
    %v2356 = vpack.c.b16 %v1988, %v1984
    %v2357 = vpack.c.b16 %v1993, %v1989
    %v2358 = vpack.c.b16 %v1994, %v1990
    %v2359 = vpack.c.b16 %v1995, %v1991
    %v2360 = vpack.c.b16 %v1996, %v1992
    %v2361 = vpack.c.b16 %v2001, %v1997
    %v2362 = vpack.c.b16 %v2002, %v1998
    %v2363 = vpack.c.b16 %v2003, %v1999
    %v2364 = vpack.c.b16 %v2004, %v2000
    %v2365 = vpack.c.b16 %v2009, %v2005
    %v2366 = vpack.c.b16 %v2010, %v2006
    %v2367 = vpack.c.b16 %v2011, %v2007
    %v2368 = vpack.c.b16 %v2012, %v2008
    %v2369 = vpack.c.b16 %v2017, %v2013
    %v2370 = vpack.c.b16 %v2018, %v2014
    %v2371 = vpack.c.b16 %v2019, %v2015
    %v2372 = vpack.c.b16 %v2020, %v2016
    %v2373 = vpack.c.b16 %v2025, %v2021
    %v2374 = vpack.c.b16 %v2026, %v2022
    %v2375 = vpack.c.b16 %v2027, %v2023
    %v2376 = vpack.c.b16 %v2028, %v2024
    %v2377 = vpack.c.b16 %v2033, %v2029
    %v2378 = vpack.c.b16 %v2034, %v2030
    %v2379 = vpack.c.b16 %v2035, %v2031
    %v2380 = vpack.c.b16 %v2036, %v2032
    %v2381 = vpack.c.b16 %v2041, %v2037
    %v2382 = vpack.c.b16 %v2042, %v2038
    %v2383 = vpack.c.b16 %v2043, %v2039
    %v2384 = vpack.c.b16 %v2044, %v2040
    %v2385 = vpack.c.b16 %v2049, %v2045
    %v2386 = vpack.c.b16 %v2050, %v2046
    %v2387 = vpack.c.b16 %v2051, %v2047
    %v2388 = vpack.c.b16 %v2052, %v2048
    %v2389 = vpack.c.b16 %v2057, %v2053
    %v2390 = vpack.c.b16 %v2058, %v2054
    %v2391 = vpack.c.b16 %v2059, %v2055
    %v2392 = vpack.c.b16 %v2060, %v2056
    %v2393 = vpack.c.b16 %v2065, %v2061
    %v2394 = vpack.c.b16 %v2066, %v2062
    %v2395 = vpack.c.b16 %v2067, %v2063
    %v2396 = vpack.c.b16 %v2068, %v2064
    %v2397 = vpack.c.b16 %v2073, %v2069
    %v2398 = vpack.c.b16 %v2074, %v2070
    %v2399 = vpack.c.b16 %v2075, %v2071
    %v2400 = vpack.c.b16 %v2076, %v2072
    %v2401 = vpack.c.b16 %v2081, %v2077
    %v2402 = vpack.c.b16 %v2082, %v2078
    %v2403 = vpack.c.b16 %v2083, %v2079
    %v2404 = vpack.c.b16 %v2084, %v2080
    %v2405 = vpack.c.b16 %v2089, %v2085
    %v2406 = vpack.c.b16 %v2090, %v2086
    %v2407 = vpack.c.b16 %v2091, %v2087
    %v2408 = vpack.c.b16 %v2092, %v2088
    %v2409 = vpack.c.b16 %v2097, %v2093
    %v2410 = vpack.c.b16 %v2098, %v2094
    %v2411 = vpack.c.b16 %v2099, %v2095
    %v2412 = vpack.c.b16 %v2100, %v2096
    %v2413 = vpack.c.b16 %v2105, %v2101
    %v2414 = vpack.c.b16 %v2106, %v2102
    %v2415 = vpack.c.b16 %v2107, %v2103
    %v2416 = vpack.c.b16 %v2108, %v2104
    %v2417 = vpack.c.b16 %v2113, %v2109
    %v2418 = vpack.c.b16 %v2114, %v2110
    %v2419 = vpack.c.b16 %v2115, %v2111
    %v2420 = vpack.c.b16 %v2116, %v2112
    %v2421 = vpack.c.b16 %v2121, %v2117
    %v2422 = vpack.c.b16 %v2122, %v2118
    %v2423 = vpack.c.b16 %v2123, %v2119
    %v2424 = vpack.c.b16 %v2124, %v2120
    %v2425 = vpack.c.b16 %v2129, %v2125
    %v2426 = vpack.c.b16 %v2130, %v2126
    %v2427 = vpack.c.b16 %v2131, %v2127
    %v2428 = vpack.c.b16 %v2132, %v2128
    %v2429 = vpack.c.b16 %v2137, %v2133
    %v2430 = vpack.c.b16 %v2138, %v2134
    %v2431 = vpack.c.b16 %v2139, %v2135
    %v2432 = vpack.c.b16 %v2140, %v2136
    %v2433 = vpack.c.b16 %v2145, %v2141
    %v2434 = vpack.c.b16 %v2146, %v2142
    %v2435 = vpack.c.b16 %v2147, %v2143
    %v2436 = vpack.c.b16 %v2148, %v2144
    %v2437 = vpack.c.b16 %v2153, %v2149
    %v2438 = vpack.c.b16 %v2154, %v2150
    %v2439 = vpack.c.b16 %v2155, %v2151
    %v2440 = vpack.c.b16 %v2156, %v2152
    %v2441 = vpack.c.b16 %v2161, %v2157
    %v2442 = vpack.c.b16 %v2162, %v2158
    %v2443 = vpack.c.b16 %v2163, %v2159
    %v2444 = vpack.c.b16 %v2164, %v2160
    %v2445 = vpack.c.b16 %v2169, %v2165
    %v2446 = vpack.c.b16 %v2170, %v2166
    %v2447 = vpack.c.b16 %v2171, %v2167
    %v2448 = vpack.c.b16 %v2172, %v2168
    %v2449 = vpack.c.b16 %v2177, %v2173
    %v2450 = vpack.c.b16 %v2178, %v2174
    %v2451 = vpack.c.b16 %v2179, %v2175
    %v2452 = vpack.c.b16 %v2180, %v2176
    %v2453 = vpack.c.b16 %v2185, %v2181
    %v2454 = vpack.c.b16 %v2186, %v2182
    %v2455 = vpack.c.b16 %v2187, %v2183
    %v2456 = vpack.c.b16 %v2188, %v2184
    %v2457 = vpack.c.b16 %v2193, %v2189
    %v2458 = vpack.c.b16 %v2194, %v2190
    %v2459 = vpack.c.b16 %v2195, %v2191
    %v2460 = vpack.c.b16 %v2196, %v2192
    %v2461 = vpack.c.b16 %v2201, %v2197
    %v2462 = vpack.c.b16 %v2202, %v2198
    %v2463 = vpack.c.b16 %v2203, %v2199
    %v2464 = vpack.c.b16 %v2204, %v2200
    %v2465 = vpack.c.b16 %v2209, %v2205
    %v2466 = vpack.c.b16 %v2210, %v2206
    %v2467 = vpack.c.b16 %v2211, %v2207
    %v2468 = vpack.c.b16 %v2212, %v2208
    %2725 = vmatprep.subr.bf16.mxu0 %v2214
    %2726 = vmatpush1.bf16.msra.mxu0 %v2213
    %2727 = vmatprep.subr.bf16.mxu0 %v2218
    %2728 = vmatpush1.bf16.msra.mxu0 %v2217
    %2729 = vmatprep.subr.bf16.mxu0 %v2222
    %2730 = vmatpush1.bf16.msra.mxu0 %v2221
    %2731 = vmatprep.subr.bf16.mxu0 %v2226
    %2732 = vmatpush1.bf16.msra.mxu0 %v2225
    %2733 = vmatprep.subr.bf16.mxu0 %v2230
    %2734 = vmatpush1.bf16.msra.mxu0 %v2229
    %2735 = vmatprep.subr.bf16.mxu0 %v2234
    %2736 = vmatpush1.bf16.msra.mxu0 %v2233
    %2737 = vmatprep.subr.bf16.mxu0 %v2238
    %2738 = vmatpush1.bf16.msra.mxu0 %v2237
    %2739 = vmatprep.subr.bf16.mxu0 %v2242
    %2740 = vmatpush1.bf16.msra.mxu0 %v2241
    %2741 = vmatprep.subr.bf16.mxu0 %v2246
    %2742 = vmatpush1.bf16.msra.mxu0 %v2245
    %2743 = vmatprep.subr.bf16.mxu0 %v2250
    %2744 = vmatpush1.bf16.msra.mxu0 %v2249
    %2745 = vmatprep.subr.bf16.mxu0 %v2254
    %2746 = vmatpush1.bf16.msra.mxu0 %v2253
    %2747 = vmatprep.subr.bf16.mxu0 %v2258
    %2748 = vmatpush1.bf16.msra.mxu0 %v2257
    %2749 = vmatprep.subr.bf16.mxu0 %v2262
    %2750 = vmatpush1.bf16.msra.mxu0 %v2261
    %2751 = vmatprep.subr.bf16.mxu0 %v2266
    %2752 = vmatpush1.bf16.msra.mxu0 %v2265
    %2753 = vmatprep.subr.bf16.mxu0 %v2270
    %2754 = vmatpush1.bf16.msra.mxu0 %v2269
    %2755 = vmatprep.subr.bf16.mxu0 %v2274
    %2756 = vmatpush1.bf16.msra.mxu0 %v2273
    %2757 = vmatprep.mubr.bf16.mxu0 %v1160
    %2758 = vmatmul.mubr.bf16.gmra.mrb[0].mxu0 %v1159
    %v2759 = vpop.f32.mrb[0].mxu0
    %v2760 = vadd.f32 %v1428, %v2759
    %v2761 = vpop.f32.mrb[0].mxu0
    %v2762 = vadd.f32 %v1432, %v2761
    %v2763 = vpop.f32.mrb[0].mxu0
    %v2764 = vadd.f32 %v1428, %v2763
    %v2765 = vpop.f32.mrb[0].mxu0
    %v2766 = vadd.f32 %v1432, %v2765
    %2767 = vdwg.mxu0
    %2768 = vmatprep.subr.bf16.mxu0 %v2278
    %2769 = vmatpush1.bf16.msra.mxu0 %v2277
    %2770 = vmatprep.subr.bf16.mxu0 %v2282
    %2771 = vmatpush1.bf16.msra.mxu0 %v2281
    %2772 = vmatprep.subr.bf16.mxu0 %v2286
    %2773 = vmatpush1.bf16.msra.mxu0 %v2285
    %2774 = vmatprep.subr.bf16.mxu0 %v2290
    %2775 = vmatpush1.bf16.msra.mxu0 %v2289
    %2776 = vmatprep.subr.bf16.mxu0 %v2294
    %2777 = vmatpush1.bf16.msra.mxu0 %v2293
    %2778 = vmatprep.subr.bf16.mxu0 %v2298
    %2779 = vmatpush1.bf16.msra.mxu0 %v2297
    %2780 = vmatprep.subr.bf16.mxu0 %v2302
    %2781 = vmatpush1.bf16.msra.mxu0 %v2301
    %2782 = vmatprep.subr.bf16.mxu0 %v2306
    %2783 = vmatpush1.bf16.msra.mxu0 %v2305
    %2784 = vmatprep.subr.bf16.mxu0 %v2310
    %2785 = vmatpush1.bf16.msra.mxu0 %v2309
    %2786 = vmatprep.subr.bf16.mxu0 %v2314
    %2787 = vmatpush1.bf16.msra.mxu0 %v2313
    %2788 = vmatprep.subr.bf16.mxu0 %v2318
    %2789 = vmatpush1.bf16.msra.mxu0 %v2317
    %2790 = vmatprep.subr.bf16.mxu0 %v2322
    %2791 = vmatpush1.bf16.msra.mxu0 %v2321
    %2792 = vmatprep.subr.bf16.mxu0 %v2326
    %2793 = vmatpush1.bf16.msra.mxu0 %v2325
    %2794 = vmatprep.subr.bf16.mxu0 %v2330
    %2795 = vmatpush1.bf16.msra.mxu0 %v2329
    %2796 = vmatprep.subr.bf16.mxu0 %v2334
    %2797 = vmatpush1.bf16.msra.mxu0 %v2333
    %2798 = vmatprep.subr.bf16.mxu0 %v2338
    %2799 = vmatpush1.bf16.msra.mxu0 %v2337
    %2800 = vmatprep.mubr.bf16.mxu0 %v1162
    %2801 = vmatmul.mubr.bf16.gmra.mrb[0].mxu0 %v1161
    %v2802 = vpop.f32.mrb[0].mxu0
    %v2803 = vadd.f32 %v2760, %v2802
    %v2804 = vpop.f32.mrb[0].mxu0
    %v2805 = vadd.f32 %v2762, %v2804
    %v2806 = vpop.f32.mrb[0].mxu0
    %v2807 = vadd.f32 %v2764, %v2806
    %v2808 = vpop.f32.mrb[0].mxu0
    %v2809 = vadd.f32 %v2766, %v2808
    %2810 = vdwg.mxu0
    %2811 = vmatprep.subr.bf16.mxu0 %v2342
    %2812 = vmatpush1.bf16.msra.mxu0 %v2341
    %2813 = vmatprep.subr.bf16.mxu0 %v2346
    %2814 = vmatpush1.bf16.msra.mxu0 %v2345
    %2815 = vmatprep.subr.bf16.mxu0 %v2350
    %2816 = vmatpush1.bf16.msra.mxu0 %v2349
    %2817 = vmatprep.subr.bf16.mxu0 %v2354
    %2818 = vmatpush1.bf16.msra.mxu0 %v2353
    %2819 = vmatprep.subr.bf16.mxu0 %v2358
    %2820 = vmatpush1.bf16.msra.mxu0 %v2357
    %2821 = vmatprep.subr.bf16.mxu0 %v2362
    %2822 = vmatpush1.bf16.msra.mxu0 %v2361
    %2823 = vmatprep.subr.bf16.mxu0 %v2366
    %2824 = vmatpush1.bf16.msra.mxu0 %v2365
    %2825 = vmatprep.subr.bf16.mxu0 %v2370
    %2826 = vmatpush1.bf16.msra.mxu0 %v2369
    %2827 = vmatprep.subr.bf16.mxu0 %v2374
    %2828 = vmatpush1.bf16.msra.mxu0 %v2373
    %2829 = vmatprep.subr.bf16.mxu0 %v2378
    %2830 = vmatpush1.bf16.msra.mxu0 %v2377
    %2831 = vmatprep.subr.bf16.mxu0 %v2382
    %2832 = vmatpush1.bf16.msra.mxu0 %v2381
    %2833 = vmatprep.subr.bf16.mxu0 %v2386
    %2834 = vmatpush1.bf16.msra.mxu0 %v2385
    %2835 = vmatprep.subr.bf16.mxu0 %v2390
    %2836 = vmatpush1.bf16.msra.mxu0 %v2389
    %2837 = vmatprep.subr.bf16.mxu0 %v2394
    %2838 = vmatpush1.bf16.msra.mxu0 %v2393
    %2839 = vmatprep.subr.bf16.mxu0 %v2398
    %2840 = vmatpush1.bf16.msra.mxu0 %v2397
    %2841 = vmatprep.subr.bf16.mxu0 %v2402
    %2842 = vmatpush1.bf16.msra.mxu0 %v2401
    %2843 = vmatprep.mubr.bf16.mxu0 %v1164
    %2844 = vmatmul.mubr.bf16.gmra.mrb[0].mxu0 %v1163
    %v2845 = vpop.f32.mrb[0].mxu0
    %v2846 = vadd.f32 %v2803, %v2845
    %v2847 = vpop.f32.mrb[0].mxu0
    %v2848 = vadd.f32 %v2805, %v2847
    %v2849 = vpop.f32.mrb[0].mxu0
    %v2850 = vadd.f32 %v2807, %v2849
    %v2851 = vpop.f32.mrb[0].mxu0
    %v2852 = vadd.f32 %v2809, %v2851
    %2853 = vdwg.mxu0
    %2854 = vmatprep.subr.bf16.mxu0 %v2406
    %2855 = vmatpush1.bf16.msra.mxu0 %v2405
    %2856 = vmatprep.subr.bf16.mxu0 %v2410
    %2857 = vmatpush1.bf16.msra.mxu0 %v2409
    %2858 = vmatprep.subr.bf16.mxu0 %v2414
    %2859 = vmatpush1.bf16.msra.mxu0 %v2413
    %2860 = vmatprep.subr.bf16.mxu0 %v2418
    %2861 = vmatpush1.bf16.msra.mxu0 %v2417
    %2862 = vmatprep.subr.bf16.mxu0 %v2422
    %2863 = vmatpush1.bf16.msra.mxu0 %v2421
    %2864 = vmatprep.subr.bf16.mxu0 %v2426
    %2865 = vmatpush1.bf16.msra.mxu0 %v2425
    %2866 = vmatprep.subr.bf16.mxu0 %v2430
    %2867 = vmatpush1.bf16.msra.mxu0 %v2429
    %2868 = vmatprep.subr.bf16.mxu0 %v2434
    %2869 = vmatpush1.bf16.msra.mxu0 %v2433
    %2870 = vmatprep.subr.bf16.mxu0 %v2438
    %2871 = vmatpush1.bf16.msra.mxu0 %v2437
    %2872 = vmatprep.subr.bf16.mxu0 %v2442
    %2873 = vmatpush1.bf16.msra.mxu0 %v2441
    %2874 = vmatprep.subr.bf16.mxu0 %v2446
    %2875 = vmatpush1.bf16.msra.mxu0 %v2445
    %2876 = vmatprep.subr.bf16.mxu0 %v2450
    %2877 = vmatpush1.bf16.msra.mxu0 %v2449
    %2878 = vmatprep.subr.bf16.mxu0 %v2454
    %2879 = vmatpush1.bf16.msra.mxu0 %v2453
    %2880 = vmatprep.subr.bf16.mxu0 %v2458
    %2881 = vmatpush1.bf16.msra.mxu0 %v2457
    %2882 = vmatprep.subr.bf16.mxu0 %v2462
    %2883 = vmatpush1.bf16.msra.mxu0 %v2461
    %2884 = vmatprep.subr.bf16.mxu0 %v2466
    %2885 = vmatpush1.bf16.msra.mxu0 %v2465
    %2886 = vmatprep.mubr.bf16.mxu0 %v1166
    %2887 = vmatmul.mubr.bf16.gmra.mrb[0].mxu0 %v1165
    %v2888 = vpop.f32.mrb[0].mxu0
    %v2889 = vadd.f32 %v2846, %v2888
    %v2890 = vpop.f32.mrb[0].mxu0
    %v2891 = vadd.f32 %v2848, %v2890
    %v2892 = vpop.f32.mrb[0].mxu0
    %v2893 = vadd.f32 %v2850, %v2892
    %v2894 = vpop.f32.mrb[0].mxu0
    %v2895 = vadd.f32 %v2852, %v2894
    %2896 = vdwg.mxu0
    %2897 = vmatprep.subr.bf16.mxu0 %v2216
    %2898 = vmatpush1.bf16.msra.mxu0 %v2215
    %2899 = vmatprep.subr.bf16.mxu0 %v2220
    %2900 = vmatpush1.bf16.msra.mxu0 %v2219
    %2901 = vmatprep.subr.bf16.mxu0 %v2224
    %2902 = vmatpush1.bf16.msra.mxu0 %v2223
    %2903 = vmatprep.subr.bf16.mxu0 %v2228
    %2904 = vmatpush1.bf16.msra.mxu0 %v2227
    %2905 = vmatprep.subr.bf16.mxu0 %v2232
    %2906 = vmatpush1.bf16.msra.mxu0 %v2231
    %2907 = vmatprep.subr.bf16.mxu0 %v2236
    %2908 = vmatpush1.bf16.msra.mxu0 %v2235
    %2909 = vmatprep.subr.bf16.mxu0 %v2240
    %2910 = vmatpush1.bf16.msra.mxu0 %v2239
    %2911 = vmatprep.subr.bf16.mxu0 %v2244
    %2912 = vmatpush1.bf16.msra.mxu0 %v2243
    %2913 = vmatprep.subr.bf16.mxu0 %v2248
    %2914 = vmatpush1.bf16.msra.mxu0 %v2247
    %2915 = vmatprep.subr.bf16.mxu0 %v2252
    %2916 = vmatpush1.bf16.msra.mxu0 %v2251
    %2917 = vmatprep.subr.bf16.mxu0 %v2256
    %2918 = vmatpush1.bf16.msra.mxu0 %v2255
    %2919 = vmatprep.subr.bf16.mxu0 %v2260
    %2920 = vmatpush1.bf16.msra.mxu0 %v2259
    %2921 = vmatprep.subr.bf16.mxu0 %v2264
    %2922 = vmatpush1.bf16.msra.mxu0 %v2263
    %2923 = vmatprep.subr.bf16.mxu0 %v2268
    %2924 = vmatpush1.bf16.msra.mxu0 %v2267
    %2925 = vmatprep.subr.bf16.mxu0 %v2272
    %2926 = vmatpush1.bf16.msra.mxu0 %v2271
    %2927 = vmatprep.subr.bf16.mxu0 %v2276
    %2928 = vmatpush1.bf16.msra.mxu0 %v2275
    %2929 = vmatprep.mubr.bf16.mxu0 %v1160
    %2930 = vmatmul.mubr.bf16.gmra.mrb[0].mxu0 %v1159
    %v2931 = vpop.f32.mrb[0].mxu0
    %v2932 = vadd.f32 %v1436, %v2931
    %v2933 = vpop.f32.mrb[0].mxu0
    %v2934 = vadd.f32 %v1440, %v2933
    %v2935 = vpop.f32.mrb[0].mxu0
    %v2936 = vadd.f32 %v1436, %v2935
    %v2937 = vpop.f32.mrb[0].mxu0
    %v2938 = vadd.f32 %v1440, %v2937
    %2939 = vdwg.mxu0
    %2940 = vmatprep.subr.bf16.mxu0 %v2280
    %2941 = vmatpush1.bf16.msra.mxu0 %v2279
    %2942 = vmatprep.subr.bf16.mxu0 %v2284
    %2943 = vmatpush1.bf16.msra.mxu0 %v2283
    %2944 = vmatprep.subr.bf16.mxu0 %v2288
    %2945 = vmatpush1.bf16.msra.mxu0 %v2287
    %2946 = vmatprep.subr.bf16.mxu0 %v2292
    %2947 = vmatpush1.bf16.msra.mxu0 %v2291
    %2948 = vmatprep.subr.bf16.mxu0 %v2296
    %2949 = vmatpush1.bf16.msra.mxu0 %v2295
    %2950 = vmatprep.subr.bf16.mxu0 %v2300
    %2951 = vmatpush1.bf16.msra.mxu0 %v2299
    %2952 = vmatprep.subr.bf16.mxu0 %v2304
    %2953 = vmatpush1.bf16.msra.mxu0 %v2303
    %2954 = vmatprep.subr.bf16.mxu0 %v2308
    %2955 = vmatpush1.bf16.msra.mxu0 %v2307
    %2956 = vmatprep.subr.bf16.mxu0 %v2312
    %2957 = vmatpush1.bf16.msra.mxu0 %v2311
    %2958 = vmatprep.subr.bf16.mxu0 %v2316
    %2959 = vmatpush1.bf16.msra.mxu0 %v2315
    %2960 = vmatprep.subr.bf16.mxu0 %v2320
    %2961 = vmatpush1.bf16.msra.mxu0 %v2319
    %2962 = vmatprep.subr.bf16.mxu0 %v2324
    %2963 = vmatpush1.bf16.msra.mxu0 %v2323
    %2964 = vmatprep.subr.bf16.mxu0 %v2328
    %2965 = vmatpush1.bf16.msra.mxu0 %v2327
    %2966 = vmatprep.subr.bf16.mxu0 %v2332
    %2967 = vmatpush1.bf16.msra.mxu0 %v2331
    %2968 = vmatprep.subr.bf16.mxu0 %v2336
    %2969 = vmatpush1.bf16.msra.mxu0 %v2335
    %2970 = vmatprep.subr.bf16.mxu0 %v2340
    %2971 = vmatpush1.bf16.msra.mxu0 %v2339
    %2972 = vmatprep.mubr.bf16.mxu0 %v1162
    %2973 = vmatmul.mubr.bf16.gmra.mrb[0].mxu0 %v1161
    %v2974 = vpop.f32.mrb[0].mxu0
    %v2975 = vadd.f32 %v2932, %v2974
    %v2976 = vpop.f32.mrb[0].mxu0
    %v2977 = vadd.f32 %v2934, %v2976
    %v2978 = vpop.f32.mrb[0].mxu0
    %v2979 = vadd.f32 %v2936, %v2978
    %v2980 = vpop.f32.mrb[0].mxu0
    %v2981 = vadd.f32 %v2938, %v2980
    %2982 = vdwg.mxu0
    %2983 = vmatprep.subr.bf16.mxu0 %v2344
    %2984 = vmatpush1.bf16.msra.mxu0 %v2343
    %2985 = vmatprep.subr.bf16.mxu0 %v2348
    %2986 = vmatpush1.bf16.msra.mxu0 %v2347
    %2987 = vmatprep.subr.bf16.mxu0 %v2352
    %2988 = vmatpush1.bf16.msra.mxu0 %v2351
    %2989 = vmatprep.subr.bf16.mxu0 %v2356
    %2990 = vmatpush1.bf16.msra.mxu0 %v2355
    %2991 = vmatprep.subr.bf16.mxu0 %v2360
    %2992 = vmatpush1.bf16.msra.mxu0 %v2359
    %2993 = vmatprep.subr.bf16.mxu0 %v2364
    %2994 = vmatpush1.bf16.msra.mxu0 %v2363
    %2995 = vmatprep.subr.bf16.mxu0 %v2368
    %2996 = vmatpush1.bf16.msra.mxu0 %v2367
    %2997 = vmatprep.subr.bf16.mxu0 %v2372
    %2998 = vmatpush1.bf16.msra.mxu0 %v2371
    %2999 = vmatprep.subr.bf16.mxu0 %v2376
    %3000 = vmatpush1.bf16.msra.mxu0 %v2375
    %3001 = vmatprep.subr.bf16.mxu0 %v2380
    %3002 = vmatpush1.bf16.msra.mxu0 %v2379
    %3003 = vmatprep.subr.bf16.mxu0 %v2384
    %3004 = vmatpush1.bf16.msra.mxu0 %v2383
    %3005 = vmatprep.subr.bf16.mxu0 %v2388
    %3006 = vmatpush1.bf16.msra.mxu0 %v2387
    %3007 = vmatprep.subr.bf16.mxu0 %v2392
    %3008 = vmatpush1.bf16.msra.mxu0 %v2391
    %3009 = vmatprep.subr.bf16.mxu0 %v2396
    %3010 = vmatpush1.bf16.msra.mxu0 %v2395
    %3011 = vmatprep.subr.bf16.mxu0 %v2400
    %3012 = vmatpush1.bf16.msra.mxu0 %v2399
    %3013 = vmatprep.subr.bf16.mxu0 %v2404
    %3014 = vmatpush1.bf16.msra.mxu0 %v2403
    %3015 = vmatprep.mubr.bf16.mxu0 %v1164
    %3016 = vmatmul.mubr.bf16.gmra.mrb[0].mxu0 %v1163
    %v3017 = vpop.f32.mrb[0].mxu0
    %v3018 = vadd.f32 %v2975, %v3017
    %v3019 = vpop.f32.mrb[0].mxu0
    %v3020 = vadd.f32 %v2977, %v3019
    %v3021 = vpop.f32.mrb[0].mxu0
    %v3022 = vadd.f32 %v2979, %v3021
    %v3023 = vpop.f32.mrb[0].mxu0
    %v3024 = vadd.f32 %v2981, %v3023
    %3025 = vdwg.mxu0
    %3026 = vmatprep.subr.bf16.mxu0 %v2408
    %3027 = vmatpush1.bf16.msra.mxu0 %v2407
    %3028 = vmatprep.subr.bf16.mxu0 %v2412
    %3029 = vmatpush1.bf16.msra.mxu0 %v2411
    %3030 = vmatprep.subr.bf16.mxu0 %v2416
    %3031 = vmatpush1.bf16.msra.mxu0 %v2415
    %3032 = vmatprep.subr.bf16.mxu0 %v2420
    %3033 = vmatpush1.bf16.msra.mxu0 %v2419
    %3034 = vmatprep.subr.bf16.mxu0 %v2424
    %3035 = vmatpush1.bf16.msra.mxu0 %v2423
    %3036 = vmatprep.subr.bf16.mxu0 %v2428
    %3037 = vmatpush1.bf16.msra.mxu0 %v2427
    %3038 = vmatprep.subr.bf16.mxu0 %v2432
    %3039 = vmatpush1.bf16.msra.mxu0 %v2431
    %3040 = vmatprep.subr.bf16.mxu0 %v2436
    %3041 = vmatpush1.bf16.msra.mxu0 %v2435
    %3042 = vmatprep.subr.bf16.mxu0 %v2440
    %3043 = vmatpush1.bf16.msra.mxu0 %v2439
    %3044 = vmatprep.subr.bf16.mxu0 %v2444
    %3045 = vmatpush1.bf16.msra.mxu0 %v2443
    %3046 = vmatprep.subr.bf16.mxu0 %v2448
    %3047 = vmatpush1.bf16.msra.mxu0 %v2447
    %3048 = vmatprep.subr.bf16.mxu0 %v2452
    %3049 = vmatpush1.bf16.msra.mxu0 %v2451
    %3050 = vmatprep.subr.bf16.mxu0 %v2456
    %3051 = vmatpush1.bf16.msra.mxu0 %v2455
    %3052 = vmatprep.subr.bf16.mxu0 %v2460
    %3053 = vmatpush1.bf16.msra.mxu0 %v2459
    %3054 = vmatprep.subr.bf16.mxu0 %v2464
    %3055 = vmatpush1.bf16.msra.mxu0 %v2463
    %3056 = vmatprep.subr.bf16.mxu0 %v2468
    %3057 = vmatpush1.bf16.msra.mxu0 %v2467
    %3058 = vmatprep.mubr.bf16.mxu0 %v1166
    %3059 = vmatmul.mubr.bf16.gmra.mrb[0].mxu0 %v1165
    %v3060 = vpop.f32.mrb[0].mxu0
    %v3061 = vadd.f32 %v3018, %v3060
    %v3062 = vpop.f32.mrb[0].mxu0
    %v3063 = vadd.f32 %v3020, %v3062
    %v3064 = vpop.f32.mrb[0].mxu0
    %v3065 = vadd.f32 %v3022, %v3064
    %v3066 = vpop.f32.mrb[0].mxu0
    %v3067 = vadd.f32 %v3024, %v3066
    %3068 = vdwg.mxu0
    %v3069 = vmul.f32 %v2889, 0.01
    %v3070 = vmul.f32 %v2891, 0.01
    %v3071 = vmul.f32 %v3061, 0.01
    %v3072 = vmul.f32 %v3063, 0.01
    %v3073 = vmul.f32 %v2893, 0.01
    %v3074 = vmul.f32 %v2895, 0.01
    %v3075 = vmul.f32 %v3065, 0.01
    %v3076 = vmul.f32 %v3067, 0.01
    %v3077 = vmax.f32 %v2889, %v3069
    %v3078 = vmax.f32 %v2891, %v3070
    %v3079 = vmax.f32 %v3061, %v3071
    %v3080 = vmax.f32 %v3063, %v3072
    %v3081 = vmax.f32 %v2893, %v3073
    %v3082 = vmax.f32 %v2895, %v3074
    %v3083 = vmax.f32 %v3065, %v3075
    %v3084 = vmax.f32 %v3067, %v3076
    %v3085 = vpack.c.bf16 %v3081, %v3077
    %v3086 = vpack.c.bf16 %v3082, %v3078
    %v3087 = vpack.c.bf16 %v3083, %v3079
    %v3088 = vpack.c.bf16 %v3084, %v3080
    %v3089 = vld [vmem:[#allocation10] sm:$0xff]
    %v3090 = vld [vmem:[#allocation10 + $0x8] sm:$0xff]
    %v3091 = vld [vmem:[#allocation10 + $0x10] sm:$0xff]
    %v3092 = vld [vmem:[#allocation10 + $0x18] sm:$0xff]
    %v3093 = vld [vmem:[#allocation10 + $0x20] sm:$0xff]
    %v3094 = vld [vmem:[#allocation10 + $0x28] sm:$0xff]
    %v3095 = vld [vmem:[#allocation10 + $0x30] sm:$0xff]
    %v3096 = vld [vmem:[#allocation10 + $0x38] sm:$0xff]
    %v3097 = vld [vmem:[#allocation10 + $0x40] sm:$0xff]
    %v3098 = vld [vmem:[#allocation10 + $0x48] sm:$0xff]
    %v3099 = vld [vmem:[#allocation10 + $0x50] sm:$0xff]
    %v3100 = vld [vmem:[#allocation10 + $0x58] sm:$0xff]
    %v3101 = vld [vmem:[#allocation10 + $0x60] sm:$0xff]
    %v3102 = vld [vmem:[#allocation10 + $0x68] sm:$0xff]
    %v3103 = vld [vmem:[#allocation10 + $0x70] sm:$0xff]
    %v3104 = vld [vmem:[#allocation10 + $0x78] sm:$0xff]
    %v3105 = vld [vmem:[#allocation10 + $0x80] sm:$0xff]
    %v3106 = vld [vmem:[#allocation10 + $0x88] sm:$0xff]
    %v3107 = vld [vmem:[#allocation10 + $0x90] sm:$0xff]
    %v3108 = vld [vmem:[#allocation10 + $0x98] sm:$0xff]
    %v3109 = vld [vmem:[#allocation10 + $0xa0] sm:$0xff]
    %v3110 = vld [vmem:[#allocation10 + $0xa8] sm:$0xff]
    %v3111 = vld [vmem:[#allocation10 + $0xb0] sm:$0xff]
    %v3112 = vld [vmem:[#allocation10 + $0xb8] sm:$0xff]
    %v3113 = vld [vmem:[#allocation10 + $0xc0] sm:$0xff]
    %v3114 = vld [vmem:[#allocation10 + $0xc8] sm:$0xff]
    %v3115 = vld [vmem:[#allocation10 + $0xd0] sm:$0xff]
    %v3116 = vld [vmem:[#allocation10 + $0xd8] sm:$0xff]
    %v3117 = vld [vmem:[#allocation10 + $0xe0] sm:$0xff]
    %v3118 = vld [vmem:[#allocation10 + $0xe8] sm:$0xff]
    %v3119 = vld [vmem:[#allocation10 + $0xf0] sm:$0xff]
    %v3120 = vld [vmem:[#allocation10 + $0xf8] sm:$0xff]
    %v3121 = vld [vmem:[#allocation10 + $0x100] sm:$0xff]
    %v3122 = vld [vmem:[#allocation10 + $0x108] sm:$0xff]
    %v3123 = vld [vmem:[#allocation10 + $0x110] sm:$0xff]
    %v3124 = vld [vmem:[#allocation10 + $0x118] sm:$0xff]
    %v3125 = vld [vmem:[#allocation10 + $0x120] sm:$0xff]
    %v3126 = vld [vmem:[#allocation10 + $0x128] sm:$0xff]
    %v3127 = vld [vmem:[#allocation10 + $0x130] sm:$0xff]
    %v3128 = vld [vmem:[#allocation10 + $0x138] sm:$0xff]
    %v3129 = vld [vmem:[#allocation10 + $0x140] sm:$0xff]
    %v3130 = vld [vmem:[#allocation10 + $0x148] sm:$0xff]
    %v3131 = vld [vmem:[#allocation10 + $0x150] sm:$0xff]
    %v3132 = vld [vmem:[#allocation10 + $0x158] sm:$0xff]
    %v3133 = vld [vmem:[#allocation10 + $0x160] sm:$0xff]
    %v3134 = vld [vmem:[#allocation10 + $0x168] sm:$0xff]
    %v3135 = vld [vmem:[#allocation10 + $0x170] sm:$0xff]
    %v3136 = vld [vmem:[#allocation10 + $0x178] sm:$0xff]
    %v3137 = vld [vmem:[#allocation10 + $0x180] sm:$0xff]
    %v3138 = vld [vmem:[#allocation10 + $0x188] sm:$0xff]
    %v3139 = vld [vmem:[#allocation10 + $0x190] sm:$0xff]
    %v3140 = vld [vmem:[#allocation10 + $0x198] sm:$0xff]
    %v3141 = vld [vmem:[#allocation10 + $0x1a0] sm:$0xff]
    %v3142 = vld [vmem:[#allocation10 + $0x1a8] sm:$0xff]
    %v3143 = vld [vmem:[#allocation10 + $0x1b0] sm:$0xff]
    %v3144 = vld [vmem:[#allocation10 + $0x1b8] sm:$0xff]
    %v3145 = vld [vmem:[#allocation10 + $0x1c0] sm:$0xff]
    %v3146 = vld [vmem:[#allocation10 + $0x1c8] sm:$0xff]
    %v3147 = vld [vmem:[#allocation10 + $0x1d0] sm:$0xff]
    %v3148 = vld [vmem:[#allocation10 + $0x1d8] sm:$0xff]
    %v3149 = vld [vmem:[#allocation10 + $0x1e0] sm:$0xff]
    %v3150 = vld [vmem:[#allocation10 + $0x1e8] sm:$0xff]
    %v3151 = vld [vmem:[#allocation10 + $0x1f0] sm:$0xff]
    %v3152 = vld [vmem:[#allocation10 + $0x1f8] sm:$0xff]
    %v3153 = vld [vmem:[%s6] sm:$0x3]
    %v3155 = vlaneseq
    %v3156 = vshrl.u32 %v3155, 7
    %v3157 = vsub.s32 0, %v3156
    %v3158 = vrot.slane %v3153, %v3157
    %v3159 = vlaneseq
    %v3160 = vshrl.u32 %v3159, 7
    %v3161 = vsub.s32 1, %v3160
    %v3162 = vrot.slane %v3153, %v3161
    %v3229 = vunpack.c.l.b16 %v3089
    %v3230 = vunpack.c.h.b16 %v3089
    %v3231 = vunpack.c.l.b16 %v3090
    %v3232 = vunpack.c.h.b16 %v3090
    %v3233 = vunpack.c.l.b16 %v3091
    %v3234 = vunpack.c.h.b16 %v3091
    %v3235 = vunpack.c.l.b16 %v3092
    %v3236 = vunpack.c.h.b16 %v3092
    %v3237 = vunpack.c.l.b16 %v3093
    %v3238 = vunpack.c.h.b16 %v3093
    %v3239 = vunpack.c.l.b16 %v3094
    %v3240 = vunpack.c.h.b16 %v3094
    %v3241 = vunpack.c.l.b16 %v3095
    %v3242 = vunpack.c.h.b16 %v3095
    %v3243 = vunpack.c.l.b16 %v3096
    %v3244 = vunpack.c.h.b16 %v3096
    %v3245 = vunpack.c.l.b16 %v3097
    %v3246 = vunpack.c.h.b16 %v3097
    %v3247 = vunpack.c.l.b16 %v3098
    %v3248 = vunpack.c.h.b16 %v3098
    %v3249 = vunpack.c.l.b16 %v3099
    %v3250 = vunpack.c.h.b16 %v3099
    %v3251 = vunpack.c.l.b16 %v3100
    %v3252 = vunpack.c.h.b16 %v3100
    %v3253 = vunpack.c.l.b16 %v3101
    %v3254 = vunpack.c.h.b16 %v3101
    %v3255 = vunpack.c.l.b16 %v3102
    %v3256 = vunpack.c.h.b16 %v3102
    %v3257 = vunpack.c.l.b16 %v3103
    %v3258 = vunpack.c.h.b16 %v3103
    %v3259 = vunpack.c.l.b16 %v3104
    %v3260 = vunpack.c.h.b16 %v3104
    %v3261 = vunpack.c.l.b16 %v3105
    %v3262 = vunpack.c.h.b16 %v3105
    %v3263 = vunpack.c.l.b16 %v3106
    %v3264 = vunpack.c.h.b16 %v3106
    %v3265 = vunpack.c.l.b16 %v3107
    %v3266 = vunpack.c.h.b16 %v3107
    %v3267 = vunpack.c.l.b16 %v3108
    %v3268 = vunpack.c.h.b16 %v3108
    %v3269 = vunpack.c.l.b16 %v3109
    %v3270 = vunpack.c.h.b16 %v3109
    %v3271 = vunpack.c.l.b16 %v3110
    %v3272 = vunpack.c.h.b16 %v3110
    %v3273 = vunpack.c.l.b16 %v3111
    %v3274 = vunpack.c.h.b16 %v3111
    %v3275 = vunpack.c.l.b16 %v3112
    %v3276 = vunpack.c.h.b16 %v3112
    %v3277 = vunpack.c.l.b16 %v3113
    %v3278 = vunpack.c.h.b16 %v3113
    %v3279 = vunpack.c.l.b16 %v3114
    %v3280 = vunpack.c.h.b16 %v3114
    %v3281 = vunpack.c.l.b16 %v3115
    %v3282 = vunpack.c.h.b16 %v3115
    %v3283 = vunpack.c.l.b16 %v3116
    %v3284 = vunpack.c.h.b16 %v3116
    %v3285 = vunpack.c.l.b16 %v3117
    %v3286 = vunpack.c.h.b16 %v3117
    %v3287 = vunpack.c.l.b16 %v3118
    %v3288 = vunpack.c.h.b16 %v3118
    %v3289 = vunpack.c.l.b16 %v3119
    %v3290 = vunpack.c.h.b16 %v3119
    %v3291 = vunpack.c.l.b16 %v3120
    %v3292 = vunpack.c.h.b16 %v3120
    %v3293 = vunpack.c.l.b16 %v3121
    %v3294 = vunpack.c.h.b16 %v3121
    %v3295 = vunpack.c.l.b16 %v3122
    %v3296 = vunpack.c.h.b16 %v3122
    %v3297 = vunpack.c.l.b16 %v3123
    %v3298 = vunpack.c.h.b16 %v3123
    %v3299 = vunpack.c.l.b16 %v3124
    %v3300 = vunpack.c.h.b16 %v3124
    %v3301 = vunpack.c.l.b16 %v3125
    %v3302 = vunpack.c.h.b16 %v3125
    %v3303 = vunpack.c.l.b16 %v3126
    %v3304 = vunpack.c.h.b16 %v3126
    %v3305 = vunpack.c.l.b16 %v3127
    %v3306 = vunpack.c.h.b16 %v3127
    %v3307 = vunpack.c.l.b16 %v3128
    %v3308 = vunpack.c.h.b16 %v3128
    %v3309 = vunpack.c.l.b16 %v3129
    %v3310 = vunpack.c.h.b16 %v3129
    %v3311 = vunpack.c.l.b16 %v3130
    %v3312 = vunpack.c.h.b16 %v3130
    %v3313 = vunpack.c.l.b16 %v3131
    %v3314 = vunpack.c.h.b16 %v3131
    %v3315 = vunpack.c.l.b16 %v3132
    %v3316 = vunpack.c.h.b16 %v3132
    %v3317 = vunpack.c.l.b16 %v3133
    %v3318 = vunpack.c.h.b16 %v3133
    %v3319 = vunpack.c.l.b16 %v3134
    %v3320 = vunpack.c.h.b16 %v3134
    %v3321 = vunpack.c.l.b16 %v3135
    %v3322 = vunpack.c.h.b16 %v3135
    %v3323 = vunpack.c.l.b16 %v3136
    %v3324 = vunpack.c.h.b16 %v3136
    %v3325 = vunpack.c.l.b16 %v3137
    %v3326 = vunpack.c.h.b16 %v3137
    %v3327 = vunpack.c.l.b16 %v3138
    %v3328 = vunpack.c.h.b16 %v3138
    %v3329 = vunpack.c.l.b16 %v3139
    %v3330 = vunpack.c.h.b16 %v3139
    %v3331 = vunpack.c.l.b16 %v3140
    %v3332 = vunpack.c.h.b16 %v3140
    %v3333 = vunpack.c.l.b16 %v3141
    %v3334 = vunpack.c.h.b16 %v3141
    %v3335 = vunpack.c.l.b16 %v3142
    %v3336 = vunpack.c.h.b16 %v3142
    %v3337 = vunpack.c.l.b16 %v3143
    %v3338 = vunpack.c.h.b16 %v3143
    %v3339 = vunpack.c.l.b16 %v3144
    %v3340 = vunpack.c.h.b16 %v3144
    %v3341 = vunpack.c.l.b16 %v3145
    %v3342 = vunpack.c.h.b16 %v3145
    %v3343 = vunpack.c.l.b16 %v3146
    %v3344 = vunpack.c.h.b16 %v3146
    %v3345 = vunpack.c.l.b16 %v3147
    %v3346 = vunpack.c.h.b16 %v3147
    %v3347 = vunpack.c.l.b16 %v3148
    %v3348 = vunpack.c.h.b16 %v3148
    %v3349 = vunpack.c.l.b16 %v3149
    %v3350 = vunpack.c.h.b16 %v3149
    %v3351 = vunpack.c.l.b16 %v3150
    %v3352 = vunpack.c.h.b16 %v3150
    %v3353 = vunpack.c.l.b16 %v3151
    %v3354 = vunpack.c.h.b16 %v3151
    %v3355 = vunpack.c.l.b16 %v3152
    %v3356 = vunpack.c.h.b16 %v3152
    %v3357 = vpack.c.b16 %v3231, %v3229
    %v3358 = vpack.c.b16 %v3232, %v3230
    %v3359 = vpack.c.b16 %v3235, %v3233
    %v3360 = vpack.c.b16 %v3236, %v3234
    %v3361 = vpack.c.b16 %v3239, %v3237
    %v3362 = vpack.c.b16 %v3240, %v3238
    %v3363 = vpack.c.b16 %v3243, %v3241
    %v3364 = vpack.c.b16 %v3244, %v3242
    %v3365 = vpack.c.b16 %v3247, %v3245
    %v3366 = vpack.c.b16 %v3248, %v3246
    %v3367 = vpack.c.b16 %v3251, %v3249
    %v3368 = vpack.c.b16 %v3252, %v3250
    %v3369 = vpack.c.b16 %v3255, %v3253
    %v3370 = vpack.c.b16 %v3256, %v3254
    %v3371 = vpack.c.b16 %v3259, %v3257
    %v3372 = vpack.c.b16 %v3260, %v3258
    %v3373 = vpack.c.b16 %v3263, %v3261
    %v3374 = vpack.c.b16 %v3264, %v3262
    %v3375 = vpack.c.b16 %v3267, %v3265
    %v3376 = vpack.c.b16 %v3268, %v3266
    %v3377 = vpack.c.b16 %v3271, %v3269
    %v3378 = vpack.c.b16 %v3272, %v3270
    %v3379 = vpack.c.b16 %v3275, %v3273
    %v3380 = vpack.c.b16 %v3276, %v3274
    %v3381 = vpack.c.b16 %v3279, %v3277
    %v3382 = vpack.c.b16 %v3280, %v3278
    %v3383 = vpack.c.b16 %v3283, %v3281
    %v3384 = vpack.c.b16 %v3284, %v3282
    %v3385 = vpack.c.b16 %v3287, %v3285
    %v3386 = vpack.c.b16 %v3288, %v3286
    %v3387 = vpack.c.b16 %v3291, %v3289
    %v3388 = vpack.c.b16 %v3292, %v3290
    %v3389 = vpack.c.b16 %v3295, %v3293
    %v3390 = vpack.c.b16 %v3296, %v3294
    %v3391 = vpack.c.b16 %v3299, %v3297
    %v3392 = vpack.c.b16 %v3300, %v3298
    %v3393 = vpack.c.b16 %v3303, %v3301
    %v3394 = vpack.c.b16 %v3304, %v3302
    %v3395 = vpack.c.b16 %v3307, %v3305
    %v3396 = vpack.c.b16 %v3308, %v3306
    %v3397 = vpack.c.b16 %v3311, %v3309
    %v3398 = vpack.c.b16 %v3312, %v3310
    %v3399 = vpack.c.b16 %v3315, %v3313
    %v3400 = vpack.c.b16 %v3316, %v3314
    %v3401 = vpack.c.b16 %v3319, %v3317
    %v3402 = vpack.c.b16 %v3320, %v3318
    %v3403 = vpack.c.b16 %v3323, %v3321
    %v3404 = vpack.c.b16 %v3324, %v3322
    %v3405 = vpack.c.b16 %v3327, %v3325
    %v3406 = vpack.c.b16 %v3328, %v3326
    %v3407 = vpack.c.b16 %v3331, %v3329
    %v3408 = vpack.c.b16 %v3332, %v3330
    %v3409 = vpack.c.b16 %v3335, %v3333
    %v3410 = vpack.c.b16 %v3336, %v3334
    %v3411 = vpack.c.b16 %v3339, %v3337
    %v3412 = vpack.c.b16 %v3340, %v3338
    %v3413 = vpack.c.b16 %v3343, %v3341
    %v3414 = vpack.c.b16 %v3344, %v3342
    %v3415 = vpack.c.b16 %v3347, %v3345
    %v3416 = vpack.c.b16 %v3348, %v3346
    %v3417 = vpack.c.b16 %v3351, %v3349
    %v3418 = vpack.c.b16 %v3352, %v3350
    %v3419 = vpack.c.b16 %v3355, %v3353
    %v3420 = vpack.c.b16 %v3356, %v3354
    %3485 = vmatprep.subr.bf16.mxu0 %v3358
    %3486 = vmatpush1.bf16.msra.mxu0 %v3357
    %3487 = vmatprep.subr.bf16.mxu0 %v3360
    %3488 = vmatpush1.bf16.msra.mxu0 %v3359
    %3489 = vmatprep.subr.bf16.mxu0 %v3362
    %3490 = vmatpush1.bf16.msra.mxu0 %v3361
    %3491 = vmatprep.subr.bf16.mxu0 %v3364
    %3492 = vmatpush1.bf16.msra.mxu0 %v3363
    %3493 = vmatprep.subr.bf16.mxu0 %v3366
    %3494 = vmatpush1.bf16.msra.mxu0 %v3365
    %3495 = vmatprep.subr.bf16.mxu0 %v3368
    %3496 = vmatpush1.bf16.msra.mxu0 %v3367
    %3497 = vmatprep.subr.bf16.mxu0 %v3370
    %3498 = vmatpush1.bf16.msra.mxu0 %v3369
    %3499 = vmatprep.subr.bf16.mxu0 %v3372
    %3500 = vmatpush1.bf16.msra.mxu0 %v3371
    %3501 = vmatprep.subr.bf16.mxu0 %v3374
    %3502 = vmatpush1.bf16.msra.mxu0 %v3373
    %3503 = vmatprep.subr.bf16.mxu0 %v3376
    %3504 = vmatpush1.bf16.msra.mxu0 %v3375
    %3505 = vmatprep.subr.bf16.mxu0 %v3378
    %3506 = vmatpush1.bf16.msra.mxu0 %v3377
    %3507 = vmatprep.subr.bf16.mxu0 %v3380
    %3508 = vmatpush1.bf16.msra.mxu0 %v3379
    %3509 = vmatprep.subr.bf16.mxu0 %v3382
    %3510 = vmatpush1.bf16.msra.mxu0 %v3381
    %3511 = vmatprep.subr.bf16.mxu0 %v3384
    %3512 = vmatpush1.bf16.msra.mxu0 %v3383
    %3513 = vmatprep.subr.bf16.mxu0 %v3386
    %3514 = vmatpush1.bf16.msra.mxu0 %v3385
    %3515 = vmatprep.subr.bf16.mxu0 %v3388
    %3516 = vmatpush1.bf16.msra.mxu0 %v3387
    %3517 = vmatprep.mubr.bf16.mxu0 %v3086
    %3518 = vmatmul.mubr.bf16.gmra.mrb[0].mxu0 %v3085
    %v3519 = vpop.f32.mrb[0].mxu0
    %v3520 = vadd.f32 %v3158, %v3519
    %v3521 = vpop.f32.mrb[0].mxu0
    %v3522 = vadd.f32 %v3162, %v3521
    %v3523 = vpop.f32.mrb[0].mxu0
    %v3524 = vadd.f32 %v3158, %v3523
    %v3525 = vpop.f32.mrb[0].mxu0
    %v3526 = vadd.f32 %v3162, %v3525
    %3527 = vdwg.mxu0
    %3528 = vmatprep.subr.bf16.mxu0 %v3390
    %3529 = vmatpush1.bf16.msra.mxu0 %v3389
    %3530 = vmatprep.subr.bf16.mxu0 %v3392
    %3531 = vmatpush1.bf16.msra.mxu0 %v3391
    %3532 = vmatprep.subr.bf16.mxu0 %v3394
    %3533 = vmatpush1.bf16.msra.mxu0 %v3393
    %3534 = vmatprep.subr.bf16.mxu0 %v3396
    %3535 = vmatpush1.bf16.msra.mxu0 %v3395
    %3536 = vmatprep.subr.bf16.mxu0 %v3398
    %3537 = vmatpush1.bf16.msra.mxu0 %v3397
    %3538 = vmatprep.subr.bf16.mxu0 %v3400
    %3539 = vmatpush1.bf16.msra.mxu0 %v3399
    %3540 = vmatprep.subr.bf16.mxu0 %v3402
    %3541 = vmatpush1.bf16.msra.mxu0 %v3401
    %3542 = vmatprep.subr.bf16.mxu0 %v3404
    %3543 = vmatpush1.bf16.msra.mxu0 %v3403
    %3544 = vmatprep.subr.bf16.mxu0 %v3406
    %3545 = vmatpush1.bf16.msra.mxu0 %v3405
    %3546 = vmatprep.subr.bf16.mxu0 %v3408
    %3547 = vmatpush1.bf16.msra.mxu0 %v3407
    %3548 = vmatprep.subr.bf16.mxu0 %v3410
    %3549 = vmatpush1.bf16.msra.mxu0 %v3409
    %3550 = vmatprep.subr.bf16.mxu0 %v3412
    %3551 = vmatpush1.bf16.msra.mxu0 %v3411
    %3552 = vmatprep.subr.bf16.mxu0 %v3414
    %3553 = vmatpush1.bf16.msra.mxu0 %v3413
    %3554 = vmatprep.subr.bf16.mxu0 %v3416
    %3555 = vmatpush1.bf16.msra.mxu0 %v3415
    %3556 = vmatprep.subr.bf16.mxu0 %v3418
    %3557 = vmatpush1.bf16.msra.mxu0 %v3417
    %3558 = vmatprep.subr.bf16.mxu0 %v3420
    %3559 = vmatpush1.bf16.msra.mxu0 %v3419
    %3560 = vmatprep.mubr.bf16.mxu0 %v3088
    %3561 = vmatmul.mubr.bf16.gmra.mrb[0].mxu0 %v3087
    %v3562 = vpop.f32.mrb[0].mxu0
    %v3563 = vadd.f32 %v3520, %v3562
    %v3564 = vpop.f32.mrb[0].mxu0
    %v3565 = vadd.f32 %v3522, %v3564
    %v3566 = vpop.f32.mrb[0].mxu0
    %v3567 = vadd.f32 %v3524, %v3566
    %v3568 = vpop.f32.mrb[0].mxu0
    %v3569 = vadd.f32 %v3526, %v3568
    %3570 = vdwg.mxu0
    %v3571 = vmul.f32 %v3563, 0.01
    %v3572 = vmul.f32 %v3565, 0.01
    %v3573 = vmul.f32 %v3567, 0.01
    %v3574 = vmul.f32 %v3569, 0.01
    %v3575 = vmax.f32 %v3563, %v3571
    %v3576 = vmax.f32 %v3565, %v3572
    %v3577 = vmax.f32 %v3567, %v3573
    %v3578 = vmax.f32 %v3569, %v3574
    %v3579 = vpack.c.bf16 %v3577, %v3575
    %v3580 = vpack.c.bf16 %v3578, %v3576
    %v3581 = vld [vmem:[#allocation11] sm:$0xf]
    %v3582 = vld [vmem:[#allocation11 + $0x4] sm:$0xf]
    %v3583 = vld [vmem:[#allocation11 + $0x8] sm:$0xf]
    %v3584 = vld [vmem:[#allocation11 + $0xc] sm:$0xf]
    %v3585 = vld [vmem:[#allocation11 + $0x10] sm:$0xf]
    %v3586 = vld [vmem:[#allocation11 + $0x14] sm:$0xf]
    %v3587 = vld [vmem:[#allocation11 + $0x18] sm:$0xf]
    %v3588 = vld [vmem:[#allocation11 + $0x1c] sm:$0xf]
    %v3589 = vld [vmem:[#allocation11 + $0x20] sm:$0xf]
    %v3590 = vld [vmem:[#allocation11 + $0x24] sm:$0xf]
    %v3591 = vld [vmem:[#allocation11 + $0x28] sm:$0xf]
    %v3592 = vld [vmem:[#allocation11 + $0x2c] sm:$0xf]
    %v3593 = vld [vmem:[#allocation11 + $0x30] sm:$0xf]
    %v3594 = vld [vmem:[#allocation11 + $0x34] sm:$0xf]
    %v3595 = vld [vmem:[#allocation11 + $0x38] sm:$0xf]
    %v3596 = vld [vmem:[#allocation11 + $0x3c] sm:$0xf]
    %v3597 = vld [vmem:[#allocation11 + $0x40] sm:$0xf]
    %v3598 = vld [vmem:[#allocation11 + $0x44] sm:$0xf]
    %v3599 = vld [vmem:[#allocation11 + $0x48] sm:$0xf]
    %v3600 = vld [vmem:[#allocation11 + $0x4c] sm:$0xf]
    %v3601 = vld [vmem:[#allocation11 + $0x50] sm:$0xf]
    %v3602 = vld [vmem:[#allocation11 + $0x54] sm:$0xf]
    %v3603 = vld [vmem:[#allocation11 + $0x58] sm:$0xf]
    %v3604 = vld [vmem:[#allocation11 + $0x5c] sm:$0xf]
    %v3605 = vld [vmem:[#allocation11 + $0x60] sm:$0xf]
    %v3606 = vld [vmem:[#allocation11 + $0x64] sm:$0xf]
    %v3607 = vld [vmem:[#allocation11 + $0x68] sm:$0xf]
    %v3608 = vld [vmem:[#allocation11 + $0x6c] sm:$0xf]
    %v3609 = vld [vmem:[#allocation11 + $0x70] sm:$0xf]
    %v3610 = vld [vmem:[#allocation11 + $0x74] sm:$0xf]
    %v3611 = vld [vmem:[#allocation11 + $0x78] sm:$0xf]
    %v3612 = vld [vmem:[#allocation11 + $0x7c] sm:$0xf]
    %v3613 = vld [vmem:[%s8] sm:$0x1]
    %v3615 = vlaneseq
    %v3616 = vshrl.u32 %v3615, 7
    %v3617 = vsub.s32 0, %v3616
    %v3618 = vrot.slane %v3613, %v3617
    %v3652 = vunpack.c.l.b16 %v3581
    %v3653 = vunpack.c.l.b16 %v3582
    %v3654 = vunpack.c.l.b16 %v3583
    %v3655 = vunpack.c.l.b16 %v3584
    %v3656 = vunpack.c.l.b16 %v3585
    %v3657 = vunpack.c.l.b16 %v3586
    %v3658 = vunpack.c.l.b16 %v3587
    %v3659 = vunpack.c.l.b16 %v3588
    %v3660 = vunpack.c.l.b16 %v3589
    %v3661 = vunpack.c.l.b16 %v3590
    %v3662 = vunpack.c.l.b16 %v3591
    %v3663 = vunpack.c.l.b16 %v3592
    %v3664 = vunpack.c.l.b16 %v3593
    %v3665 = vunpack.c.l.b16 %v3594
    %v3666 = vunpack.c.l.b16 %v3595
    %v3667 = vunpack.c.l.b16 %v3596
    %v3668 = vunpack.c.l.b16 %v3597
    %v3669 = vunpack.c.l.b16 %v3598
    %v3670 = vunpack.c.l.b16 %v3599
    %v3671 = vunpack.c.l.b16 %v3600
    %v3672 = vunpack.c.l.b16 %v3601
    %v3673 = vunpack.c.l.b16 %v3602
    %v3674 = vunpack.c.l.b16 %v3603
    %v3675 = vunpack.c.l.b16 %v3604
    %v3676 = vunpack.c.l.b16 %v3605
    %v3677 = vunpack.c.l.b16 %v3606
    %v3678 = vunpack.c.l.b16 %v3607
    %v3679 = vunpack.c.l.b16 %v3608
    %v3680 = vunpack.c.l.b16 %v3609
    %v3681 = vunpack.c.l.b16 %v3610
    %v3682 = vunpack.c.l.b16 %v3611
    %v3683 = vunpack.c.l.b16 %v3612
    %v3684 = vpack.c.b16 %v3653, %v3652
    %v3685 = vpack.c.b16 %v3655, %v3654
    %v3686 = vpack.c.b16 %v3657, %v3656
    %v3687 = vpack.c.b16 %v3659, %v3658
    %v3688 = vpack.c.b16 %v3661, %v3660
    %v3689 = vpack.c.b16 %v3663, %v3662
    %v3690 = vpack.c.b16 %v3665, %v3664
    %v3691 = vpack.c.b16 %v3667, %v3666
    %v3692 = vpack.c.b16 %v3669, %v3668
    %v3693 = vpack.c.b16 %v3671, %v3670
    %v3694 = vpack.c.b16 %v3673, %v3672
    %v3695 = vpack.c.b16 %v3675, %v3674
    %v3696 = vpack.c.b16 %v3677, %v3676
    %v3697 = vpack.c.b16 %v3679, %v3678
    %v3698 = vpack.c.b16 %v3681, %v3680
    %v3699 = vpack.c.b16 %v3683, %v3682
    %3716 = vmatprep.subr.bf16.mxu0 0
    %3717 = vmatpush1.bf16.msra.mxu0 %v3684
    %3718 = vmatprep.subr.bf16.mxu0 0
    %3719 = vmatpush1.bf16.msra.mxu0 %v3685
    %3720 = vmatprep.subr.bf16.mxu0 0
    %3721 = vmatpush1.bf16.msra.mxu0 %v3686
    %3722 = vmatprep.subr.bf16.mxu0 0
    %3723 = vmatpush1.bf16.msra.mxu0 %v3687
    %3724 = vmatprep.subr.bf16.mxu0 0
    %3725 = vmatpush1.bf16.msra.mxu0 %v3688
    %3726 = vmatprep.subr.bf16.mxu0 0
    %3727 = vmatpush1.bf16.msra.mxu0 %v3689
    %3728 = vmatprep.subr.bf16.mxu0 0
    %3729 = vmatpush1.bf16.msra.mxu0 %v3690
    %3730 = vmatprep.subr.bf16.mxu0 0
    %3731 = vmatpush1.bf16.msra.mxu0 %v3691
    %3732 = vmatprep.subr.bf16.mxu0 0
    %3733 = vmatpush1.bf16.msra.mxu0 %v3692
    %3734 = vmatprep.subr.bf16.mxu0 0
    %3735 = vmatpush1.bf16.msra.mxu0 %v3693
    %3736 = vmatprep.subr.bf16.mxu0 0
    %3737 = vmatpush1.bf16.msra.mxu0 %v3694
    %3738 = vmatprep.subr.bf16.mxu0 0
    %3739 = vmatpush1.bf16.msra.mxu0 %v3695
    %3740 = vmatprep.subr.bf16.mxu0 0
    %3741 = vmatpush1.bf16.msra.mxu0 %v3696
    %3742 = vmatprep.subr.bf16.mxu0 0
    %3743 = vmatpush1.bf16.msra.mxu0 %v3697
    %3744 = vmatprep.subr.bf16.mxu0 0
    %3745 = vmatpush1.bf16.msra.mxu0 %v3698
    %3746 = vmatprep.subr.bf16.mxu0 0
    %3747 = vmatpush1.bf16.msra.mxu0 %v3699
    %3748 = vmatprep.mubr.bf16.mxu0 %v3580
    %3749 = vmatmul.mubr.bf16.gmra.mrb[0].mxu0 %v3579
    %v3750 = vpop.f32.mrb[0].mxu0
    %v3751 = vadd.f32 %v3618, %v3750
    %v3752 = vpop.f32.mrb[0].mxu0
    %v3753 = vpop.f32.mrb[0].mxu0
    %v3754 = vadd.f32 %v3618, %v3753
    %v3755 = vpop.f32.mrb[0].mxu0
    %3756 = vdwg.mxu0
    %v3757 = vmul.f32 %v3751, 0.01
    %v3758 = vmul.f32 %v3754, 0.01
    %v3759 = vmax.f32 %v3751, %v3757
    %v3760 = vmax.f32 %v3754, %v3758
    %v3761 = vld [vmem:[#allocation13] sm:$0xff]
    %v3762 = vld [vmem:[#allocation13 + $0x8] sm:$0xff]
    %v3763 = vld [vmem:[#allocation13 + $0x10] sm:$0xff]
    %v3764 = vld [vmem:[#allocation13 + $0x18] sm:$0xff]
    %v3765 = vld [vmem:[#allocation13 + $0x20] sm:$0xff]
    %v3766 = vld [vmem:[#allocation13 + $0x28] sm:$0xff]
    %v3767 = vld [vmem:[#allocation13 + $0x30] sm:$0xff]
    %v3768 = vld [vmem:[#allocation13 + $0x38] sm:$0xff]
    %v3769 = vld [vmem:[#allocation13 + $0x40] sm:$0xff]
    %v3770 = vld [vmem:[#allocation13 + $0x48] sm:$0xff]
    %v3771 = vld [vmem:[#allocation13 + $0x50] sm:$0xff]
    %v3772 = vld [vmem:[#allocation13 + $0x58] sm:$0xff]
    %v3773 = vld [vmem:[#allocation13 + $0x60] sm:$0xff]
    %v3774 = vld [vmem:[#allocation13 + $0x68] sm:$0xff]
    %v3775 = vld [vmem:[#allocation13 + $0x70] sm:$0xff]
    %v3776 = vld [vmem:[#allocation13 + $0x78] sm:$0xff]
    %v3777 = vld [vmem:[%s10] sm:$0x1]
    %v3779 = vlaneseq
    %v3780 = vshrl.u32 %v3779, 7
    %v3781 = vsub.s32 0, %v3780
    %v3782 = vrot.slane %v3777, %v3781
    %3784 = vmatprep.subr.mxu0 0.0
    %3785 = vmatpush1.msra.mxu0 %v3761
    %3786 = vmatprep.subr.mxu0 0.0
    %3787 = vmatpush1.msra.mxu0 %v3762
    %3788 = vmatprep.subr.mxu0 0.0
    %3789 = vmatpush1.msra.mxu0 %v3763
    %3790 = vmatprep.subr.mxu0 0.0
    %3791 = vmatpush1.msra.mxu0 %v3764
    %3792 = vmatprep.subr.mxu0 0.0
    %3793 = vmatpush1.msra.mxu0 %v3765
    %3794 = vmatprep.subr.mxu0 0.0
    %3795 = vmatpush1.msra.mxu0 %v3766
    %3796 = vmatprep.subr.mxu0 0.0
    %3797 = vmatpush1.msra.mxu0 %v3767
    %3798 = vmatprep.subr.mxu0 0.0
    %3799 = vmatpush1.msra.mxu0 %v3768
    %3800 = vmatprep.subr.mxu0 0.0
    %3801 = vmatpush1.msra.mxu0 %v3769
    %3802 = vmatprep.subr.mxu0 0.0
    %3803 = vmatpush1.msra.mxu0 %v3770
    %3804 = vmatprep.subr.mxu0 0.0
    %3805 = vmatpush1.msra.mxu0 %v3771
    %3806 = vmatprep.subr.mxu0 0.0
    %3807 = vmatpush1.msra.mxu0 %v3772
    %3808 = vmatprep.subr.mxu0 0.0
    %3809 = vmatpush1.msra.mxu0 %v3773
    %3810 = vmatprep.subr.mxu0 0.0
    %3811 = vmatpush1.msra.mxu0 %v3774
    %3812 = vmatprep.subr.mxu0 0.0
    %3813 = vmatpush1.msra.mxu0 %v3775
    %3814 = vmatprep.subr.mxu0 0.0
    %3815 = vmatpush1.msra.mxu0 %v3776
    %3816 = vmatprep.subr.mxu0 0.0
    %3817 = vmatpush1.msra.mxu0 0.0
    %3818 = vmatprep.subr.mxu0 0.0
    %3819 = vmatpush1.msra.mxu0 0.0
    %3820 = vmatprep.subr.mxu0 0.0
    %3821 = vmatpush1.msra.mxu0 0.0
    %3822 = vmatprep.subr.mxu0 0.0
    %3823 = vmatpush1.msra.mxu0 0.0
    %3824 = vmatprep.subr.mxu0 0.0
    %3825 = vmatpush1.msra.mxu0 0.0
    %3826 = vmatprep.subr.mxu0 0.0
    %3827 = vmatpush1.msra.mxu0 0.0
    %3828 = vmatprep.subr.mxu0 0.0
    %3829 = vmatpush1.msra.mxu0 0.0
    %3830 = vmatprep.subr.mxu0 0.0
    %3831 = vmatpush1.msra.mxu0 0.0
    %3832 = vmatprep.subr.mxu0 0.0
    %3833 = vmatpush1.msra.mxu0 0.0
    %3834 = vmatprep.subr.mxu0 0.0
    %3835 = vmatpush1.msra.mxu0 0.0
    %3836 = vmatprep.subr.mxu0 0.0
    %3837 = vmatpush1.msra.mxu0 0.0
    %3838 = vmatprep.subr.mxu0 0.0
    %3839 = vmatpush1.msra.mxu0 0.0
    %3840 = vmatprep.subr.mxu0 0.0
    %3841 = vmatpush1.msra.mxu0 0.0
    %3842 = vmatprep.subr.mxu0 0.0
    %3843 = vmatpush1.msra.mxu0 0.0
    %3844 = vmatprep.subr.mxu0 0.0
    %3845 = vmatpush1.msra.mxu0 0.0
    %3846 = vmatprep.subr.mxu0 0.0
    %3847 = vmatpush1.msra.mxu0 0.0
    %3848 = vmatprep.mubr.f32.mxu0 0.0
    %3849 = vmatmul.mubr.f32.gmra.mrb[0].mxu0 %v3759
    %v3850 = vpop.f32.mrb[0].mxu0
    %v3851 = vadd.f32 %v3782, %v3850
    %v3852 = vpop.f32.mrb[0].mxu0
    %3853 = vmatprep.mubr.f32.mxu0 0.0
    %3854 = vmatmul.mubr.f32.gmra.mrb[0].mxu0 %v3760
    %v3855 = vpop.f32.mrb[0].mxu0
    %v3856 = vadd.f32 %v3782, %v3855
    %v3857 = vpop.f32.mrb[0].mxu0
    %3858 = vdwg.mxu0
    %3859 = vst [vmem:[#allocation14] sm:$0xff] %v3851
    %3860 = vst [vmem:[#allocation14 + $0x8] sm:$0xff] %v3856
    // Predicated region
    $region74: #{tpu_custom_call.1} parent=1 // pred_check
      _
    $region75: #{tpu_custom_call.1} parent=1 // pred_check_branch
      %3862 = sbr.rel (0) target = $region77
    $region76: #{tpu_custom_call.1} parent=1 // pred_region
      %s3864 = ssub.s32 256, 256
      %3865 = vsyncadd [#allocation4], %s3864
      %s3866 = sshll.u32 [#allocation14], 4
      %s3867 = int_to_ptr.vmem [resolvable:$true] %s3866
      %3872 = dma.vmem_to_hbm [thread:$0]  %s3867, 256, %s11, [#allocation4], 128, 128, 8
    $region77: #{tpu_custom_call.1} parent=1 // pred_fallthru
      _
    // Predicated region
    $region78: #{tpu_custom_call.1} parent=1 // pred_check
      _
    $region79: #{tpu_custom_call.1} parent=1 // pred_check_branch
      %3874 = sbr.rel (0) target = $region81
    $region80: #{tpu_custom_call.1} parent=1 // pred_region
      %3875 = dma.done [#allocation4], 256
    $region81: #{tpu_custom_call.1} parent=1 // pred_fallthru
      _
    %3876 = vsyncpa [#allocation3], 1
    %3877 = vsyncpa [#allocation6], 1
    %3878 = vsyncpa [#allocation9], 1
    %3879 = vsyncpa [#allocation12], 1
    %3880 = vsyncpa [#allocation4], 1

</llo_original>
